<compile_context>
chip_gen: v5e
topology: v5e:2x2
jax: 0.10.0
libtpu: 0.0.40
codegen_flags: <defaults>
</compile_context>

<pallas_src>
import functools
import math

import jax
import jax.numpy as jnp
from jax.experimental import pallas as pl
from jax.experimental.pallas import tpu as pltpu


# ----------------------------- tiling helpers -----------------------------

def _pick_feature_tile(dim, target):
    """Largest divisor of `dim` that is a multiple of 256 (preferred, matches
    the v6e/v7x 256-deep MXU) or 128, and <= target.  Falls back to the full
    extent (always a legal block dim)."""
    for quantum in (256, 128):
        t = (target // quantum) * quantum
        while t >= quantum:
            if dim % t == 0:
                return t
            t -= quantum
    return dim


def _pick_row_tile(m, target=256):
    """Row tile: full extent for small M, else a fixed multiple-of-8 tile used
    with a pl.cdiv grid (edge blocks are masked on write)."""
    return m if m <= target else target


def _pick_head_group(num_heads, head_dim):
    """Smallest head group whose lane width (G*Dh) is a multiple of 128."""
    for g in range(1, num_heads + 1):
        if num_heads % g == 0 and (g * head_dim) % 128 == 0:
            return g
    return num_heads


# ----------------------------- matmul kernel -----------------------------

def _mm_kernel(*refs, activation, fuse_residual, fuse_ln, ln_eps):
    """Tiled MXU matmul, K-axis accumulation, fused epilogue:
       bias [+ GELU] [+ residual + LayerScale] [+ LayerNorm second output]."""
    x_ref, w_ref, b_ref = refs[0], refs[1], refs[2]
    pos = 3
    if fuse_residual:
        res_ref, gamma_ref = refs[pos], refs[pos + 1]
        pos += 2
    if fuse_ln:
        lnw_ref, lnb_ref = refs[pos], refs[pos + 1]
        pos += 2
    if fuse_ln:
        o_ref, ln_ref, acc_ref = refs[pos], refs[pos + 1], refs[pos + 2]
    else:
        o_ref, acc_ref = refs[pos], refs[pos + 1]

    k = pl.program_id(2)

    @pl.when(k == 0)
    def _():
        acc_ref[...] = jnp.zeros_like(acc_ref)

    acc_ref[...] += jnp.dot(
        x_ref[...].astype(jnp.bfloat16),
        w_ref[...].astype(jnp.bfloat16),
        preferred_element_type=jnp.float32)

    @pl.when(k == pl.num_programs(2) - 1)
    def _():
        y = acc_ref[...] + b_ref[...].astype(jnp.float32)
        if activation == "gelu":
            # exact GELU (torch nn.GELU default, approximate='none')
            y = 0.5 * y * (1.0 + jax.lax.erf(y * (1.0 / math.sqrt(2.0))))
        if fuse_residual:
            # residual + LayerScale: out = res + gamma * y
            y = res_ref[...].astype(jnp.float32) + y * gamma_ref[...].astype(jnp.float32)
        o_ref[...] = y.astype(o_ref.dtype)
        if fuse_ln:
            # LayerNorm of the new residual stream (tn == full N, row-local)
            mean = jnp.mean(y, axis=-1, keepdims=True)
            yc = y - mean
            var = jnp.mean(yc * yc, axis=-1, keepdims=True)
            inv = jax.lax.rsqrt(var + ln_eps)
            ln_ref[...] = (yc * inv * lnw_ref[...].astype(jnp.float32)
                           + lnb_ref[...].astype(jnp.float32)).astype(ln_ref.dtype)


def matmul_bias(x, w, b, activation="none", residual=None, gamma=None,
                ln_w=None, ln_b=None, ln_eps=1e-6, out_dtype=jnp.bfloat16):
    """out = act(x @ w + b); optionally fused with `residual + gamma * (...)`
    and a following LayerNorm (returned as a second output)."""
    M, K = x.shape
    K2, N = w.shape
    assert K == K2
    fuse_res = residual is not None
    fuse_ln = ln_w is not None

    tm = _pick_row_tile(M, 256)
    tk = _pick_feature_tile(K, 512)
    assert K % tk == 0, "contraction dim must tile exactly (pad K in the caller)"
    tn = N if fuse_ln else _pick_feature_tile(N, 768)
    gm, gn, gk = pl.cdiv(M, tm), N // tn, K // tk

    kern = functools.partial(_mm_kernel, activation=activation,
                             fuse_residual=fuse_res, fuse_ln=fuse_ln, ln_eps=ln_eps)

    in_specs = [
        pl.BlockSpec((tm, tk), lambda i, j, k: (i, k)),
        pl.BlockSpec((tk, tn), lambda i, j, k: (k, j)),
        pl.BlockSpec((1, tn), lambda i, j, k: (0, j)),
    ]
    inputs = [x, w, b.reshape(1, N)]
    if fuse_res:
        in_specs += [pl.BlockSpec((tm, tn), lambda i, j, k: (i, j)),
                     pl.BlockSpec((1, tn), lambda i, j, k: (0, j))]
        inputs += [residual, gamma.reshape(1, N)]
    if fuse_ln:
        in_specs += [pl.BlockSpec((1, tn), lambda i, j, k: (0, j)),
                     pl.BlockSpec((1, tn), lambda i, j, k: (0, j))]
        inputs += [ln_w.reshape(1, N), ln_b.reshape(1, N)]

    out_spec = pl.BlockSpec((tm, tn), lambda i, j, k: (i, j))
    if fuse_ln:
        out_shape = (jax.ShapeDtypeStruct((M, N), out_dtype),
                     jax.ShapeDtypeStruct((M, N), out_dtype))
        out_specs = (out_spec, out_spec)
    else:
        out_shape = jax.ShapeDtypeStruct((M, N), out_dtype)
        out_specs = out_spec

    return pl.pallas_call(
        kern,
        out_shape=out_shape,
        grid=(gm, gn, gk),
        in_specs=in_specs,
        out_specs=out_specs,
        scratch_shapes=[pltpu.VMEM((tm, tn), jnp.float32)],
        compiler_params=pltpu.CompilerParams(
            dimension_semantics=("parallel", "parallel", "arbitrary")),
    )(*inputs)


# ----------------------------- layernorm kernel -----------------------------

def _layernorm_kernel(x_ref, g_ref, b_ref, o_ref, *, eps):
    x = x_ref[...].astype(jnp.float32)
    mean = jnp.mean(x, axis=-1, keepdims=True)
    xc = x - mean
    var = jnp.mean(xc * xc, axis=-1, keepdims=True)
    inv = jax.lax.rsqrt(var + eps)
    o_ref[...] = (xc * inv * g_ref[...].astype(jnp.float32)
                  + b_ref[...].astype(jnp.float32)).astype(o_ref.dtype)


def layernorm(x, g, b, eps=1e-6, out_dtype=jnp.bfloat16):
    M, D = x.shape
    tm = _pick_row_tile(M, 256)
    kern = functools.partial(_layernorm_kernel, eps=eps)
    return pl.pallas_call(
        kern,
        out_shape=jax.ShapeDtypeStruct((M, D), out_dtype),
        grid=(pl.cdiv(M, tm),),
        in_specs=[
            pl.BlockSpec((tm, D), lambda i: (i, 0)),
            pl.BlockSpec((1, D), lambda i: (0, 0)),
            pl.BlockSpec((1, D), lambda i: (0, 0)),
        ],
        out_specs=pl.BlockSpec((tm, D), lambda i: (i, 0)),
        compiler_params=pltpu.CompilerParams(dimension_semantics=("parallel",)),
    )(x, g.reshape(1, D), b.reshape(1, D))


# ----------------------------- attention kernel -----------------------------

def _attn_kernel(q_ref, k_ref, v_ref, o_ref, m_sc, l_sc, acc_sc,
                 *, group, head_dim, t_total, tkv, mask_kv):
    """Flash-style online-softmax attention over one (batch, head-group,
    q-tile) output block, iterating KV tiles on the innermost grid axis.

    q/k/v blocks are (1, tile, group*head_dim) lane-dense slices of the
    (B, T, 3D) qkv tensor selected purely by BlockSpec index_maps; the
    attention scale is pre-folded into the q columns of the QKV weights."""
    G, Dh = group, head_dim
    kv = pl.program_id(3)

    @pl.when(kv == 0)
    def _():
        m_sc[...] = jnp.full_like(m_sc, -jnp.inf)
        l_sc[...] = jnp.zeros_like(l_sc)
        acc_sc[...] = jnp.zeros_like(acc_sc)

    q_all = q_ref[0]                                   # (tq, G*Dh) bf16
    k_all = k_ref[0]                                   # (tkv, G*Dh) bf16
    v_all = v_ref[0]
    if mask_kv:
        # Mask out-of-range keys/values of the (possibly partial) last KV tile.
        kv_row = kv * tkv + jax.lax.broadcasted_iota(jnp.int32, (tkv, 1), 0)
        v_all = jnp.where(kv_row < t_total, v_all, jnp.zeros_like(v_all))
        kv_col = kv * tkv + jax.lax.broadcasted_iota(jnp.int32, (1, tkv), 1)
        score_valid = kv_col < t_total                 # (1, tkv)

    for h in range(G):                                 # small static head loop
        sl = slice(h * Dh, (h + 1) * Dh)
        qh, kh, vh = q_all[:, sl], k_all[:, sl], v_all[:, sl]
        # scores: contract the head dim directly (no materialized k.T)
        s = jax.lax.dot_general(qh, kh, (((1,), (1,)), ((), ())),
                                preferred_element_type=jnp.float32)   # (tq, tkv)
        if mask_kv:
            s = jnp.where(score_valid, s, -jnp.inf)
        m_prev = m_sc[h]                               # (tq, 1)
        m_new = jnp.maximum(m_prev, jnp.max(s, axis=-1, keepdims=True))
        alpha = jnp.exp(m_prev - m_new)
        p = jnp.exp(s - m_new)
        l_sc[h] = alpha * l_sc[h] + jnp.sum(p, axis=-1, keepdims=True)
        acc_sc[h] = alpha * acc_sc[h] + jnp.dot(
            p.astype(jnp.bfloat16), vh, preferred_element_type=jnp.float32)
        m_sc[h] = m_new

    @pl.when(kv == pl.num_programs(3) - 1)
    def _():
        outs = [acc_sc[h] * pl.reciprocal(l_sc[h], approx=True) for h in range(G)]
        o_ref[0] = jnp.concatenate(outs, axis=-1).astype(o_ref.dtype)


def attention(qkv, num_heads):
    """qkv: (B, T, 3*D) with column order [q heads | k heads | v heads]; the
    attention scale is already folded into the q columns.  Returns (B, T, D)
    bf16 with per-head outputs concatenated along the feature dim."""
    B, T, threeD = qkv.shape
    D = threeD // 3
    Dh = D // num_heads
    G = _pick_head_group(num_heads, Dh)
    NG = num_heads // G
    gd = G * Dh

    tq = T if T <= 256 else 128
    tkv = T if T <= 256 else 256
    nq, nkv = pl.cdiv(T, tq), pl.cdiv(T, tkv)

    kern = functools.partial(_attn_kernel, group=G, head_dim=Dh,
                             t_total=T, tkv=tkv, mask_kv=(T % tkv != 0))
    return pl.pallas_call(
        kern,
        out_shape=jax.ShapeDtypeStruct((B, T, D), jnp.bfloat16),
        grid=(B, NG, nq, nkv),
        in_specs=[
            pl.BlockSpec((1, tq, gd), lambda b, g, qi, ki: (b, qi, g)),           # q
            pl.BlockSpec((1, tkv, gd), lambda b, g, qi, ki: (b, ki, NG + g)),     # k
            pl.BlockSpec((1, tkv, gd), lambda b, g, qi, ki: (b, ki, 2 * NG + g)), # v
        ],
        out_specs=pl.BlockSpec((1, tq, gd), lambda b, g, qi, ki: (b, qi, g)),
        scratch_shapes=[
            pltpu.VMEM((G, tq, 1), jnp.float32),   # running max
            pltpu.VMEM((G, tq, 1), jnp.float32),   # running denom
            pltpu.VMEM((G, tq, Dh), jnp.float32),  # output accumulator
        ],
        compiler_params=pltpu.CompilerParams(
            dimension_semantics=("parallel", "parallel", "parallel", "arbitrary")),
    )(qkv, qkv, qkv)


# ----------------------------- model glue -----------------------------

def init_params(key, cfg):
    D = cfg["embed_dim"]
    P = cfg["patch_size"]
    C = cfg["in_chans"]
    Dm = D * cfg["mlp_ratio"]
    N = (cfg["img_size"] // P) ** 2
    T = N + 1
    Hh = cfg["num_heads"]
    scale = (D // Hh) ** -0.5
    keys = jax.random.split(key, 8 + cfg["depth"])

    def nrm(k, shape, s=0.02):
        return s * jax.random.normal(k, shape, dtype=jnp.float32)

    # Patch embedding: Conv2d(C, D, k=P, s=P) weight flattened to (C*P*P, D),
    # zero-padded along K to a multiple of 256 so the MXU feed stays aligned.
    Kp = C * P * P
    Kpad = ((Kp + 255) // 256) * 256
    w_pe = nrm(keys[0], (D, C, P, P)).reshape(D, Kp).T        # (K, D), (C,ph,pw) order
    w_pe = jnp.pad(w_pe, ((0, Kpad - Kp), (0, 0))).astype(jnp.bfloat16)

    params = {
        "patch_w": w_pe,
        "patch_b": nrm(keys[1], (D,)),
        "cls_token": nrm(keys[2], (1, 1, D)),
        "pos_embed": nrm(keys[3], (1, T, D)),
        "norm_w": jnp.ones((D,), jnp.float32),
        "norm_b": jnp.zeros((D,), jnp.float32),
        "blocks": [],
    }
    for i in range(cfg["depth"]):
        ks = jax.random.split(keys[8 + i], 12)
        # attention scale folded into the q output columns: x @ (W*s) == (x @ W) * s
        qkv_w = nrm(ks[0], (D, 3 * D)).at[:, :D].multiply(scale)
        qkv_b = nrm(ks[1], (3 * D,)).at[:D].multiply(scale)
        params["blocks"].append({
            "n1_w": jnp.ones((D,), jnp.float32), "n1_b": jnp.zeros((D,), jnp.float32),
            "qkv_w": qkv_w.astype(jnp.bfloat16), "qkv_b": qkv_b,
            "proj_w": nrm(ks[2], (D, D)).astype(jnp.bfloat16), "proj_b": nrm(ks[3], (D,)),
            "ls1": 0.1 * jnp.ones((D,), jnp.float32) + nrm(ks[4], (D,)),
            "n2_w": jnp.ones((D,), jnp.float32), "n2_b": jnp.zeros((D,), jnp.float32),
            "fc1_w": nrm(ks[5], (D, Dm)).astype(jnp.bfloat16), "fc1_b": nrm(ks[6], (Dm,)),
            "fc2_w": nrm(ks[7], (Dm, D)).astype(jnp.bfloat16), "fc2_b": nrm(ks[8], (D,)),
            "ls2": 0.1 * jnp.ones((D,), jnp.float32) + nrm(ks[9], (D,)),
        })
    return params


def dinov2_forward(params, images, cfg):
    """images: (B, 3, H, W) NCHW float32.  Returns normalized CLS token (B, D)."""
    B, C, H, W = images.shape
    P = cfg["patch_size"]
    D = cfg["embed_dim"]
    Hn, Wn = H // P, W // P
    N = Hn * Wn
    T = N + 1
    Hh = cfg["num_heads"]

    # --- patch embedding: stride-P conv == patch-flatten + matmul (MXU) ---
    x = images.reshape(B, C, Hn, P, Wn, P)
    x = x.transpose(0, 2, 4, 1, 3, 5).reshape(B * N, C * P * P)   # (C, ph, pw) order
    Kpad = params["patch_w"].shape[0]
    x = jnp.pad(x, ((0, 0), (0, Kpad - x.shape[1]))).astype(jnp.bfloat16)
    x = matmul_bias(x, params["patch_w"], params["patch_b"])      # (B*N, D) bf16
    x = x.reshape(B, N, D)

    # --- cls token + positional embedding ---
    cls = jnp.broadcast_to(params["cls_token"], (B, 1, D))
    x = jnp.concatenate([cls, x], axis=1) + params["pos_embed"]   # (B, T, D) f32
    x2d = x.reshape(B * T, D).astype(jnp.bfloat16)                # bf16 residual stream

    # --- transformer blocks: x = x + ls1*attn(ln(x)); x = x + ls2*mlp(ln(x)) ---
    blocks = params["blocks"]
    depth = len(blocks)
    h_ln = layernorm(x2d, blocks[0]["n1_w"], blocks[0]["n1_b"])   # first pre-attn LN
    for i, blk in enumerate(blocks):
        qkv = matmul_bias(h_ln, blk["qkv_w"], blk["qkv_b"])       # (B*T, 3D) bf16
        o = attention(qkv.reshape(B, T, 3 * D), Hh)               # (B, T, D) bf16
        # output projection with fused residual + LayerScale + next LN (n2)
        x2d, h_ln = matmul_bias(o.reshape(B * T, D), blk["proj_w"], blk["proj_b"],
                                residual=x2d, gamma=blk["ls1"],
                                ln_w=blk["n2_w"], ln_b=blk["n2_b"])

        h = matmul_bias(h_ln, blk["fc1_w"], blk["fc1_b"], activation="gelu")
        # fc2 with fused residual + LayerScale + next block's pre-attn LN
        # (or the model's final norm after the last block)
        if i + 1 < depth:
            nlw, nlb = blocks[i + 1]["n1_w"], blocks[i + 1]["n1_b"]
        else:
            nlw, nlb = params["norm_w"], params["norm_b"]
        x2d, h_ln = matmul_bias(h, blk["fc2_w"], blk["fc2_b"],
                                residual=x2d, gamma=blk["ls2"],
                                ln_w=nlw, ln_b=nlb)

    # h_ln now holds norm(x); return x_norm_clstoken (head = Identity)
    return h_ln.reshape(B, T, D)[:, 0, :].astype(jnp.float32)


if __name__ == "__main__":
    # Real dinov2_vitb14: embed_dim=768, depth=12, num_heads=12, patch_size=14.
    # Scaled-down config for the demo run (same architecture / semantics).
    # TODO(synk): real pretrained weights cannot be loaded here (torch.hub
    # checkpoint); deterministic synthetic weights are used instead.
    cfg = dict(patch_size=14, embed_dim=128, depth=2, num_heads=4,
               mlp_ratio=4, img_size=28, in_chans=3)

    key = jax.random.PRNGKey(0)
    params = init_params(key, cfg)
    images = jax.random.normal(jax.random.fold_in(key, 999),
                               (2, 3, cfg["img_size"], cfg["img_size"]),
                               dtype=jnp.float32)

    fwd = jax.jit(lambda p, im: dinov2_forward(p, im, cfg))
    out = jax.block_until_ready(fwd(params, images))

    assert out.shape == (2, cfg["embed_dim"])
    assert out.dtype == jnp.float32
    assert bool(jnp.all(jnp.isfinite(out)))
    print("KERNEL_OK")
</pallas_src>

<mosaic_0001>
module attributes {stable_mosaic.version = 11 : i64} {
  func.func @_mm_kernel(%arg0: i32, %arg1: i32, %arg2: i32, %arg3: memref<8x256xbf16, #tpu.memory_space<vmem>>, %arg4: memref<256x128xbf16, #tpu.memory_space<vmem>>, %arg5: memref<1x128xf32, #tpu.memory_space<vmem>>, %arg6: memref<8x128xbf16, #tpu.memory_space<vmem>>, %arg7: memref<8x128xf32, #tpu.memory_space<vmem>>) attributes {dimension_semantics = [#tpu.dimension_semantics<parallel>, #tpu.dimension_semantics<parallel>, #tpu.dimension_semantics<arbitrary>], iteration_bounds = array<i64: 1, 1, 3>, scalar_prefetch = 0 : i64, scratch_operands = 1 : i64, tpu.core_type = #tpu.core_type<tc>, window_params = [{transform_indices = @transform_0, window_bounds = array<i64: 8, 256>}, {transform_indices = @transform_1, window_bounds = array<i64: 256, 128>}, {transform_indices = @transform_2, window_bounds = array<i64: 1, 128>}, {transform_indices = @transform_3, window_bounds = array<i64: 8, 128>}]} {
    %c0_i32 = arith.constant 0 : i32
    %0 = arith.cmpi eq, %arg2, %c0_i32 : i32
    %1 = arith.extui %0 : i1 to i32
    %c0_i32_0 = arith.constant 0 : i32
    %2 = arith.cmpi ne, %1, %c0_i32_0 : i32
    scf.if %2 {
      %cst_9 = arith.constant 0.000000e+00 : f32
      %12 = vector.broadcast %cst_9 : f32 to vector<8x128xf32>
      %c0_10 = arith.constant 0 : index
      %c0_11 = arith.constant 0 : index
      %13 = vector.load %arg7[%c0_10, %c0_11] : memref<8x128xf32, #tpu.memory_space<vmem>>, vector<8x128xf32>
      tpu.vector_store %arg7[%c0_10, %c0_11], %12 {strides = array<i32>} : memref<8x128xf32, #tpu.memory_space<vmem>>, vector<8x128xf32>,
    } else {
    }
    %c0 = arith.constant 0 : index
    %c0_1 = arith.constant 0 : index
    %3 = vector.load %arg7[%c0, %c0_1] : memref<8x128xf32, #tpu.memory_space<vmem>>, vector<8x128xf32>
    %c0_2 = arith.constant 0 : index
    %c0_3 = arith.constant 0 : index
    %4 = vector.load %arg3[%c0_2, %c0_3] : memref<8x256xbf16, #tpu.memory_space<vmem>>, vector<8x256xbf16>
    %c0_4 = arith.constant 0 : index
    %c0_5 = arith.constant 0 : index
    %5 = vector.load %arg4[%c0_4, %c0_5] : memref<256x128xbf16, #tpu.memory_space<vmem>>, vector<256x128xbf16>
    %cst = arith.constant dense<0.000000e+00> : vector<8x128xf32>
    %6 = tpu.matmul %4, %5, %cst {dimension_numbers = #tpu.dot_dimension_numbers<[1], [0], [0], [1], [0, 0, 1, 1], [], []>} : vector<8x256xbf16>, vector<256x128xbf16>, vector<8x128xf32> -> vector<8x128xf32>
    %7 = arith.addf %3, %6 : vector<8x128xf32>
    %c0_6 = arith.constant 0 : index
    %c0_7 = arith.constant 0 : index
    %8 = vector.load %arg7[%c0_6, %c0_7] : memref<8x128xf32, #tpu.memory_space<vmem>>, vector<8x128xf32>
    tpu.vector_store %arg7[%c0_6, %c0_7], %7 {strides = array<i32>} : memref<8x128xf32, #tpu.memory_space<vmem>>, vector<8x128xf32>,
    %c2_i32 = arith.constant 2 : i32
    %9 = arith.cmpi eq, %arg2, %c2_i32 : i32
    %10 = arith.extui %9 : i1 to i32
    %c0_i32_8 = arith.constant 0 : i32
    %11 = arith.cmpi ne, %10, %c0_i32_8 : i32
    scf.if %11 {
      %c0_9 = arith.constant 0 : index
      %c0_10 = arith.constant 0 : index
      %12 = vector.load %arg7[%c0_9, %c0_10] : memref<8x128xf32, #tpu.memory_space<vmem>>, vector<8x128xf32>
      %c0_11 = arith.constant 0 : index
      %c0_12 = arith.constant 0 : index
      %13 = vector.load %arg5[%c0_11, %c0_12] : memref<1x128xf32, #tpu.memory_space<vmem>>, vector<1x128xf32>
      %14 = vector.broadcast %13 : vector<1x128xf32> to vector<8x128xf32>
      %15 = arith.addf %12, %14 : vector<8x128xf32>
      %16 = arith.truncf %15 : vector<8x128xf32> to vector<8x128xbf16>
      %c0_13 = arith.constant 0 : index
      %c0_14 = arith.constant 0 : index
      %17 = vector.load %arg6[%c0_13, %c0_14] : memref<8x128xbf16, #tpu.memory_space<vmem>>, vector<8x128xbf16>
      tpu.vector_store %arg6[%c0_13, %c0_14], %16 {strides = array<i32>} : memref<8x128xbf16, #tpu.memory_space<vmem>>, vector<8x128xbf16>,
    } else {
    }
    return
  }
  func.func @transform_0(%arg0: i32, %arg1: i32, %arg2: i32) -> (i32, i32) {
    %c0_i32 = arith.constant 0 : i32
    return %arg0, %arg2 : i32, i32
  }
  func.func @transform_1(%arg0: i32, %arg1: i32, %arg2: i32) -> (i32, i32) {
    %c0_i32 = arith.constant 0 : i32
    return %arg2, %arg1 : i32, i32
  }
  func.func @transform_2(%arg0: i32, %arg1: i32, %arg2: i32) -> (i32, i32) {
    %c0_i32 = arith.constant 0 : i32
    %c0_i32_0 = arith.constant 0 : i32
    return %c0_i32, %arg1 : i32, i32
  }
  func.func @transform_3(%arg0: i32, %arg1: i32, %arg2: i32) -> (i32, i32) {
    %c0_i32 = arith.constant 0 : i32
    return %arg0, %arg1 : i32, i32
  }
}

module attributes {stable_mosaic.version = 11 : i64} {
  func.func @_layernorm_kernel(%arg0: i32, %arg1: memref<10x128xbf16, #tpu.memory_space<vmem>>, %arg2: memref<1x128xf32, #tpu.memory_space<vmem>>, %arg3: memref<1x128xf32, #tpu.memory_space<vmem>>, %arg4: memref<10x128xbf16, #tpu.memory_space<vmem>>) attributes {dimension_semantics = [#tpu.dimension_semantics<parallel>], iteration_bounds = array<i64: 1>, scalar_prefetch = 0 : i64, scratch_operands = 0 : i64, tpu.core_type = #tpu.core_type<tc>, window_params = [{transform_indices = @transform_0, window_bounds = array<i64: 10, 128>}, {pipeline_mode = #tpu.pipeline_mode<synchronous>, transform_indices = @transform_1, window_bounds = array<i64: 1, 128>}, {pipeline_mode = #tpu.pipeline_mode<synchronous>, transform_indices = @transform_2, window_bounds = array<i64: 1, 128>}, {transform_indices = @transform_3, window_bounds = array<i64: 10, 128>}]} {
    %c0 = arith.constant 0 : index
    %c0_0 = arith.constant 0 : index
    %0 = vector.load %arg1[%c0, %c0_0] : memref<10x128xbf16, #tpu.memory_space<vmem>>, vector<10x128xbf16>
    %1 = arith.extf %0 : vector<10x128xbf16> to vector<10x128xf32>
    %cst = arith.constant dense<0.000000e+00> : vector<10xf32>
    %2 = vector.multi_reduction <add>, %1, %cst [1] : vector<10x128xf32> to vector<10xf32>
    %3 = vector.shape_cast %2 : vector<10xf32> to vector<10x1xf32>
    %cst_1 = arith.constant 1.280000e+02 : f32
    %4 = vector.broadcast %cst_1 : f32 to vector<10x1xf32>
    %5 = arith.divf %3, %4 : vector<10x1xf32>
    %6 = vector.broadcast %5 : vector<10x1xf32> to vector<10x128xf32>
    %7 = arith.subf %1, %6 : vector<10x128xf32>
    %8 = arith.mulf %7, %7 : vector<10x128xf32>
    %cst_2 = arith.constant dense<0.000000e+00> : vector<10xf32>
    %9 = vector.multi_reduction <add>, %8, %cst_2 [1] : vector<10x128xf32> to vector<10xf32>
    %10 = vector.shape_cast %9 : vector<10xf32> to vector<10x1xf32>
    %cst_3 = arith.constant 1.280000e+02 : f32
    %11 = vector.broadcast %cst_3 : f32 to vector<10x1xf32>
    %12 = arith.divf %10, %11 : vector<10x1xf32>
    %cst_4 = arith.constant 9.99999997E-7 : f32
    %13 = vector.broadcast %cst_4 : f32 to vector<10x1xf32>
    %14 = arith.addf %12, %13 : vector<10x1xf32>
    %15 = math.rsqrt %14 : vector<10x1xf32>
    %16 = vector.broadcast %15 : vector<10x1xf32> to vector<10x128xf32>
    %17 = arith.mulf %7, %16 : vector<10x128xf32>
    %c0_5 = arith.constant 0 : index
    %c0_6 = arith.constant 0 : index
    %18 = vector.load %arg2[%c0_5, %c0_6] : memref<1x128xf32, #tpu.memory_space<vmem>>, vector<1x128xf32>
    %19 = vector.broadcast %18 : vector<1x128xf32> to vector<10x128xf32>
    %20 = arith.mulf %17, %19 : vector<10x128xf32>
    %c0_7 = arith.constant 0 : index
    %c0_8 = arith.constant 0 : index
    %21 = vector.load %arg3[%c0_7, %c0_8] : memref<1x128xf32, #tpu.memory_space<vmem>>, vector<1x128xf32>
    %22 = vector.broadcast %21 : vector<1x128xf32> to vector<10x128xf32>
    %23 = arith.addf %20, %22 : vector<10x128xf32>
    %24 = arith.truncf %23 : vector<10x128xf32> to vector<10x128xbf16>
    %c0_9 = arith.constant 0 : index
    %c0_10 = arith.constant 0 : index
    %25 = vector.load %arg4[%c0_9, %c0_10] : memref<10x128xbf16, #tpu.memory_space<vmem>>, vector<10x128xbf16>
    tpu.vector_store %arg4[%c0_9, %c0_10], %24 {strides = array<i32>} : memref<10x128xbf16, #tpu.memory_space<vmem>>, vector<10x128xbf16>,
    return
  }
  func.func @transform_0(%arg0: i32) -> (i32, i32) {
    %c0_i32 = arith.constant 0 : i32
    %c0_i32_0 = arith.constant 0 : i32
    return %arg0, %c0_i32 : i32, i32
  }
  func.func @transform_1(%arg0: i32) -> (i32, i32) {
    %c0_i32 = arith.constant 0 : i32
    %c0_i32_0 = arith.constant 0 : i32
    %c0_i32_1 = arith.constant 0 : i32
    return %c0_i32, %c0_i32_0 : i32, i32
  }
  func.func @transform_2(%arg0: i32) -> (i32, i32) {
    %c0_i32 = arith.constant 0 : i32
    %c0_i32_0 = arith.constant 0 : i32
    %c0_i32_1 = arith.constant 0 : i32
    return %c0_i32, %c0_i32_0 : i32, i32
  }
  func.func @transform_3(%arg0: i32) -> (i32, i32) {
    %c0_i32 = arith.constant 0 : i32
    %c0_i32_0 = arith.constant 0 : i32
    return %arg0, %c0_i32 : i32, i32
  }
}

module attributes {stable_mosaic.version = 11 : i64} {
  func.func @_attn_kernel(%arg0: i32, %arg1: i32, %arg2: i32, %arg3: i32, %arg4: memref<1x5x128xbf16, #tpu.memory_space<vmem>>, %arg5: memref<1x5x128xbf16, #tpu.memory_space<vmem>>, %arg6: memref<1x5x128xbf16, #tpu.memory_space<vmem>>, %arg7: memref<1x5x128xbf16, #tpu.memory_space<vmem>>, %arg8: memref<4x5x1xf32, #tpu.memory_space<vmem>>, %arg9: memref<4x5x1xf32, #tpu.memory_space<vmem>>, %arg10: memref<4x5x32xf32, #tpu.memory_space<vmem>>) attributes {dimension_semantics = [#tpu.dimension_semantics<parallel>, #tpu.dimension_semantics<parallel>, #tpu.dimension_semantics<parallel>, #tpu.dimension_semantics<arbitrary>], iteration_bounds = array<i64: 2, 1, 1, 1>, scalar_prefetch = 0 : i64, scratch_operands = 3 : i64, tpu.core_type = #tpu.core_type<tc>, window_params = [{transform_indices = @transform_0, window_bounds = array<i64: 1, 5, 128>}, {transform_indices = @transform_1, window_bounds = array<i64: 1, 5, 128>}, {transform_indices = @transform_2, window_bounds = array<i64: 1, 5, 128>}, {transform_indices = @transform_3, window_bounds = array<i64: 1, 5, 128>}]} {
    %c0_i32 = arith.constant 0 : i32
    %0 = arith.cmpi eq, %arg3, %c0_i32 : i32
    %1 = arith.extui %0 : i1 to i32
    %c0_i32_0 = arith.constant 0 : i32
    %2 = arith.cmpi ne, %1, %c0_i32_0 : i32
    scf.if %2 {
      %cst_95 = arith.constant 0xFF800000 : f32
      %156 = vector.broadcast %cst_95 : f32 to vector<4x5x1xf32>
      %c0_96 = arith.constant 0 : index
      %c0_97 = arith.constant 0 : index
      %c0_98 = arith.constant 0 : index
      %157 = vector.load %arg8[%c0_96, %c0_97, %c0_98] : memref<4x5x1xf32, #tpu.memory_space<vmem>>, vector<4x5x1xf32>
      tpu.vector_store %arg8[%c0_96, %c0_97, %c0_98], %156 {strides = array<i32>} : memref<4x5x1xf32, #tpu.memory_space<vmem>>, vector<4x5x1xf32>,
      %cst_99 = arith.constant 0.000000e+00 : f32
      %158 = vector.broadcast %cst_99 : f32 to vector<4x5x1xf32>
      %c0_100 = arith.constant 0 : index
      %c0_101 = arith.constant 0 : index
      %c0_102 = arith.constant 0 : index
      %159 = vector.load %arg9[%c0_100, %c0_101, %c0_102] : memref<4x5x1xf32, #tpu.memory_space<vmem>>, vector<4x5x1xf32>
      tpu.vector_store %arg9[%c0_100, %c0_101, %c0_102], %158 {strides = array<i32>} : memref<4x5x1xf32, #tpu.memory_space<vmem>>, vector<4x5x1xf32>,
      %cst_103 = arith.constant 0.000000e+00 : f32
      %160 = vector.broadcast %cst_103 : f32 to vector<4x5x32xf32>
      %c0_104 = arith.constant 0 : index
      %c0_105 = arith.constant 0 : index
      %c0_106 = arith.constant 0 : index
      %161 = vector.load %arg10[%c0_104, %c0_105, %c0_106] : memref<4x5x32xf32, #tpu.memory_space<vmem>>, vector<4x5x32xf32>
      tpu.vector_store %arg10[%c0_104, %c0_105, %c0_106], %160 {strides = array<i32>} : memref<4x5x32xf32, #tpu.memory_space<vmem>>, vector<4x5x32xf32>,
    } else {
    }
    %c0 = arith.constant 0 : index
    %c0_1 = arith.constant 0 : index
    %c0_2 = arith.constant 0 : index
    %3 = vector.load %arg4[%c0, %c0_1, %c0_2] : memref<1x5x128xbf16, #tpu.memory_space<vmem>>, vector<1x5x128xbf16>
    %4 = vector.shape_cast %3 : vector<1x5x128xbf16> to vector<5x128xbf16>
    %c0_3 = arith.constant 0 : index
    %c0_4 = arith.constant 0 : index
    %c0_5 = arith.constant 0 : index
    %5 = vector.load %arg5[%c0_3, %c0_4, %c0_5] : memref<1x5x128xbf16, #tpu.memory_space<vmem>>, vector<1x5x128xbf16>
    %6 = vector.shape_cast %5 : vector<1x5x128xbf16> to vector<5x128xbf16>
    %c0_6 = arith.constant 0 : index
    %c0_7 = arith.constant 0 : index
    %c0_8 = arith.constant 0 : index
    %7 = vector.load %arg6[%c0_6, %c0_7, %c0_8] : memref<1x5x128xbf16, #tpu.memory_space<vmem>>, vector<1x5x128xbf16>
    %8 = vector.shape_cast %7 : vector<1x5x128xbf16> to vector<5x128xbf16>
    %9 = vector.extract_strided_slice %4 {offsets = [0, 0], sizes = [5, 32], strides = [1, 1]} : vector<5x128xbf16> to vector<5x32xbf16>
    %10 = vector.extract_strided_slice %6 {offsets = [0, 0], sizes = [5, 32], strides = [1, 1]} : vector<5x128xbf16> to vector<5x32xbf16>
    %11 = vector.extract_strided_slice %8 {offsets = [0, 0], sizes = [5, 32], strides = [1, 1]} : vector<5x128xbf16> to vector<5x32xbf16>
    %cst = arith.constant dense<0.000000e+00> : vector<5x5xf32>
    %12 = tpu.matmul %9, %10, %cst {dimension_numbers = #tpu.dot_dimension_numbers<[1], [1], [0], [0], [0, 0, 1, 0], [], []>} : vector<5x32xbf16>, vector<5x32xbf16>, vector<5x5xf32> -> vector<5x5xf32>
    %c0_9 = arith.constant 0 : index
    %c0_10 = arith.constant 0 : index
    %c0_11 = arith.constant 0 : index
    %13 = vector.load %arg8[%c0_9, %c0_10, %c0_11] : memref<4x5x1xf32, #tpu.memory_space<vmem>>, vector<1x5x1xf32>
    %14 = vector.shape_cast %13 : vector<1x5x1xf32> to vector<5x1xf32>
    %cst_12 = arith.constant dense<0xFF800000> : vector<5xf32>
    %15 = vector.multi_reduction <maximumf>, %12, %cst_12 [1] : vector<5x5xf32> to vector<5xf32>
    %16 = vector.shape_cast %15 : vector<5xf32> to vector<5x1xf32>
    %17 = arith.maximumf %14, %16 : vector<5x1xf32>
    %18 = arith.subf %14, %17 : vector<5x1xf32>
    %19 = math.exp %18 : vector<5x1xf32>
    %20 = vector.broadcast %17 : vector<5x1xf32> to vector<5x5xf32>
    %21 = arith.subf %12, %20 : vector<5x5xf32>
    %22 = math.exp %21 : vector<5x5xf32>
    %c0_13 = arith.constant 0 : index
    %c0_14 = arith.constant 0 : index
    %c0_15 = arith.constant 0 : index
    %23 = vector.load %arg9[%c0_13, %c0_14, %c0_15] : memref<4x5x1xf32, #tpu.memory_space<vmem>>, vector<1x5x1xf32>
    %24 = vector.shape_cast %23 : vector<1x5x1xf32> to vector<5x1xf32>
    %25 = arith.mulf %19, %24 : vector<5x1xf32>
    %cst_16 = arith.constant dense<0.000000e+00> : vector<5xf32>
    %26 = vector.multi_reduction <add>, %22, %cst_16 [1] : vector<5x5xf32> to vector<5xf32>
    %27 = vector.shape_cast %26 : vector<5xf32> to vector<5x1xf32>
    %28 = arith.addf %25, %27 : vector<5x1xf32>
    %c0_17 = arith.constant 0 : index
    %c0_18 = arith.constant 0 : index
    %c0_19 = arith.constant 0 : index
    %29 = vector.load %arg9[%c0_17, %c0_18, %c0_19] : memref<4x5x1xf32, #tpu.memory_space<vmem>>, vector<1x5x1xf32>
    %30 = vector.shape_cast %29 : vector<1x5x1xf32> to vector<5x1xf32>
    %31 = vector.shape_cast %28 : vector<5x1xf32> to vector<1x5x1xf32>
    tpu.vector_store %arg9[%c0_17, %c0_18, %c0_19], %31 {strides = array<i32>} : memref<4x5x1xf32, #tpu.memory_space<vmem>>, vector<1x5x1xf32>,
    %c0_20 = arith.constant 0 : index
    %c0_21 = arith.constant 0 : index
    %c0_22 = arith.constant 0 : index
    %32 = vector.load %arg10[%c0_20, %c0_21, %c0_22] : memref<4x5x32xf32, #tpu.memory_space<vmem>>, vector<1x5x32xf32>
    %33 = vector.shape_cast %32 : vector<1x5x32xf32> to vector<5x32xf32>
    %34 = vector.broadcast %19 : vector<5x1xf32> to vector<5x32xf32>
    %35 = arith.mulf %34, %33 : vector<5x32xf32>
    %36 = arith.truncf %22 : vector<5x5xf32> to vector<5x5xbf16>
    %cst_23 = arith.constant dense<0.000000e+00> : vector<5x32xf32>
    %37 = tpu.matmul %36, %11, %cst_23 {dimension_numbers = #tpu.dot_dimension_numbers<[1], [0], [0], [1], [0, 0, 1, 1], [], []>} : vector<5x5xbf16>, vector<5x32xbf16>, vector<5x32xf32> -> vector<5x32xf32>
    %38 = arith.addf %35, %37 : vector<5x32xf32>
    %c0_24 = arith.constant 0 : index
    %c0_25 = arith.constant 0 : index
    %c0_26 = arith.constant 0 : index
    %39 = vector.load %arg10[%c0_24, %c0_25, %c0_26] : memref<4x5x32xf32, #tpu.memory_space<vmem>>, vector<1x5x32xf32>
    %40 = vector.shape_cast %39 : vector<1x5x32xf32> to vector<5x32xf32>
    %41 = vector.shape_cast %38 : vector<5x32xf32> to vector<1x5x32xf32>
    tpu.vector_store %arg10[%c0_24, %c0_25, %c0_26], %41 {strides = array<i32>} : memref<4x5x32xf32, #tpu.memory_space<vmem>>, vector<1x5x32xf32>,
    %c0_27 = arith.constant 0 : index
    %c0_28 = arith.constant 0 : index
    %c0_29 = arith.constant 0 : index
    %42 = vector.load %arg8[%c0_27, %c0_28, %c0_29] : memref<4x5x1xf32, #tpu.memory_space<vmem>>, vector<1x5x1xf32>
    %43 = vector.shape_cast %42 : vector<1x5x1xf32> to vector<5x1xf32>
    %44 = vector.shape_cast %17 : vector<5x1xf32> to vector<1x5x1xf32>
    tpu.vector_store %arg8[%c0_27, %c0_28, %c0_29], %44 {strides = array<i32>} : memref<4x5x1xf32, #tpu.memory_space<vmem>>, vector<1x5x1xf32>,
    %45 = vector.extract_strided_slice %4 {offsets = [0, 32], sizes = [5, 32], strides = [1, 1]} : vector<5x128xbf16> to vector<5x32xbf16>
    %46 = vector.extract_strided_slice %6 {offsets = [0, 32], sizes = [5, 32], strides = [1, 1]} : vector<5x128xbf16> to vector<5x32xbf16>
    %47 = vector.extract_strided_slice %8 {offsets = [0, 32], sizes = [5, 32], strides = [1, 1]} : vector<5x128xbf16> to vector<5x32xbf16>
    %cst_30 = arith.constant dense<0.000000e+00> : vector<5x5xf32>
    %48 = tpu.matmul %45, %46, %cst_30 {dimension_numbers = #tpu.dot_dimension_numbers<[1], [1], [0], [0], [0, 0, 1, 0], [], []>} : vector<5x32xbf16>, vector<5x32xbf16>, vector<5x5xf32> -> vector<5x5xf32>
    %c1 = arith.constant 1 : index
    %c0_31 = arith.constant 0 : index
    %c0_32 = arith.constant 0 : index
    %49 = vector.load %arg8[%c1, %c0_31, %c0_32] : memref<4x5x1xf32, #tpu.memory_space<vmem>>, vector<1x5x1xf32>
    %50 = vector.shape_cast %49 : vector<1x5x1xf32> to vector<5x1xf32>
    %cst_33 = arith.constant dense<0xFF800000> : vector<5xf32>
    %51 = vector.multi_reduction <maximumf>, %48, %cst_33 [1] : vector<5x5xf32> to vector<5xf32>
    %52 = vector.shape_cast %51 : vector<5xf32> to vector<5x1xf32>
    %53 = arith.maximumf %50, %52 : vector<5x1xf32>
    %54 = arith.subf %50, %53 : vector<5x1xf32>
    %55 = math.exp %54 : vector<5x1xf32>
    %56 = vector.broadcast %53 : vector<5x1xf32> to vector<5x5xf32>
    %57 = arith.subf %48, %56 : vector<5x5xf32>
    %58 = math.exp %57 : vector<5x5xf32>
    %c1_34 = arith.constant 1 : index
    %c0_35 = arith.constant 0 : index
    %c0_36 = arith.constant 0 : index
    %59 = vector.load %arg9[%c1_34, %c0_35, %c0_36] : memref<4x5x1xf32, #tpu.memory_space<vmem>>, vector<1x5x1xf32>
    %60 = vector.shape_cast %59 : vector<1x5x1xf32> to vector<5x1xf32>
    %61 = arith.mulf %55, %60 : vector<5x1xf32>
    %cst_37 = arith.constant dense<0.000000e+00> : vector<5xf32>
    %62 = vector.multi_reduction <add>, %58, %cst_37 [1] : vector<5x5xf32> to vector<5xf32>
    %63 = vector.shape_cast %62 : vector<5xf32> to vector<5x1xf32>
    %64 = arith.addf %61, %63 : vector<5x1xf32>
    %c1_38 = arith.constant 1 : index
    %c0_39 = arith.constant 0 : index
    %c0_40 = arith.constant 0 : index
    %65 = vector.load %arg9[%c1_38, %c0_39, %c0_40] : memref<4x5x1xf32, #tpu.memory_space<vmem>>, vector<1x5x1xf32>
    %66 = vector.shape_cast %65 : vector<1x5x1xf32> to vector<5x1xf32>
    %67 = vector.shape_cast %64 : vector<5x1xf32> to vector<1x5x1xf32>
    tpu.vector_store %arg9[%c1_38, %c0_39, %c0_40], %67 {strides = array<i32>} : memref<4x5x1xf32, #tpu.memory_space<vmem>>, vector<1x5x1xf32>,
    %c1_41 = arith.constant 1 : index
    %c0_42 = arith.constant 0 : index
    %c0_43 = arith.constant 0 : index
    %68 = vector.load %arg10[%c1_41, %c0_42, %c0_43] : memref<4x5x32xf32, #tpu.memory_space<vmem>>, vector<1x5x32xf32>
    %69 = vector.shape_cast %68 : vector<1x5x32xf32> to vector<5x32xf32>
    %70 = vector.broadcast %55 : vector<5x1xf32> to vector<5x32xf32>
    %71 = arith.mulf %70, %69 : vector<5x32xf32>
    %72 = arith.truncf %58 : vector<5x5xf32> to vector<5x5xbf16>
    %cst_44 = arith.constant dense<0.000000e+00> : vector<5x32xf32>
    %73 = tpu.matmul %72, %47, %cst_44 {dimension_numbers = #tpu.dot_dimension_numbers<[1], [0], [0], [1], [0, 0, 1, 1], [], []>} : vector<5x5xbf16>, vector<5x32xbf16>, vector<5x32xf32> -> vector<5x32xf32>
    %74 = arith.addf %71, %73 : vector<5x32xf32>
    %c1_45 = arith.constant 1 : index
    %c0_46 = arith.constant 0 : index
    %c0_47 = arith.constant 0 : index
    %75 = vector.load %arg10[%c1_45, %c0_46, %c0_47] : memref<4x5x32xf32, #tpu.memory_space<vmem>>, vector<1x5x32xf32>
    %76 = vector.shape_cast %75 : vector<1x5x32xf32> to vector<5x32xf32>
    %77 = vector.shape_cast %74 : vector<5x32xf32> to vector<1x5x32xf32>
    tpu.vector_store %arg10[%c1_45, %c0_46, %c0_47], %77 {strides = array<i32>} : memref<4x5x32xf32, #tpu.memory_space<vmem>>, vector<1x5x32xf32>,
    %c1_48 = arith.constant 1 : index
    %c0_49 = arith.constant 0 : index
    %c0_50 = arith.constant 0 : index
    %78 = vector.load %arg8[%c1_48, %c0_49, %c0_50] : memref<4x5x1xf32, #tpu.memory_space<vmem>>, vector<1x5x1xf32>
    %79 = vector.shape_cast %78 : vector<1x5x1xf32> to vector<5x1xf32>
    %80 = vector.shape_cast %53 : vector<5x1xf32> to vector<1x5x1xf32>
    tpu.vector_store %arg8[%c1_48, %c0_49, %c0_50], %80 {strides = array<i32>} : memref<4x5x1xf32, #tpu.memory_space<vmem>>, vector<1x5x1xf32>,
    %81 = vector.extract_strided_slice %4 {offsets = [0, 64], sizes = [5, 32], strides = [1, 1]} : vector<5x128xbf16> to vector<5x32xbf16>
    %82 = vector.extract_strided_slice %6 {offsets = [0, 64], sizes = [5, 32], strides = [1, 1]} : vector<5x128xbf16> to vector<5x32xbf16>
    %83 = vector.extract_strided_slice %8 {offsets = [0, 64], sizes = [5, 32], strides = [1, 1]} : vector<5x128xbf16> to vector<5x32xbf16>
    %cst_51 = arith.constant dense<0.000000e+00> : vector<5x5xf32>
    %84 = tpu.matmul %81, %82, %cst_51 {dimension_numbers = #tpu.dot_dimension_numbers<[1], [1], [0], [0], [0, 0, 1, 0], [], []>} : vector<5x32xbf16>, vector<5x32xbf16>, vector<5x5xf32> -> vector<5x5xf32>
    %c2 = arith.constant 2 : index
    %c0_52 = arith.constant 0 : index
    %c0_53 = arith.constant 0 : index
    %85 = vector.load %arg8[%c2, %c0_52, %c0_53] : memref<4x5x1xf32, #tpu.memory_space<vmem>>, vector<1x5x1xf32>
    %86 = vector.shape_cast %85 : vector<1x5x1xf32> to vector<5x1xf32>
    %cst_54 = arith.constant dense<0xFF800000> : vector<5xf32>
    %87 = vector.multi_reduction <maximumf>, %84, %cst_54 [1] : vector<5x5xf32> to vector<5xf32>
    %88 = vector.shape_cast %87 : vector<5xf32> to vector<5x1xf32>
    %89 = arith.maximumf %86, %88 : vector<5x1xf32>
    %90 = arith.subf %86, %89 : vector<5x1xf32>
    %91 = math.exp %90 : vector<5x1xf32>
    %92 = vector.broadcast %89 : vector<5x1xf32> to vector<5x5xf32>
    %93 = arith.subf %84, %92 : vector<5x5xf32>
    %94 = math.exp %93 : vector<5x5xf32>
    %c2_55 = arith.constant 2 : index
    %c0_56 = arith.constant 0 : index
    %c0_57 = arith.constant 0 : index
    %95 = vector.load %arg9[%c2_55, %c0_56, %c0_57] : memref<4x5x1xf32, #tpu.memory_space<vmem>>, vector<1x5x1xf32>
    %96 = vector.shape_cast %95 : vector<1x5x1xf32> to vector<5x1xf32>
    %97 = arith.mulf %91, %96 : vector<5x1xf32>
    %cst_58 = arith.constant dense<0.000000e+00> : vector<5xf32>
    %98 = vector.multi_reduction <add>, %94, %cst_58 [1] : vector<5x5xf32> to vector<5xf32>
    %99 = vector.shape_cast %98 : vector<5xf32> to vector<5x1xf32>
    %100 = arith.addf %97, %99 : vector<5x1xf32>
    %c2_59 = arith.constant 2 : index
    %c0_60 = arith.constant 0 : index
    %c0_61 = arith.constant 0 : index
    %101 = vector.load %arg9[%c2_59, %c0_60, %c0_61] : memref<4x5x1xf32, #tpu.memory_space<vmem>>, vector<1x5x1xf32>
    %102 = vector.shape_cast %101 : vector<1x5x1xf32> to vector<5x1xf32>
    %103 = vector.shape_cast %100 : vector<5x1xf32> to vector<1x5x1xf32>
    tpu.vector_store %arg9[%c2_59, %c0_60, %c0_61], %103 {strides = array<i32>} : memref<4x5x1xf32, #tpu.memory_space<vmem>>, vector<1x5x1xf32>,
    %c2_62 = arith.constant 2 : index
    %c0_63 = arith.constant 0 : index
    %c0_64 = arith.constant 0 : index
    %104 = vector.load %arg10[%c2_62, %c0_63, %c0_64] : memref<4x5x32xf32, #tpu.memory_space<vmem>>, vector<1x5x32xf32>
    %105 = vector.shape_cast %104 : vector<1x5x32xf32> to vector<5x32xf32>
    %106 = vector.broadcast %91 : vector<5x1xf32> to vector<5x32xf32>
    %107 = arith.mulf %106, %105 : vector<5x32xf32>
    %108 = arith.truncf %94 : vector<5x5xf32> to vector<5x5xbf16>
    %cst_65 = arith.constant dense<0.000000e+00> : vector<5x32xf32>
    %109 = tpu.matmul %108, %83, %cst_65 {dimension_numbers = #tpu.dot_dimension_numbers<[1], [0], [0], [1], [0, 0, 1, 1], [], []>} : vector<5x5xbf16>, vector<5x32xbf16>, vector<5x32xf32> -> vector<5x32xf32>
    %110 = arith.addf %107, %109 : vector<5x32xf32>
    %c2_66 = arith.constant 2 : index
    %c0_67 = arith.constant 0 : index
    %c0_68 = arith.constant 0 : index
    %111 = vector.load %arg10[%c2_66, %c0_67, %c0_68] : memref<4x5x32xf32, #tpu.memory_space<vmem>>, vector<1x5x32xf32>
    %112 = vector.shape_cast %111 : vector<1x5x32xf32> to vector<5x32xf32>
    %113 = vector.shape_cast %110 : vector<5x32xf32> to vector<1x5x32xf32>
    tpu.vector_store %arg10[%c2_66, %c0_67, %c0_68], %113 {strides = array<i32>} : memref<4x5x32xf32, #tpu.memory_space<vmem>>, vector<1x5x32xf32>,
    %c2_69 = arith.constant 2 : index
    %c0_70 = arith.constant 0 : index
    %c0_71 = arith.constant 0 : index
    %114 = vector.load %arg8[%c2_69, %c0_70, %c0_71] : memref<4x5x1xf32, #tpu.memory_space<vmem>>, vector<1x5x1xf32>
    %115 = vector.shape_cast %114 : vector<1x5x1xf32> to vector<5x1xf32>
    %116 = vector.shape_cast %89 : vector<5x1xf32> to vector<1x5x1xf32>
    tpu.vector_store %arg8[%c2_69, %c0_70, %c0_71], %116 {strides = array<i32>} : memref<4x5x1xf32, #tpu.memory_space<vmem>>, vector<1x5x1xf32>,
    %117 = vector.extract_strided_slice %4 {offsets = [0, 96], sizes = [5, 32], strides = [1, 1]} : vector<5x128xbf16> to vector<5x32xbf16>
    %118 = vector.extract_strided_slice %6 {offsets = [0, 96], sizes = [5, 32], strides = [1, 1]} : vector<5x128xbf16> to vector<5x32xbf16>
    %119 = vector.extract_strided_slice %8 {offsets = [0, 96], sizes = [5, 32], strides = [1, 1]} : vector<5x128xbf16> to vector<5x32xbf16>
    %cst_72 = arith.constant dense<0.000000e+00> : vector<5x5xf32>
    %120 = tpu.matmul %117, %118, %cst_72 {dimension_numbers = #tpu.dot_dimension_numbers<[1], [1], [0], [0], [0, 0, 1, 0], [], []>} : vector<5x32xbf16>, vector<5x32xbf16>, vector<5x5xf32> -> vector<5x5xf32>
    %c3 = arith.constant 3 : index
    %c0_73 = arith.constant 0 : index
    %c0_74 = arith.constant 0 : index
    %121 = vector.load %arg8[%c3, %c0_73, %c0_74] : memref<4x5x1xf32, #tpu.memory_space<vmem>>, vector<1x5x1xf32>
    %122 = vector.shape_cast %121 : vector<1x5x1xf32> to vector<5x1xf32>
    %cst_75 = arith.constant dense<0xFF800000> : vector<5xf32>
    %123 = vector.multi_reduction <maximumf>, %120, %cst_75 [1] : vector<5x5xf32> to vector<5xf32>
    %124 = vector.shape_cast %123 : vector<5xf32> to vector<5x1xf32>
    %125 = arith.maximumf %122, %124 : vector<5x1xf32>
    %126 = arith.subf %122, %125 : vector<5x1xf32>
    %127 = math.exp %126 : vector<5x1xf32>
    %128 = vector.broadcast %125 : vector<5x1xf32> to vector<5x5xf32>
    %129 = arith.subf %120, %128 : vector<5x5xf32>
    %130 = math.exp %129 : vector<5x5xf32>
    %c3_76 = arith.constant 3 : index
    %c0_77 = arith.constant 0 : index
    %c0_78 = arith.constant 0 : index
    %131 = vector.load %arg9[%c3_76, %c0_77, %c0_78] : memref<4x5x1xf32, #tpu.memory_space<vmem>>, vector<1x5x1xf32>
    %132 = vector.shape_cast %131 : vector<1x5x1xf32> to vector<5x1xf32>
    %133 = arith.mulf %127, %132 : vector<5x1xf32>
    %cst_79 = arith.constant dense<0.000000e+00> : vector<5xf32>
    %134 = vector.multi_reduction <add>, %130, %cst_79 [1] : vector<5x5xf32> to vector<5xf32>
    %135 = vector.shape_cast %134 : vector<5xf32> to vector<5x1xf32>
    %136 = arith.addf %133, %135 : vector<5x1xf32>
    %c3_80 = arith.constant 3 : index
    %c0_81 = arith.constant 0 : index
    %c0_82 = arith.constant 0 : index
    %137 = vector.load %arg9[%c3_80, %c0_81, %c0_82] : memref<4x5x1xf32, #tpu.memory_space<vmem>>, vector<1x5x1xf32>
    %138 = vector.shape_cast %137 : vector<1x5x1xf32> to vector<5x1xf32>
    %139 = vector.shape_cast %136 : vector<5x1xf32> to vector<1x5x1xf32>
    tpu.vector_store %arg9[%c3_80, %c0_81, %c0_82], %139 {strides = array<i32>} : memref<4x5x1xf32, #tpu.memory_space<vmem>>, vector<1x5x1xf32>,
    %c3_83 = arith.constant 3 : index
    %c0_84 = arith.constant 0 : index
    %c0_85 = arith.constant 0 : index
    %140 = vector.load %arg10[%c3_83, %c0_84, %c0_85] : memref<4x5x32xf32, #tpu.memory_space<vmem>>, vector<1x5x32xf32>
    %141 = vector.shape_cast %140 : vector<1x5x32xf32> to vector<5x32xf32>
    %142 = vector.broadcast %127 : vector<5x1xf32> to vector<5x32xf32>
    %143 = arith.mulf %142, %141 : vector<5x32xf32>
    %144 = arith.truncf %130 : vector<5x5xf32> to vector<5x5xbf16>
    %cst_86 = arith.constant dense<0.000000e+00> : vector<5x32xf32>
    %145 = tpu.matmul %144, %119, %cst_86 {dimension_numbers = #tpu.dot_dimension_numbers<[1], [0], [0], [1], [0, 0, 1, 1], [], []>} : vector<5x5xbf16>, vector<5x32xbf16>, vector<5x32xf32> -> vector<5x32xf32>
    %146 = arith.addf %143, %145 : vector<5x32xf32>
    %c3_87 = arith.constant 3 : index
    %c0_88 = arith.constant 0 : index
    %c0_89 = arith.constant 0 : index
    %147 = vector.load %arg10[%c3_87, %c0_88, %c0_89] : memref<4x5x32xf32, #tpu.memory_space<vmem>>, vector<1x5x32xf32>
    %148 = vector.shape_cast %147 : vector<1x5x32xf32> to vector<5x32xf32>
    %149 = vector.shape_cast %146 : vector<5x32xf32> to vector<1x5x32xf32>
    tpu.vector_store %arg10[%c3_87, %c0_88, %c0_89], %149 {strides = array<i32>} : memref<4x5x32xf32, #tpu.memory_space<vmem>>, vector<1x5x32xf32>,
    %c3_90 = arith.constant 3 : index
    %c0_91 = arith.constant 0 : index
    %c0_92 = arith.constant 0 : index
    %150 = vector.load %arg8[%c3_90, %c0_91, %c0_92] : memref<4x5x1xf32, #tpu.memory_space<vmem>>, vector<1x5x1xf32>
    %151 = vector.shape_cast %150 : vector<1x5x1xf32> to vector<5x1xf32>
    %152 = vector.shape_cast %125 : vector<5x1xf32> to vector<1x5x1xf32>
    tpu.vector_store %arg8[%c3_90, %c0_91, %c0_92], %152 {strides = array<i32>} : memref<4x5x1xf32, #tpu.memory_space<vmem>>, vector<1x5x1xf32>,
    %c0_i32_93 = arith.constant 0 : i32
    %153 = arith.cmpi eq, %arg3, %c0_i32_93 : i32
    %154 = arith.extui %153 : i1 to i32
    %c0_i32_94 = arith.constant 0 : i32
    %155 = arith.cmpi ne, %154, %c0_i32_94 : i32
    scf.if %155 {
      %c0_95 = arith.constant 0 : index
      %c0_96 = arith.constant 0 : index
      %c0_97 = arith.constant 0 : index
      %156 = vector.load %arg10[%c0_95, %c0_96, %c0_97] : memref<4x5x32xf32, #tpu.memory_space<vmem>>, vector<1x5x32xf32>
      %157 = vector.shape_cast %156 : vector<1x5x32xf32> to vector<5x32xf32>
      %c0_98 = arith.constant 0 : index
      %c0_99 = arith.constant 0 : index
      %c0_100 = arith.constant 0 : index
      %158 = vector.load %arg9[%c0_98, %c0_99, %c0_100] : memref<4x5x1xf32, #tpu.memory_space<vmem>>, vector<1x5x1xf32>
      %159 = vector.shape_cast %158 : vector<1x5x1xf32> to vector<5x1xf32>
      %160 = tpu.reciprocal %159 {approx = true} : vector<5x1xf32> -> vector<5x1xf32>
      %161 = vector.broadcast %160 : vector<5x1xf32> to vector<5x32xf32>
      %162 = arith.mulf %157, %161 : vector<5x32xf32>
      %c1_101 = arith.constant 1 : index
      %c0_102 = arith.constant 0 : index
      %c0_103 = arith.constant 0 : index
      %163 = vector.load %arg10[%c1_101, %c0_102, %c0_103] : memref<4x5x32xf32, #tpu.memory_space<vmem>>, vector<1x5x32xf32>
      %164 = vector.shape_cast %163 : vector<1x5x32xf32> to vector<5x32xf32>
      %c1_104 = arith.constant 1 : index
      %c0_105 = arith.constant 0 : index
      %c0_106 = arith.constant 0 : index
      %165 = vector.load %arg9[%c1_104, %c0_105, %c0_106] : memref<4x5x1xf32, #tpu.memory_space<vmem>>, vector<1x5x1xf32>
      %166 = vector.shape_cast %165 : vector<1x5x1xf32> to vector<5x1xf32>
      %167 = tpu.reciprocal %166 {approx = true} : vector<5x1xf32> -> vector<5x1xf32>
      %168 = vector.broadcast %167 : vector<5x1xf32> to vector<5x32xf32>
      %169 = arith.mulf %164, %168 : vector<5x32xf32>
      %c2_107 = arith.constant 2 : index
      %c0_108 = arith.constant 0 : index
      %c0_109 = arith.constant 0 : index
      %170 = vector.load %arg10[%c2_107, %c0_108, %c0_109] : memref<4x5x32xf32, #tpu.memory_space<vmem>>, vector<1x5x32xf32>
      %171 = vector.shape_cast %170 : vector<1x5x32xf32> to vector<5x32xf32>
      %c2_110 = arith.constant 2 : index
      %c0_111 = arith.constant 0 : index
      %c0_112 = arith.constant 0 : index
      %172 = vector.load %arg9[%c2_110, %c0_111, %c0_112] : memref<4x5x1xf32, #tpu.memory_space<vmem>>, vector<1x5x1xf32>
      %173 = vector.shape_cast %172 : vector<1x5x1xf32> to vector<5x1xf32>
      %174 = tpu.reciprocal %173 {approx = true} : vector<5x1xf32> -> vector<5x1xf32>
      %175 = vector.broadcast %174 : vector<5x1xf32> to vector<5x32xf32>
      %176 = arith.mulf %171, %175 : vector<5x32xf32>
      %c3_113 = arith.constant 3 : index
      %c0_114 = arith.constant 0 : index
      %c0_115 = arith.constant 0 : index
      %177 = vector.load %arg10[%c3_113, %c0_114, %c0_115] : memref<4x5x32xf32, #tpu.memory_space<vmem>>, vector<1x5x32xf32>
      %178 = vector.shape_cast %177 : vector<1x5x32xf32> to vector<5x32xf32>
      %c3_116 = arith.constant 3 : index
      %c0_117 = arith.constant 0 : index
      %c0_118 = arith.constant 0 : index
      %179 = vector.load %arg9[%c3_116, %c0_117, %c0_118] : memref<4x5x1xf32, #tpu.memory_space<vmem>>, vector<1x5x1xf32>
      %180 = vector.shape_cast %179 : vector<1x5x1xf32> to vector<5x1xf32>
      %181 = tpu.reciprocal %180 {approx = true} : vector<5x1xf32> -> vector<5x1xf32>
      %182 = vector.broadcast %181 : vector<5x1xf32> to vector<5x32xf32>
      %183 = arith.mulf %178, %182 : vector<5x32xf32>
      %184 = tpu.concatenate %162, %169, %176, %183 in 1 : vector<5x32xf32>, vector<5x32xf32>, vector<5x32xf32>, vector<5x32xf32> -> vector<5x128xf32>
      %185 = arith.truncf %184 : vector<5x128xf32> to vector<5x128xbf16>
      %c0_119 = arith.constant 0 : index
      %c0_120 = arith.constant 0 : index
      %c0_121 = arith.constant 0 : index
      %186 = vector.load %arg7[%c0_119, %c0_120, %c0_121] : memref<1x5x128xbf16, #tpu.memory_space<vmem>>, vector<1x5x128xbf16>
      %187 = vector.shape_cast %186 : vector<1x5x128xbf16> to vector<5x128xbf16>
      %188 = vector.shape_cast %185 : vector<5x128xbf16> to vector<1x5x128xbf16>
      tpu.vector_store %arg7[%c0_119, %c0_120, %c0_121], %188 {strides = array<i32>} : memref<1x5x128xbf16, #tpu.memory_space<vmem>>, vector<1x5x128xbf16>,
    } else {
    }
    return
  }
  func.func @transform_0(%arg0: i32, %arg1: i32, %arg2: i32, %arg3: i32) -> (i32, i32, i32) {
    %c0_i32 = arith.constant 0 : i32
    return %arg0, %arg2, %arg1 : i32, i32, i32
  }
  func.func @transform_1(%arg0: i32, %arg1: i32, %arg2: i32, %arg3: i32) -> (i32, i32, i32) {
    %c1_i32 = arith.constant 1 : i32
    %0 = arith.addi %c1_i32, %arg1 : i32
    %c0_i32 = arith.constant 0 : i32
    return %arg0, %arg3, %0 : i32, i32, i32
  }
  func.func @transform_2(%arg0: i32, %arg1: i32, %arg2: i32, %arg3: i32) -> (i32, i32, i32) {
    %c2_i32 = arith.constant 2 : i32
    %0 = arith.addi %c2_i32, %arg1 : i32
    %c0_i32 = arith.constant 0 : i32
    return %arg0, %arg3, %0 : i32, i32, i32
  }
  func.func @transform_3(%arg0: i32, %arg1: i32, %arg2: i32, %arg3: i32) -> (i32, i32, i32) {
    %c0_i32 = arith.constant 0 : i32
    return %arg0, %arg2, %arg1 : i32, i32, i32
  }
}

module attributes {stable_mosaic.version = 11 : i64} {
  func.func @_mm_kernel(%arg0: i32, %arg1: i32, %arg2: i32, %arg3: memref<10x128xbf16, #tpu.memory_space<vmem>>, %arg4: memref<128x384xbf16, #tpu.memory_space<vmem>>, %arg5: memref<1x384xf32, #tpu.memory_space<vmem>>, %arg6: memref<10x384xbf16, #tpu.memory_space<vmem>>, %arg7: memref<10x384xf32, #tpu.memory_space<vmem>>) attributes {dimension_semantics = [#tpu.dimension_semantics<parallel>, #tpu.dimension_semantics<parallel>, #tpu.dimension_semantics<arbitrary>], iteration_bounds = array<i64: 1, 1, 1>, scalar_prefetch = 0 : i64, scratch_operands = 1 : i64, tpu.core_type = #tpu.core_type<tc>, window_params = [{transform_indices = @transform_0, window_bounds = array<i64: 10, 128>}, {transform_indices = @transform_1, window_bounds = array<i64: 128, 384>}, {transform_indices = @transform_2, window_bounds = array<i64: 1, 384>}, {transform_indices = @transform_3, window_bounds = array<i64: 10, 384>}]} {
    %c0_i32 = arith.constant 0 : i32
    %0 = arith.cmpi eq, %arg2, %c0_i32 : i32
    %1 = arith.extui %0 : i1 to i32
    %c0_i32_0 = arith.constant 0 : i32
    %2 = arith.cmpi ne, %1, %c0_i32_0 : i32
    scf.if %2 {
      %cst_10 = arith.constant 0.000000e+00 : f32
      %12 = vector.broadcast %cst_10 : f32 to vector<10x384xf32>
      %c0_11 = arith.constant 0 : index
      %c0_12 = arith.constant 0 : index
      %13 = vector.load %arg7[%c0_11, %c0_12] : memref<10x384xf32, #tpu.memory_space<vmem>>, vector<10x384xf32>
      tpu.vector_store %arg7[%c0_11, %c0_12], %12 {strides = array<i32>} : memref<10x384xf32, #tpu.memory_space<vmem>>, vector<10x384xf32>,
    } else {
    }
    %c0 = arith.constant 0 : index
    %c0_1 = arith.constant 0 : index
    %3 = vector.load %arg7[%c0, %c0_1] : memref<10x384xf32, #tpu.memory_space<vmem>>, vector<10x384xf32>
    %c0_2 = arith.constant 0 : index
    %c0_3 = arith.constant 0 : index
    %4 = vector.load %arg3[%c0_2, %c0_3] : memref<10x128xbf16, #tpu.memory_space<vmem>>, vector<10x128xbf16>
    %c0_4 = arith.constant 0 : index
    %c0_5 = arith.constant 0 : index
    %5 = vector.load %arg4[%c0_4, %c0_5] : memref<128x384xbf16, #tpu.memory_space<vmem>>, vector<128x384xbf16>
    %cst = arith.constant dense<0.000000e+00> : vector<10x384xf32>
    %6 = tpu.matmul %4, %5, %cst {dimension_numbers = #tpu.dot_dimension_numbers<[1], [0], [0], [1], [0, 0, 1, 1], [], []>} : vector<10x128xbf16>, vector<128x384xbf16>, vector<10x384xf32> -> vector<10x384xf32>
    %7 = arith.addf %3, %6 : vector<10x384xf32>
    %c0_6 = arith.constant 0 : index
    %c0_7 = arith.constant 0 : index
    %8 = vector.load %arg7[%c0_6, %c0_7] : memref<10x384xf32, #tpu.memory_space<vmem>>, vector<10x384xf32>
    tpu.vector_store %arg7[%c0_6, %c0_7], %7 {strides = array<i32>} : memref<10x384xf32, #tpu.memory_space<vmem>>, vector<10x384xf32>,
    %c0_i32_8 = arith.constant 0 : i32
    %9 = arith.cmpi eq, %arg2, %c0_i32_8 : i32
    %10 = arith.extui %9 : i1 to i32
    %c0_i32_9 = arith.constant 0 : i32
    %11 = arith.cmpi ne, %10, %c0_i32_9 : i32
    scf.if %11 {
      %c0_10 = arith.constant 0 : index
      %c0_11 = arith.constant 0 : index
      %12 = vector.load %arg7[%c0_10, %c0_11] : memref<10x384xf32, #tpu.memory_space<vmem>>, vector<10x384xf32>
      %c0_12 = arith.constant 0 : index
      %c0_13 = arith.constant 0 : index
      %13 = vector.load %arg5[%c0_12, %c0_13] : memref<1x384xf32, #tpu.memory_space<vmem>>, vector<1x384xf32>
      %14 = vector.broadcast %13 : vector<1x384xf32> to vector<10x384xf32>
      %15 = arith.addf %12, %14 : vector<10x384xf32>
      %16 = arith.truncf %15 : vector<10x384xf32> to vector<10x384xbf16>
      %c0_14 = arith.constant 0 : index
      %c0_15 = arith.constant 0 : index
      %17 = vector.load %arg6[%c0_14, %c0_15] : memref<10x384xbf16, #tpu.memory_space<vmem>>, vector<10x384xbf16>
      tpu.vector_store %arg6[%c0_14, %c0_15], %16 {strides = array<i32>} : memref<10x384xbf16, #tpu.memory_space<vmem>>, vector<10x384xbf16>,
    } else {
    }
    return
  }
  func.func @transform_0(%arg0: i32, %arg1: i32, %arg2: i32) -> (i32, i32) {
    %c0_i32 = arith.constant 0 : i32
    return %arg0, %arg2 : i32, i32
  }
  func.func @transform_1(%arg0: i32, %arg1: i32, %arg2: i32) -> (i32, i32) {
    %c0_i32 = arith.constant 0 : i32
    return %arg2, %arg1 : i32, i32
  }
  func.func @transform_2(%arg0: i32, %arg1: i32, %arg2: i32) -> (i32, i32) {
    %c0_i32 = arith.constant 0 : i32
    %c0_i32_0 = arith.constant 0 : i32
    return %c0_i32, %arg1 : i32, i32
  }
  func.func @transform_3(%arg0: i32, %arg1: i32, %arg2: i32) -> (i32, i32) {
    %c0_i32 = arith.constant 0 : i32
    return %arg0, %arg1 : i32, i32
  }
}

module attributes {stable_mosaic.version = 11 : i64} {
  func.func @_mm_kernel(%arg0: i32, %arg1: i32, %arg2: i32, %arg3: memref<10x128xbf16, #tpu.memory_space<vmem>>, %arg4: memref<128x512xbf16, #tpu.memory_space<vmem>>, %arg5: memref<1x512xf32, #tpu.memory_space<vmem>>, %arg6: memref<10x512xbf16, #tpu.memory_space<vmem>>, %arg7: memref<10x512xf32, #tpu.memory_space<vmem>>) attributes {dimension_semantics = [#tpu.dimension_semantics<parallel>, #tpu.dimension_semantics<parallel>, #tpu.dimension_semantics<arbitrary>], iteration_bounds = array<i64: 1, 1, 1>, scalar_prefetch = 0 : i64, scratch_operands = 1 : i64, tpu.core_type = #tpu.core_type<tc>, window_params = [{transform_indices = @transform_0, window_bounds = array<i64: 10, 128>}, {transform_indices = @transform_1, window_bounds = array<i64: 128, 512>}, {transform_indices = @transform_2, window_bounds = array<i64: 1, 512>}, {transform_indices = @transform_3, window_bounds = array<i64: 10, 512>}]} {
    %c0_i32 = arith.constant 0 : i32
    %0 = arith.cmpi eq, %arg2, %c0_i32 : i32
    %1 = arith.extui %0 : i1 to i32
    %c0_i32_0 = arith.constant 0 : i32
    %2 = arith.cmpi ne, %1, %c0_i32_0 : i32
    scf.if %2 {
      %cst_10 = arith.constant 0.000000e+00 : f32
      %12 = vector.broadcast %cst_10 : f32 to vector<10x512xf32>
      %c0_11 = arith.constant 0 : index
      %c0_12 = arith.constant 0 : index
      %13 = vector.load %arg7[%c0_11, %c0_12] : memref<10x512xf32, #tpu.memory_space<vmem>>, vector<10x512xf32>
      tpu.vector_store %arg7[%c0_11, %c0_12], %12 {strides = array<i32>} : memref<10x512xf32, #tpu.memory_space<vmem>>, vector<10x512xf32>,
    } else {
    }
    %c0 = arith.constant 0 : index
    %c0_1 = arith.constant 0 : index
    %3 = vector.load %arg7[%c0, %c0_1] : memref<10x512xf32, #tpu.memory_space<vmem>>, vector<10x512xf32>
    %c0_2 = arith.constant 0 : index
    %c0_3 = arith.constant 0 : index
    %4 = vector.load %arg3[%c0_2, %c0_3] : memref<10x128xbf16, #tpu.memory_space<vmem>>, vector<10x128xbf16>
    %c0_4 = arith.constant 0 : index
    %c0_5 = arith.constant 0 : index
    %5 = vector.load %arg4[%c0_4, %c0_5] : memref<128x512xbf16, #tpu.memory_space<vmem>>, vector<128x512xbf16>
    %cst = arith.constant dense<0.000000e+00> : vector<10x512xf32>
    %6 = tpu.matmul %4, %5, %cst {dimension_numbers = #tpu.dot_dimension_numbers<[1], [0], [0], [1], [0, 0, 1, 1], [], []>} : vector<10x128xbf16>, vector<128x512xbf16>, vector<10x512xf32> -> vector<10x512xf32>
    %7 = arith.addf %3, %6 : vector<10x512xf32>
    %c0_6 = arith.constant 0 : index
    %c0_7 = arith.constant 0 : index
    %8 = vector.load %arg7[%c0_6, %c0_7] : memref<10x512xf32, #tpu.memory_space<vmem>>, vector<10x512xf32>
    tpu.vector_store %arg7[%c0_6, %c0_7], %7 {strides = array<i32>} : memref<10x512xf32, #tpu.memory_space<vmem>>, vector<10x512xf32>,
    %c0_i32_8 = arith.constant 0 : i32
    %9 = arith.cmpi eq, %arg2, %c0_i32_8 : i32
    %10 = arith.extui %9 : i1 to i32
    %c0_i32_9 = arith.constant 0 : i32
    %11 = arith.cmpi ne, %10, %c0_i32_9 : i32
    scf.if %11 {
      %c0_10 = arith.constant 0 : index
      %c0_11 = arith.constant 0 : index
      %12 = vector.load %arg7[%c0_10, %c0_11] : memref<10x512xf32, #tpu.memory_space<vmem>>, vector<10x512xf32>
      %c0_12 = arith.constant 0 : index
      %c0_13 = arith.constant 0 : index
      %13 = vector.load %arg5[%c0_12, %c0_13] : memref<1x512xf32, #tpu.memory_space<vmem>>, vector<1x512xf32>
      %14 = vector.broadcast %13 : vector<1x512xf32> to vector<10x512xf32>
      %15 = arith.addf %12, %14 : vector<10x512xf32>
      %cst_14 = arith.constant 5.000000e-01 : f32
      %16 = vector.broadcast %cst_14 : f32 to vector<10x512xf32>
      %17 = arith.mulf %16, %15 : vector<10x512xf32>
      %cst_15 = arith.constant 0.707106769 : f32
      %18 = vector.broadcast %cst_15 : f32 to vector<10x512xf32>
      %19 = arith.mulf %15, %18 : vector<10x512xf32>
      %20 = math.erf %19 : vector<10x512xf32>
      %cst_16 = arith.constant 1.000000e+00 : f32
      %21 = vector.broadcast %cst_16 : f32 to vector<10x512xf32>
      %22 = arith.addf %21, %20 : vector<10x512xf32>
      %23 = arith.mulf %17, %22 : vector<10x512xf32>
      %24 = arith.truncf %23 : vector<10x512xf32> to vector<10x512xbf16>
      %c0_17 = arith.constant 0 : index
      %c0_18 = arith.constant 0 : index
      %25 = vector.load %arg6[%c0_17, %c0_18] : memref<10x512xbf16, #tpu.memory_space<vmem>>, vector<10x512xbf16>
      tpu.vector_store %arg6[%c0_17, %c0_18], %24 {strides = array<i32>} : memref<10x512xbf16, #tpu.memory_space<vmem>>, vector<10x512xbf16>,
    } else {
    }
    return
  }
  func.func @transform_0(%arg0: i32, %arg1: i32, %arg2: i32) -> (i32, i32) {
    %c0_i32 = arith.constant 0 : i32
    return %arg0, %arg2 : i32, i32
  }
  func.func @transform_1(%arg0: i32, %arg1: i32, %arg2: i32) -> (i32, i32) {
    %c0_i32 = arith.constant 0 : i32
    return %arg2, %arg1 : i32, i32
  }
  func.func @transform_2(%arg0: i32, %arg1: i32, %arg2: i32) -> (i32, i32) {
    %c0_i32 = arith.constant 0 : i32
    %c0_i32_0 = arith.constant 0 : i32
    return %c0_i32, %arg1 : i32, i32
  }
  func.func @transform_3(%arg0: i32, %arg1: i32, %arg2: i32) -> (i32, i32) {
    %c0_i32 = arith.constant 0 : i32
    return %arg0, %arg1 : i32, i32
  }
}

module attributes {stable_mosaic.version = 11 : i64} {
  func.func @_mm_kernel(%arg0: i32, %arg1: i32, %arg2: i32, %arg3: memref<10x128xbf16, #tpu.memory_space<vmem>>, %arg4: memref<128x384xbf16, #tpu.memory_space<vmem>>, %arg5: memref<1x384xf32, #tpu.memory_space<vmem>>, %arg6: memref<10x384xbf16, #tpu.memory_space<vmem>>, %arg7: memref<10x384xf32, #tpu.memory_space<vmem>>) attributes {dimension_semantics = [#tpu.dimension_semantics<parallel>, #tpu.dimension_semantics<parallel>, #tpu.dimension_semantics<arbitrary>], iteration_bounds = array<i64: 1, 1, 1>, scalar_prefetch = 0 : i64, scratch_operands = 1 : i64, tpu.core_type = #tpu.core_type<tc>, window_params = [{transform_indices = @transform_0, window_bounds = array<i64: 10, 128>}, {transform_indices = @transform_1, window_bounds = array<i64: 128, 384>}, {transform_indices = @transform_2, window_bounds = array<i64: 1, 384>}, {transform_indices = @transform_3, window_bounds = array<i64: 10, 384>}]} {
    %c0_i32 = arith.constant 0 : i32
    %0 = arith.cmpi eq, %arg2, %c0_i32 : i32
    %1 = arith.extui %0 : i1 to i32
    %c0_i32_0 = arith.constant 0 : i32
    %2 = arith.cmpi ne, %1, %c0_i32_0 : i32
    scf.if %2 {
      %cst_10 = arith.constant 0.000000e+00 : f32
      %12 = vector.broadcast %cst_10 : f32 to vector<10x384xf32>
      %c0_11 = arith.constant 0 : index
      %c0_12 = arith.constant 0 : index
      %13 = vector.load %arg7[%c0_11, %c0_12] : memref<10x384xf32, #tpu.memory_space<vmem>>, vector<10x384xf32>
      tpu.vector_store %arg7[%c0_11, %c0_12], %12 {strides = array<i32>} : memref<10x384xf32, #tpu.memory_space<vmem>>, vector<10x384xf32>,
    } else {
    }
    %c0 = arith.constant 0 : index
    %c0_1 = arith.constant 0 : index
    %3 = vector.load %arg7[%c0, %c0_1] : memref<10x384xf32, #tpu.memory_space<vmem>>, vector<10x384xf32>
    %c0_2 = arith.constant 0 : index
    %c0_3 = arith.constant 0 : index
    %4 = vector.load %arg3[%c0_2, %c0_3] : memref<10x128xbf16, #tpu.memory_space<vmem>>, vector<10x128xbf16>
    %c0_4 = arith.constant 0 : index
    %c0_5 = arith.constant 0 : index
    %5 = vector.load %arg4[%c0_4, %c0_5] : memref<128x384xbf16, #tpu.memory_space<vmem>>, vector<128x384xbf16>
    %cst = arith.constant dense<0.000000e+00> : vector<10x384xf32>
    %6 = tpu.matmul %4, %5, %cst {dimension_numbers = #tpu.dot_dimension_numbers<[1], [0], [0], [1], [0, 0, 1, 1], [], []>} : vector<10x128xbf16>, vector<128x384xbf16>, vector<10x384xf32> -> vector<10x384xf32>
    %7 = arith.addf %3, %6 : vector<10x384xf32>
    %c0_6 = arith.constant 0 : index
    %c0_7 = arith.constant 0 : index
    %8 = vector.load %arg7[%c0_6, %c0_7] : memref<10x384xf32, #tpu.memory_space<vmem>>, vector<10x384xf32>
    tpu.vector_store %arg7[%c0_6, %c0_7], %7 {strides = array<i32>} : memref<10x384xf32, #tpu.memory_space<vmem>>, vector<10x384xf32>,
    %c0_i32_8 = arith.constant 0 : i32
    %9 = arith.cmpi eq, %arg2, %c0_i32_8 : i32
    %10 = arith.extui %9 : i1 to i32
    %c0_i32_9 = arith.constant 0 : i32
    %11 = arith.cmpi ne, %10, %c0_i32_9 : i32
    scf.if %11 {
      %c0_10 = arith.constant 0 : index
      %c0_11 = arith.constant 0 : index
      %12 = vector.load %arg7[%c0_10, %c0_11] : memref<10x384xf32, #tpu.memory_space<vmem>>, vector<10x384xf32>
      %c0_12 = arith.constant 0 : index
      %c0_13 = arith.constant 0 : index
      %13 = vector.load %arg5[%c0_12, %c0_13] : memref<1x384xf32, #tpu.memory_space<vmem>>, vector<1x384xf32>
      %14 = vector.broadcast %13 : vector<1x384xf32> to vector<10x384xf32>
      %15 = arith.addf %12, %14 : vector<10x384xf32>
      %16 = arith.truncf %15 : vector<10x384xf32> to vector<10x384xbf16>
      %c0_14 = arith.constant 0 : index
      %c0_15 = arith.constant 0 : index
      %17 = vector.load %arg6[%c0_14, %c0_15] : memref<10x384xbf16, #tpu.memory_space<vmem>>, vector<10x384xbf16>
      tpu.vector_store %arg6[%c0_14, %c0_15], %16 {strides = array<i32>} : memref<10x384xbf16, #tpu.memory_space<vmem>>, vector<10x384xbf16>,
    } else {
    }
    return
  }
  func.func @transform_0(%arg0: i32, %arg1: i32, %arg2: i32) -> (i32, i32) {
    %c0_i32 = arith.constant 0 : i32
    return %arg0, %arg2 : i32, i32
  }
  func.func @transform_1(%arg0: i32, %arg1: i32, %arg2: i32) -> (i32, i32) {
    %c0_i32 = arith.constant 0 : i32
    return %arg2, %arg1 : i32, i32
  }
  func.func @transform_2(%arg0: i32, %arg1: i32, %arg2: i32) -> (i32, i32) {
    %c0_i32 = arith.constant 0 : i32
    %c0_i32_0 = arith.constant 0 : i32
    return %c0_i32, %arg1 : i32, i32
  }
  func.func @transform_3(%arg0: i32, %arg1: i32, %arg2: i32) -> (i32, i32) {
    %c0_i32 = arith.constant 0 : i32
    return %arg0, %arg1 : i32, i32
  }
}

module attributes {stable_mosaic.version = 11 : i64} {
  func.func @_mm_kernel(%arg0: i32, %arg1: i32, %arg2: i32, %arg3: memref<10x512xbf16, #tpu.memory_space<vmem>>, %arg4: memref<512x128xbf16, #tpu.memory_space<vmem>>, %arg5: memref<1x128xf32, #tpu.memory_space<vmem>>, %arg6: memref<10x128xbf16, #tpu.memory_space<vmem>>, %arg7: memref<1x128xf32, #tpu.memory_space<vmem>>, %arg8: memref<1x128xf32, #tpu.memory_space<vmem>>, %arg9: memref<1x128xf32, #tpu.memory_space<vmem>>, %arg10: memref<10x128xbf16, #tpu.memory_space<vmem>>, %arg11: memref<10x128xbf16, #tpu.memory_space<vmem>>, %arg12: memref<10x128xf32, #tpu.memory_space<vmem>>) attributes {dimension_semantics = [#tpu.dimension_semantics<parallel>, #tpu.dimension_semantics<parallel>, #tpu.dimension_semantics<arbitrary>], iteration_bounds = array<i64: 1, 1, 1>, scalar_prefetch = 0 : i64, scratch_operands = 1 : i64, tpu.core_type = #tpu.core_type<tc>, window_params = [{transform_indices = @transform_0, window_bounds = array<i64: 10, 512>}, {transform_indices = @transform_1, window_bounds = array<i64: 512, 128>}, {transform_indices = @transform_2, window_bounds = array<i64: 1, 128>}, {transform_indices = @transform_3, window_bounds = array<i64: 10, 128>}, {transform_indices = @transform_4, window_bounds = array<i64: 1, 128>}, {transform_indices = @transform_5, window_bounds = array<i64: 1, 128>}, {transform_indices = @transform_6, window_bounds = array<i64: 1, 128>}, {transform_indices = @transform_7, window_bounds = array<i64: 10, 128>}, {transform_indices = @transform_8, window_bounds = array<i64: 10, 128>}]} {
    %c0_i32 = arith.constant 0 : i32
    %0 = arith.cmpi eq, %arg2, %c0_i32 : i32
    %1 = arith.extui %0 : i1 to i32
    %c0_i32_0 = arith.constant 0 : i32
    %2 = arith.cmpi ne, %1, %c0_i32_0 : i32
    scf.if %2 {
      %cst_10 = arith.constant 0.000000e+00 : f32
      %12 = vector.broadcast %cst_10 : f32 to vector<10x128xf32>
      %c0_11 = arith.constant 0 : index
      %c0_12 = arith.constant 0 : index
      %13 = vector.load %arg12[%c0_11, %c0_12] : memref<10x128xf32, #tpu.memory_space<vmem>>, vector<10x128xf32>
      tpu.vector_store %arg12[%c0_11, %c0_12], %12 {strides = array<i32>} : memref<10x128xf32, #tpu.memory_space<vmem>>, vector<10x128xf32>,
    } else {
    }
    %c0 = arith.constant 0 : index
    %c0_1 = arith.constant 0 : index
    %3 = vector.load %arg12[%c0, %c0_1] : memref<10x128xf32, #tpu.memory_space<vmem>>, vector<10x128xf32>
    %c0_2 = arith.constant 0 : index
    %c0_3 = arith.constant 0 : index
    %4 = vector.load %arg3[%c0_2, %c0_3] : memref<10x512xbf16, #tpu.memory_space<vmem>>, vector<10x512xbf16>
    %c0_4 = arith.constant 0 : index
    %c0_5 = arith.constant 0 : index
    %5 = vector.load %arg4[%c0_4, %c0_5] : memref<512x128xbf16, #tpu.memory_space<vmem>>, vector<512x128xbf16>
    %cst = arith.constant dense<0.000000e+00> : vector<10x128xf32>
    %6 = tpu.matmul %4, %5, %cst {dimension_numbers = #tpu.dot_dimension_numbers<[1], [0], [0], [1], [0, 0, 1, 1], [], []>} : vector<10x512xbf16>, vector<512x128xbf16>, vector<10x128xf32> -> vector<10x128xf32>
    %7 = arith.addf %3, %6 : vector<10x128xf32>
    %c0_6 = arith.constant 0 : index
    %c0_7 = arith.constant 0 : index
    %8 = vector.load %arg12[%c0_6, %c0_7] : memref<10x128xf32, #tpu.memory_space<vmem>>, vector<10x128xf32>
    tpu.vector_store %arg12[%c0_6, %c0_7], %7 {strides = array<i32>} : memref<10x128xf32, #tpu.memory_space<vmem>>, vector<10x128xf32>,
    %c0_i32_8 = arith.constant 0 : i32
    %9 = arith.cmpi eq, %arg2, %c0_i32_8 : i32
    %10 = arith.extui %9 : i1 to i32
    %c0_i32_9 = arith.constant 0 : i32
    %11 = arith.cmpi ne, %10, %c0_i32_9 : i32
    scf.if %11 {
      %c0_10 = arith.constant 0 : index
      %c0_11 = arith.constant 0 : index
      %12 = vector.load %arg12[%c0_10, %c0_11] : memref<10x128xf32, #tpu.memory_space<vmem>>, vector<10x128xf32>
      %c0_12 = arith.constant 0 : index
      %c0_13 = arith.constant 0 : index
      %13 = vector.load %arg5[%c0_12, %c0_13] : memref<1x128xf32, #tpu.memory_space<vmem>>, vector<1x128xf32>
      %14 = vector.broadcast %13 : vector<1x128xf32> to vector<10x128xf32>
      %15 = arith.addf %12, %14 : vector<10x128xf32>
      %c0_14 = arith.constant 0 : index
      %c0_15 = arith.constant 0 : index
      %16 = vector.load %arg6[%c0_14, %c0_15] : memref<10x128xbf16, #tpu.memory_space<vmem>>, vector<10x128xbf16>
      %17 = arith.extf %16 : vector<10x128xbf16> to vector<10x128xf32>
      %c0_16 = arith.constant 0 : index
      %c0_17 = arith.constant 0 : index
      %18 = vector.load %arg7[%c0_16, %c0_17] : memref<1x128xf32, #tpu.memory_space<vmem>>, vector<1x128xf32>
      %19 = vector.broadcast %18 : vector<1x128xf32> to vector<10x128xf32>
      %20 = arith.mulf %15, %19 : vector<10x128xf32>
      %21 = arith.addf %17, %20 : vector<10x128xf32>
      %22 = arith.truncf %21 : vector<10x128xf32> to vector<10x128xbf16>
      %c0_18 = arith.constant 0 : index
      %c0_19 = arith.constant 0 : index
      %23 = vector.load %arg10[%c0_18, %c0_19] : memref<10x128xbf16, #tpu.memory_space<vmem>>, vector<10x128xbf16>
      tpu.vector_store %arg10[%c0_18, %c0_19], %22 {strides = array<i32>} : memref<10x128xbf16, #tpu.memory_space<vmem>>, vector<10x128xbf16>,
      %cst_20 = arith.constant dense<0.000000e+00> : vector<10xf32>
      %24 = vector.multi_reduction <add>, %21, %cst_20 [1] : vector<10x128xf32> to vector<10xf32>
      %25 = vector.shape_cast %24 : vector<10xf32> to vector<10x1xf32>
      %cst_21 = arith.constant 1.280000e+02 : f32
      %26 = vector.broadcast %cst_21 : f32 to vector<10x1xf32>
      %27 = arith.divf %25, %26 : vector<10x1xf32>
      %28 = vector.broadcast %27 : vector<10x1xf32> to vector<10x128xf32>
      %29 = arith.subf %21, %28 : vector<10x128xf32>
      %30 = arith.mulf %29, %29 : vector<10x128xf32>
      %cst_22 = arith.constant dense<0.000000e+00> : vector<10xf32>
      %31 = vector.multi_reduction <add>, %30, %cst_22 [1] : vector<10x128xf32> to vector<10xf32>
      %32 = vector.shape_cast %31 : vector<10xf32> to vector<10x1xf32>
      %cst_23 = arith.constant 1.280000e+02 : f32
      %33 = vector.broadcast %cst_23 : f32 to vector<10x1xf32>
      %34 = arith.divf %32, %33 : vector<10x1xf32>
      %cst_24 = arith.constant 9.99999997E-7 : f32
      %35 = vector.broadcast %cst_24 : f32 to vector<10x1xf32>
      %36 = arith.addf %34, %35 : vector<10x1xf32>
      %37 = math.rsqrt %36 : vector<10x1xf32>
      %38 = vector.broadcast %37 : vector<10x1xf32> to vector<10x128xf32>
      %39 = arith.mulf %29, %38 : vector<10x128xf32>
      %c0_25 = arith.constant 0 : index
      %c0_26 = arith.constant 0 : index
      %40 = vector.load %arg8[%c0_25, %c0_26] : memref<1x128xf32, #tpu.memory_space<vmem>>, vector<1x128xf32>
      %41 = vector.broadcast %40 : vector<1x128xf32> to vector<10x128xf32>
      %42 = arith.mulf %39, %41 : vector<10x128xf32>
      %c0_27 = arith.constant 0 : index
      %c0_28 = arith.constant 0 : index
      %43 = vector.load %arg9[%c0_27, %c0_28] : memref<1x128xf32, #tpu.memory_space<vmem>>, vector<1x128xf32>
      %44 = vector.broadcast %43 : vector<1x128xf32> to vector<10x128xf32>
      %45 = arith.addf %42, %44 : vector<10x128xf32>
      %46 = arith.truncf %45 : vector<10x128xf32> to vector<10x128xbf16>
      %c0_29 = arith.constant 0 : index
      %c0_30 = arith.constant 0 : index
      %47 = vector.load %arg11[%c0_29, %c0_30] : memref<10x128xbf16, #tpu.memory_space<vmem>>, vector<10x128xbf16>
      tpu.vector_store %arg11[%c0_29, %c0_30], %46 {strides = array<i32>} : memref<10x128xbf16, #tpu.memory_space<vmem>>, vector<10x128xbf16>,
    } else {
    }
    return
  }
  func.func @transform_0(%arg0: i32, %arg1: i32, %arg2: i32) -> (i32, i32) {
    %c0_i32 = arith.constant 0 : i32
    return %arg0, %arg2 : i32, i32
  }
  func.func @transform_1(%arg0: i32, %arg1: i32, %arg2: i32) -> (i32, i32) {
    %c0_i32 = arith.constant 0 : i32
    return %arg2, %arg1 : i32, i32
  }
  func.func @transform_2(%arg0: i32, %arg1: i32, %arg2: i32) -> (i32, i32) {
    %c0_i32 = arith.constant 0 : i32
    %c0_i32_0 = arith.constant 0 : i32
    return %c0_i32, %arg1 : i32, i32
  }
  func.func @transform_3(%arg0: i32, %arg1: i32, %arg2: i32) -> (i32, i32) {
    %c0_i32 = arith.constant 0 : i32
    return %arg0, %arg1 : i32, i32
  }
  func.func @transform_4(%arg0: i32, %arg1: i32, %arg2: i32) -> (i32, i32) {
    %c0_i32 = arith.constant 0 : i32
    %c0_i32_0 = arith.constant 0 : i32
    return %c0_i32, %arg1 : i32, i32
  }
  func.func @transform_5(%arg0: i32, %arg1: i32, %arg2: i32) -> (i32, i32) {
    %c0_i32 = arith.constant 0 : i32
    %c0_i32_0 = arith.constant 0 : i32
    return %c0_i32, %arg1 : i32, i32
  }
  func.func @transform_6(%arg0: i32, %arg1: i32, %arg2: i32) -> (i32, i32) {
    %c0_i32 = arith.constant 0 : i32
    %c0_i32_0 = arith.constant 0 : i32
    return %c0_i32, %arg1 : i32, i32
  }
  func.func @transform_7(%arg0: i32, %arg1: i32, %arg2: i32) -> (i32, i32) {
    %c0_i32 = arith.constant 0 : i32
    return %arg0, %arg1 : i32, i32
  }
  func.func @transform_8(%arg0: i32, %arg1: i32, %arg2: i32) -> (i32, i32) {
    %c0_i32 = arith.constant 0 : i32
    return %arg0, %arg1 : i32, i32
  }
}

module attributes {stable_mosaic.version = 11 : i64} {
  func.func @_mm_kernel(%arg0: i32, %arg1: i32, %arg2: i32, %arg3: memref<10x128xbf16, #tpu.memory_space<vmem>>, %arg4: memref<128x128xbf16, #tpu.memory_space<vmem>>, %arg5: memref<1x128xf32, #tpu.memory_space<vmem>>, %arg6: memref<10x128xbf16, #tpu.memory_space<vmem>>, %arg7: memref<1x128xf32, #tpu.memory_space<vmem>>, %arg8: memref<1x128xf32, #tpu.memory_space<vmem>>, %arg9: memref<1x128xf32, #tpu.memory_space<vmem>>, %arg10: memref<10x128xbf16, #tpu.memory_space<vmem>>, %arg11: memref<10x128xbf16, #tpu.memory_space<vmem>>, %arg12: memref<10x128xf32, #tpu.memory_space<vmem>>) attributes {dimension_semantics = [#tpu.dimension_semantics<parallel>, #tpu.dimension_semantics<parallel>, #tpu.dimension_semantics<arbitrary>], iteration_bounds = array<i64: 1, 1, 1>, scalar_prefetch = 0 : i64, scratch_operands = 1 : i64, tpu.core_type = #tpu.core_type<tc>, window_params = [{transform_indices = @transform_0, window_bounds = array<i64: 10, 128>}, {transform_indices = @transform_1, window_bounds = array<i64: 128, 128>}, {transform_indices = @transform_2, window_bounds = array<i64: 1, 128>}, {transform_indices = @transform_3, window_bounds = array<i64: 10, 128>}, {transform_indices = @transform_4, window_bounds = array<i64: 1, 128>}, {transform_indices = @transform_5, window_bounds = array<i64: 1, 128>}, {transform_indices = @transform_6, window_bounds = array<i64: 1, 128>}, {transform_indices = @transform_7, window_bounds = array<i64: 10, 128>}, {transform_indices = @transform_8, window_bounds = array<i64: 10, 128>}]} {
    %c0_i32 = arith.constant 0 : i32
    %0 = arith.cmpi eq, %arg2, %c0_i32 : i32
    %1 = arith.extui %0 : i1 to i32
    %c0_i32_0 = arith.constant 0 : i32
    %2 = arith.cmpi ne, %1, %c0_i32_0 : i32
    scf.if %2 {
      %cst_10 = arith.constant 0.000000e+00 : f32
      %12 = vector.broadcast %cst_10 : f32 to vector<10x128xf32>
      %c0_11 = arith.constant 0 : index
      %c0_12 = arith.constant 0 : index
      %13 = vector.load %arg12[%c0_11, %c0_12] : memref<10x128xf32, #tpu.memory_space<vmem>>, vector<10x128xf32>
      tpu.vector_store %arg12[%c0_11, %c0_12], %12 {strides = array<i32>} : memref<10x128xf32, #tpu.memory_space<vmem>>, vector<10x128xf32>,
    } else {
    }
    %c0 = arith.constant 0 : index
    %c0_1 = arith.constant 0 : index
    %3 = vector.load %arg12[%c0, %c0_1] : memref<10x128xf32, #tpu.memory_space<vmem>>, vector<10x128xf32>
    %c0_2 = arith.constant 0 : index
    %c0_3 = arith.constant 0 : index
    %4 = vector.load %arg3[%c0_2, %c0_3] : memref<10x128xbf16, #tpu.memory_space<vmem>>, vector<10x128xbf16>
    %c0_4 = arith.constant 0 : index
    %c0_5 = arith.constant 0 : index
    %5 = vector.load %arg4[%c0_4, %c0_5] : memref<128x128xbf16, #tpu.memory_space<vmem>>, vector<128x128xbf16>
    %cst = arith.constant dense<0.000000e+00> : vector<10x128xf32>
    %6 = tpu.matmul %4, %5, %cst {dimension_numbers = #tpu.dot_dimension_numbers<[1], [0], [0], [1], [0, 0, 1, 1], [], []>} : vector<10x128xbf16>, vector<128x128xbf16>, vector<10x128xf32> -> vector<10x128xf32>
    %7 = arith.addf %3, %6 : vector<10x128xf32>
    %c0_6 = arith.constant 0 : index
    %c0_7 = arith.constant 0 : index
    %8 = vector.load %arg12[%c0_6, %c0_7] : memref<10x128xf32, #tpu.memory_space<vmem>>, vector<10x128xf32>
    tpu.vector_store %arg12[%c0_6, %c0_7], %7 {strides = array<i32>} : memref<10x128xf32, #tpu.memory_space<vmem>>, vector<10x128xf32>,
    %c0_i32_8 = arith.constant 0 : i32
    %9 = arith.cmpi eq, %arg2, %c0_i32_8 : i32
    %10 = arith.extui %9 : i1 to i32
    %c0_i32_9 = arith.constant 0 : i32
    %11 = arith.cmpi ne, %10, %c0_i32_9 : i32
    scf.if %11 {
      %c0_10 = arith.constant 0 : index
      %c0_11 = arith.constant 0 : index
      %12 = vector.load %arg12[%c0_10, %c0_11] : memref<10x128xf32, #tpu.memory_space<vmem>>, vector<10x128xf32>
      %c0_12 = arith.constant 0 : index
      %c0_13 = arith.constant 0 : index
      %13 = vector.load %arg5[%c0_12, %c0_13] : memref<1x128xf32, #tpu.memory_space<vmem>>, vector<1x128xf32>
      %14 = vector.broadcast %13 : vector<1x128xf32> to vector<10x128xf32>
      %15 = arith.addf %12, %14 : vector<10x128xf32>
      %c0_14 = arith.constant 0 : index
      %c0_15 = arith.constant 0 : index
      %16 = vector.load %arg6[%c0_14, %c0_15] : memref<10x128xbf16, #tpu.memory_space<vmem>>, vector<10x128xbf16>
      %17 = arith.extf %16 : vector<10x128xbf16> to vector<10x128xf32>
      %c0_16 = arith.constant 0 : index
      %c0_17 = arith.constant 0 : index
      %18 = vector.load %arg7[%c0_16, %c0_17] : memref<1x128xf32, #tpu.memory_space<vmem>>, vector<1x128xf32>
      %19 = vector.broadcast %18 : vector<1x128xf32> to vector<10x128xf32>
      %20 = arith.mulf %15, %19 : vector<10x128xf32>
      %21 = arith.addf %17, %20 : vector<10x128xf32>
      %22 = arith.truncf %21 : vector<10x128xf32> to vector<10x128xbf16>
      %c0_18 = arith.constant 0 : index
      %c0_19 = arith.constant 0 : index
      %23 = vector.load %arg10[%c0_18, %c0_19] : memref<10x128xbf16, #tpu.memory_space<vmem>>, vector<10x128xbf16>
      tpu.vector_store %arg10[%c0_18, %c0_19], %22 {strides = array<i32>} : memref<10x128xbf16, #tpu.memory_space<vmem>>, vector<10x128xbf16>,
      %cst_20 = arith.constant dense<0.000000e+00> : vector<10xf32>
      %24 = vector.multi_reduction <add>, %21, %cst_20 [1] : vector<10x128xf32> to vector<10xf32>
      %25 = vector.shape_cast %24 : vector<10xf32> to vector<10x1xf32>
      %cst_21 = arith.constant 1.280000e+02 : f32
      %26 = vector.broadcast %cst_21 : f32 to vector<10x1xf32>
      %27 = arith.divf %25, %26 : vector<10x1xf32>
      %28 = vector.broadcast %27 : vector<10x1xf32> to vector<10x128xf32>
      %29 = arith.subf %21, %28 : vector<10x128xf32>
      %30 = arith.mulf %29, %29 : vector<10x128xf32>
      %cst_22 = arith.constant dense<0.000000e+00> : vector<10xf32>
      %31 = vector.multi_reduction <add>, %30, %cst_22 [1] : vector<10x128xf32> to vector<10xf32>
      %32 = vector.shape_cast %31 : vector<10xf32> to vector<10x1xf32>
      %cst_23 = arith.constant 1.280000e+02 : f32
      %33 = vector.broadcast %cst_23 : f32 to vector<10x1xf32>
      %34 = arith.divf %32, %33 : vector<10x1xf32>
      %cst_24 = arith.constant 9.99999997E-7 : f32
      %35 = vector.broadcast %cst_24 : f32 to vector<10x1xf32>
      %36 = arith.addf %34, %35 : vector<10x1xf32>
      %37 = math.rsqrt %36 : vector<10x1xf32>
      %38 = vector.broadcast %37 : vector<10x1xf32> to vector<10x128xf32>
      %39 = arith.mulf %29, %38 : vector<10x128xf32>
      %c0_25 = arith.constant 0 : index
      %c0_26 = arith.constant 0 : index
      %40 = vector.load %arg8[%c0_25, %c0_26] : memref<1x128xf32, #tpu.memory_space<vmem>>, vector<1x128xf32>
      %41 = vector.broadcast %40 : vector<1x128xf32> to vector<10x128xf32>
      %42 = arith.mulf %39, %41 : vector<10x128xf32>
      %c0_27 = arith.constant 0 : index
      %c0_28 = arith.constant 0 : index
      %43 = vector.load %arg9[%c0_27, %c0_28] : memref<1x128xf32, #tpu.memory_space<vmem>>, vector<1x128xf32>
      %44 = vector.broadcast %43 : vector<1x128xf32> to vector<10x128xf32>
      %45 = arith.addf %42, %44 : vector<10x128xf32>
      %46 = arith.truncf %45 : vector<10x128xf32> to vector<10x128xbf16>
      %c0_29 = arith.constant 0 : index
      %c0_30 = arith.constant 0 : index
      %47 = vector.load %arg11[%c0_29, %c0_30] : memref<10x128xbf16, #tpu.memory_space<vmem>>, vector<10x128xbf16>
      tpu.vector_store %arg11[%c0_29, %c0_30], %46 {strides = array<i32>} : memref<10x128xbf16, #tpu.memory_space<vmem>>, vector<10x128xbf16>,
    } else {
    }
    return
  }
  func.func @transform_0(%arg0: i32, %arg1: i32, %arg2: i32) -> (i32, i32) {
    %c0_i32 = arith.constant 0 : i32
    return %arg0, %arg2 : i32, i32
  }
  func.func @transform_1(%arg0: i32, %arg1: i32, %arg2: i32) -> (i32, i32) {
    %c0_i32 = arith.constant 0 : i32
    return %arg2, %arg1 : i32, i32
  }
  func.func @transform_2(%arg0: i32, %arg1: i32, %arg2: i32) -> (i32, i32) {
    %c0_i32 = arith.constant 0 : i32
    %c0_i32_0 = arith.constant 0 : i32
    return %c0_i32, %arg1 : i32, i32
  }
  func.func @transform_3(%arg0: i32, %arg1: i32, %arg2: i32) -> (i32, i32) {
    %c0_i32 = arith.constant 0 : i32
    return %arg0, %arg1 : i32, i32
  }
  func.func @transform_4(%arg0: i32, %arg1: i32, %arg2: i32) -> (i32, i32) {
    %c0_i32 = arith.constant 0 : i32
    %c0_i32_0 = arith.constant 0 : i32
    return %c0_i32, %arg1 : i32, i32
  }
  func.func @transform_5(%arg0: i32, %arg1: i32, %arg2: i32) -> (i32, i32) {
    %c0_i32 = arith.constant 0 : i32
    %c0_i32_0 = arith.constant 0 : i32
    return %c0_i32, %arg1 : i32, i32
  }
  func.func @transform_6(%arg0: i32, %arg1: i32, %arg2: i32) -> (i32, i32) {
    %c0_i32 = arith.constant 0 : i32
    %c0_i32_0 = arith.constant 0 : i32
    return %c0_i32, %arg1 : i32, i32
  }
  func.func @transform_7(%arg0: i32, %arg1: i32, %arg2: i32) -> (i32, i32) {
    %c0_i32 = arith.constant 0 : i32
    return %arg0, %arg1 : i32, i32
  }
  func.func @transform_8(%arg0: i32, %arg1: i32, %arg2: i32) -> (i32, i32) {
    %c0_i32 = arith.constant 0 : i32
    return %arg0, %arg1 : i32, i32
  }
}

module attributes {stable_mosaic.version = 11 : i64} {
  func.func @_mm_kernel(%arg0: i32, %arg1: i32, %arg2: i32, %arg3: memref<10x128xbf16, #tpu.memory_space<vmem>>, %arg4: memref<128x512xbf16, #tpu.memory_space<vmem>>, %arg5: memref<1x512xf32, #tpu.memory_space<vmem>>, %arg6: memref<10x512xbf16, #tpu.memory_space<vmem>>, %arg7: memref<10x512xf32, #tpu.memory_space<vmem>>) attributes {dimension_semantics = [#tpu.dimension_semantics<parallel>, #tpu.dimension_semantics<parallel>, #tpu.dimension_semantics<arbitrary>], iteration_bounds = array<i64: 1, 1, 1>, scalar_prefetch = 0 : i64, scratch_operands = 1 : i64, tpu.core_type = #tpu.core_type<tc>, window_params = [{transform_indices = @transform_0, window_bounds = array<i64: 10, 128>}, {transform_indices = @transform_1, window_bounds = array<i64: 128, 512>}, {transform_indices = @transform_2, window_bounds = array<i64: 1, 512>}, {transform_indices = @transform_3, window_bounds = array<i64: 10, 512>}]} {
    %c0_i32 = arith.constant 0 : i32
    %0 = arith.cmpi eq, %arg2, %c0_i32 : i32
    %1 = arith.extui %0 : i1 to i32
    %c0_i32_0 = arith.constant 0 : i32
    %2 = arith.cmpi ne, %1, %c0_i32_0 : i32
    scf.if %2 {
      %cst_10 = arith.constant 0.000000e+00 : f32
      %12 = vector.broadcast %cst_10 : f32 to vector<10x512xf32>
      %c0_11 = arith.constant 0 : index
      %c0_12 = arith.constant 0 : index
      %13 = vector.load %arg7[%c0_11, %c0_12] : memref<10x512xf32, #tpu.memory_space<vmem>>, vector<10x512xf32>
      tpu.vector_store %arg7[%c0_11, %c0_12], %12 {strides = array<i32>} : memref<10x512xf32, #tpu.memory_space<vmem>>, vector<10x512xf32>,
    } else {
    }
    %c0 = arith.constant 0 : index
    %c0_1 = arith.constant 0 : index
    %3 = vector.load %arg7[%c0, %c0_1] : memref<10x512xf32, #tpu.memory_space<vmem>>, vector<10x512xf32>
    %c0_2 = arith.constant 0 : index
    %c0_3 = arith.constant 0 : index
    %4 = vector.load %arg3[%c0_2, %c0_3] : memref<10x128xbf16, #tpu.memory_space<vmem>>, vector<10x128xbf16>
    %c0_4 = arith.constant 0 : index
    %c0_5 = arith.constant 0 : index
    %5 = vector.load %arg4[%c0_4, %c0_5] : memref<128x512xbf16, #tpu.memory_space<vmem>>, vector<128x512xbf16>
    %cst = arith.constant dense<0.000000e+00> : vector<10x512xf32>
    %6 = tpu.matmul %4, %5, %cst {dimension_numbers = #tpu.dot_dimension_numbers<[1], [0], [0], [1], [0, 0, 1, 1], [], []>} : vector<10x128xbf16>, vector<128x512xbf16>, vector<10x512xf32> -> vector<10x512xf32>
    %7 = arith.addf %3, %6 : vector<10x512xf32>
    %c0_6 = arith.constant 0 : index
    %c0_7 = arith.constant 0 : index
    %8 = vector.load %arg7[%c0_6, %c0_7] : memref<10x512xf32, #tpu.memory_space<vmem>>, vector<10x512xf32>
    tpu.vector_store %arg7[%c0_6, %c0_7], %7 {strides = array<i32>} : memref<10x512xf32, #tpu.memory_space<vmem>>, vector<10x512xf32>,
    %c0_i32_8 = arith.constant 0 : i32
    %9 = arith.cmpi eq, %arg2, %c0_i32_8 : i32
    %10 = arith.extui %9 : i1 to i32
    %c0_i32_9 = arith.constant 0 : i32
    %11 = arith.cmpi ne, %10, %c0_i32_9 : i32
    scf.if %11 {
      %c0_10 = arith.constant 0 : index
      %c0_11 = arith.constant 0 : index
      %12 = vector.load %arg7[%c0_10, %c0_11] : memref<10x512xf32, #tpu.memory_space<vmem>>, vector<10x512xf32>
      %c0_12 = arith.constant 0 : index
      %c0_13 = arith.constant 0 : index
      %13 = vector.load %arg5[%c0_12, %c0_13] : memref<1x512xf32, #tpu.memory_space<vmem>>, vector<1x512xf32>
      %14 = vector.broadcast %13 : vector<1x512xf32> to vector<10x512xf32>
      %15 = arith.addf %12, %14 : vector<10x512xf32>
      %cst_14 = arith.constant 5.000000e-01 : f32
      %16 = vector.broadcast %cst_14 : f32 to vector<10x512xf32>
      %17 = arith.mulf %16, %15 : vector<10x512xf32>
      %cst_15 = arith.constant 0.707106769 : f32
      %18 = vector.broadcast %cst_15 : f32 to vector<10x512xf32>
      %19 = arith.mulf %15, %18 : vector<10x512xf32>
      %20 = math.erf %19 : vector<10x512xf32>
      %cst_16 = arith.constant 1.000000e+00 : f32
      %21 = vector.broadcast %cst_16 : f32 to vector<10x512xf32>
      %22 = arith.addf %21, %20 : vector<10x512xf32>
      %23 = arith.mulf %17, %22 : vector<10x512xf32>
      %24 = arith.truncf %23 : vector<10x512xf32> to vector<10x512xbf16>
      %c0_17 = arith.constant 0 : index
      %c0_18 = arith.constant 0 : index
      %25 = vector.load %arg6[%c0_17, %c0_18] : memref<10x512xbf16, #tpu.memory_space<vmem>>, vector<10x512xbf16>
      tpu.vector_store %arg6[%c0_17, %c0_18], %24 {strides = array<i32>} : memref<10x512xbf16, #tpu.memory_space<vmem>>, vector<10x512xbf16>,
    } else {
    }
    return
  }
  func.func @transform_0(%arg0: i32, %arg1: i32, %arg2: i32) -> (i32, i32) {
    %c0_i32 = arith.constant 0 : i32
    return %arg0, %arg2 : i32, i32
  }
  func.func @transform_1(%arg0: i32, %arg1: i32, %arg2: i32) -> (i32, i32) {
    %c0_i32 = arith.constant 0 : i32
    return %arg2, %arg1 : i32, i32
  }
  func.func @transform_2(%arg0: i32, %arg1: i32, %arg2: i32) -> (i32, i32) {
    %c0_i32 = arith.constant 0 : i32
    %c0_i32_0 = arith.constant 0 : i32
    return %c0_i32, %arg1 : i32, i32
  }
  func.func @transform_3(%arg0: i32, %arg1: i32, %arg2: i32) -> (i32, i32) {
    %c0_i32 = arith.constant 0 : i32
    return %arg0, %arg1 : i32, i32
  }
}

module attributes {stable_mosaic.version = 11 : i64} {
  func.func @_mm_kernel(%arg0: i32, %arg1: i32, %arg2: i32, %arg3: memref<10x512xbf16, #tpu.memory_space<vmem>>, %arg4: memref<512x128xbf16, #tpu.memory_space<vmem>>, %arg5: memref<1x128xf32, #tpu.memory_space<vmem>>, %arg6: memref<10x128xbf16, #tpu.memory_space<vmem>>, %arg7: memref<1x128xf32, #tpu.memory_space<vmem>>, %arg8: memref<1x128xf32, #tpu.memory_space<vmem>>, %arg9: memref<1x128xf32, #tpu.memory_space<vmem>>, %arg10: memref<10x128xbf16, #tpu.memory_space<vmem>>, %arg11: memref<10x128xbf16, #tpu.memory_space<vmem>>, %arg12: memref<10x128xf32, #tpu.memory_space<vmem>>) attributes {dimension_semantics = [#tpu.dimension_semantics<parallel>, #tpu.dimension_semantics<parallel>, #tpu.dimension_semantics<arbitrary>], iteration_bounds = array<i64: 1, 1, 1>, scalar_prefetch = 0 : i64, scratch_operands = 1 : i64, tpu.core_type = #tpu.core_type<tc>, window_params = [{transform_indices = @transform_0, window_bounds = array<i64: 10, 512>}, {transform_indices = @transform_1, window_bounds = array<i64: 512, 128>}, {transform_indices = @transform_2, window_bounds = array<i64: 1, 128>}, {transform_indices = @transform_3, window_bounds = array<i64: 10, 128>}, {transform_indices = @transform_4, window_bounds = array<i64: 1, 128>}, {transform_indices = @transform_5, window_bounds = array<i64: 1, 128>}, {transform_indices = @transform_6, window_bounds = array<i64: 1, 128>}, {transform_indices = @transform_7, window_bounds = array<i64: 10, 128>}, {transform_indices = @transform_8, window_bounds = array<i64: 10, 128>}]} {
    %c0_i32 = arith.constant 0 : i32
    %0 = arith.cmpi eq, %arg2, %c0_i32 : i32
    %1 = arith.extui %0 : i1 to i32
    %c0_i32_0 = arith.constant 0 : i32
    %2 = arith.cmpi ne, %1, %c0_i32_0 : i32
    scf.if %2 {
      %cst_10 = arith.constant 0.000000e+00 : f32
      %12 = vector.broadcast %cst_10 : f32 to vector<10x128xf32>
      %c0_11 = arith.constant 0 : index
      %c0_12 = arith.constant 0 : index
      %13 = vector.load %arg12[%c0_11, %c0_12] : memref<10x128xf32, #tpu.memory_space<vmem>>, vector<10x128xf32>
      tpu.vector_store %arg12[%c0_11, %c0_12], %12 {strides = array<i32>} : memref<10x128xf32, #tpu.memory_space<vmem>>, vector<10x128xf32>,
    } else {
    }
    %c0 = arith.constant 0 : index
    %c0_1 = arith.constant 0 : index
    %3 = vector.load %arg12[%c0, %c0_1] : memref<10x128xf32, #tpu.memory_space<vmem>>, vector<10x128xf32>
    %c0_2 = arith.constant 0 : index
    %c0_3 = arith.constant 0 : index
    %4 = vector.load %arg3[%c0_2, %c0_3] : memref<10x512xbf16, #tpu.memory_space<vmem>>, vector<10x512xbf16>
    %c0_4 = arith.constant 0 : index
    %c0_5 = arith.constant 0 : index
    %5 = vector.load %arg4[%c0_4, %c0_5] : memref<512x128xbf16, #tpu.memory_space<vmem>>, vector<512x128xbf16>
    %cst = arith.constant dense<0.000000e+00> : vector<10x128xf32>
    %6 = tpu.matmul %4, %5, %cst {dimension_numbers = #tpu.dot_dimension_numbers<[1], [0], [0], [1], [0, 0, 1, 1], [], []>} : vector<10x512xbf16>, vector<512x128xbf16>, vector<10x128xf32> -> vector<10x128xf32>
    %7 = arith.addf %3, %6 : vector<10x128xf32>
    %c0_6 = arith.constant 0 : index
    %c0_7 = arith.constant 0 : index
    %8 = vector.load %arg12[%c0_6, %c0_7] : memref<10x128xf32, #tpu.memory_space<vmem>>, vector<10x128xf32>
    tpu.vector_store %arg12[%c0_6, %c0_7], %7 {strides = array<i32>} : memref<10x128xf32, #tpu.memory_space<vmem>>, vector<10x128xf32>,
    %c0_i32_8 = arith.constant 0 : i32
    %9 = arith.cmpi eq, %arg2, %c0_i32_8 : i32
    %10 = arith.extui %9 : i1 to i32
    %c0_i32_9 = arith.constant 0 : i32
    %11 = arith.cmpi ne, %10, %c0_i32_9 : i32
    scf.if %11 {
      %c0_10 = arith.constant 0 : index
      %c0_11 = arith.constant 0 : index
      %12 = vector.load %arg12[%c0_10, %c0_11] : memref<10x128xf32, #tpu.memory_space<vmem>>, vector<10x128xf32>
      %c0_12 = arith.constant 0 : index
      %c0_13 = arith.constant 0 : index
      %13 = vector.load %arg5[%c0_12, %c0_13] : memref<1x128xf32, #tpu.memory_space<vmem>>, vector<1x128xf32>
      %14 = vector.broadcast %13 : vector<1x128xf32> to vector<10x128xf32>
      %15 = arith.addf %12, %14 : vector<10x128xf32>
      %c0_14 = arith.constant 0 : index
      %c0_15 = arith.constant 0 : index
      %16 = vector.load %arg6[%c0_14, %c0_15] : memref<10x128xbf16, #tpu.memory_space<vmem>>, vector<10x128xbf16>
      %17 = arith.extf %16 : vector<10x128xbf16> to vector<10x128xf32>
      %c0_16 = arith.constant 0 : index
      %c0_17 = arith.constant 0 : index
      %18 = vector.load %arg7[%c0_16, %c0_17] : memref<1x128xf32, #tpu.memory_space<vmem>>, vector<1x128xf32>
      %19 = vector.broadcast %18 : vector<1x128xf32> to vector<10x128xf32>
      %20 = arith.mulf %15, %19 : vector<10x128xf32>
      %21 = arith.addf %17, %20 : vector<10x128xf32>
      %22 = arith.truncf %21 : vector<10x128xf32> to vector<10x128xbf16>
      %c0_18 = arith.constant 0 : index
      %c0_19 = arith.constant 0 : index
      %23 = vector.load %arg10[%c0_18, %c0_19] : memref<10x128xbf16, #tpu.memory_space<vmem>>, vector<10x128xbf16>
      tpu.vector_store %arg10[%c0_18, %c0_19], %22 {strides = array<i32>} : memref<10x128xbf16, #tpu.memory_space<vmem>>, vector<10x128xbf16>,
      %cst_20 = arith.constant dense<0.000000e+00> : vector<10xf32>
      %24 = vector.multi_reduction <add>, %21, %cst_20 [1] : vector<10x128xf32> to vector<10xf32>
      %25 = vector.shape_cast %24 : vector<10xf32> to vector<10x1xf32>
      %cst_21 = arith.constant 1.280000e+02 : f32
      %26 = vector.broadcast %cst_21 : f32 to vector<10x1xf32>
      %27 = arith.divf %25, %26 : vector<10x1xf32>
      %28 = vector.broadcast %27 : vector<10x1xf32> to vector<10x128xf32>
      %29 = arith.subf %21, %28 : vector<10x128xf32>
      %30 = arith.mulf %29, %29 : vector<10x128xf32>
      %cst_22 = arith.constant dense<0.000000e+00> : vector<10xf32>
      %31 = vector.multi_reduction <add>, %30, %cst_22 [1] : vector<10x128xf32> to vector<10xf32>
      %32 = vector.shape_cast %31 : vector<10xf32> to vector<10x1xf32>
      %cst_23 = arith.constant 1.280000e+02 : f32
      %33 = vector.broadcast %cst_23 : f32 to vector<10x1xf32>
      %34 = arith.divf %32, %33 : vector<10x1xf32>
      %cst_24 = arith.constant 9.99999997E-7 : f32
      %35 = vector.broadcast %cst_24 : f32 to vector<10x1xf32>
      %36 = arith.addf %34, %35 : vector<10x1xf32>
      %37 = math.rsqrt %36 : vector<10x1xf32>
      %38 = vector.broadcast %37 : vector<10x1xf32> to vector<10x128xf32>
      %39 = arith.mulf %29, %38 : vector<10x128xf32>
      %c0_25 = arith.constant 0 : index
      %c0_26 = arith.constant 0 : index
      %40 = vector.load %arg8[%c0_25, %c0_26] : memref<1x128xf32, #tpu.memory_space<vmem>>, vector<1x128xf32>
      %41 = vector.broadcast %40 : vector<1x128xf32> to vector<10x128xf32>
      %42 = arith.mulf %39, %41 : vector<10x128xf32>
      %c0_27 = arith.constant 0 : index
      %c0_28 = arith.constant 0 : index
      %43 = vector.load %arg9[%c0_27, %c0_28] : memref<1x128xf32, #tpu.memory_space<vmem>>, vector<1x128xf32>
      %44 = vector.broadcast %43 : vector<1x128xf32> to vector<10x128xf32>
      %45 = arith.addf %42, %44 : vector<10x128xf32>
      %46 = arith.truncf %45 : vector<10x128xf32> to vector<10x128xbf16>
      %c0_29 = arith.constant 0 : index
      %c0_30 = arith.constant 0 : index
      %47 = vector.load %arg11[%c0_29, %c0_30] : memref<10x128xbf16, #tpu.memory_space<vmem>>, vector<10x128xbf16>
      tpu.vector_store %arg11[%c0_29, %c0_30], %46 {strides = array<i32>} : memref<10x128xbf16, #tpu.memory_space<vmem>>, vector<10x128xbf16>,
    } else {
    }
    return
  }
  func.func @transform_0(%arg0: i32, %arg1: i32, %arg2: i32) -> (i32, i32) {
    %c0_i32 = arith.constant 0 : i32
    return %arg0, %arg2 : i32, i32
  }
  func.func @transform_1(%arg0: i32, %arg1: i32, %arg2: i32) -> (i32, i32) {
    %c0_i32 = arith.constant 0 : i32
    return %arg2, %arg1 : i32, i32
  }
  func.func @transform_2(%arg0: i32, %arg1: i32, %arg2: i32) -> (i32, i32) {
    %c0_i32 = arith.constant 0 : i32
    %c0_i32_0 = arith.constant 0 : i32
    return %c0_i32, %arg1 : i32, i32
  }
  func.func @transform_3(%arg0: i32, %arg1: i32, %arg2: i32) -> (i32, i32) {
    %c0_i32 = arith.constant 0 : i32
    return %arg0, %arg1 : i32, i32
  }
  func.func @transform_4(%arg0: i32, %arg1: i32, %arg2: i32) -> (i32, i32) {
    %c0_i32 = arith.constant 0 : i32
    %c0_i32_0 = arith.constant 0 : i32
    return %c0_i32, %arg1 : i32, i32
  }
  func.func @transform_5(%arg0: i32, %arg1: i32, %arg2: i32) -> (i32, i32) {
    %c0_i32 = arith.constant 0 : i32
    %c0_i32_0 = arith.constant 0 : i32
    return %c0_i32, %arg1 : i32, i32
  }
  func.func @transform_6(%arg0: i32, %arg1: i32, %arg2: i32) -> (i32, i32) {
    %c0_i32 = arith.constant 0 : i32
    %c0_i32_0 = arith.constant 0 : i32
    return %c0_i32, %arg1 : i32, i32
  }
  func.func @transform_7(%arg0: i32, %arg1: i32, %arg2: i32) -> (i32, i32) {
    %c0_i32 = arith.constant 0 : i32
    return %arg0, %arg1 : i32, i32
  }
  func.func @transform_8(%arg0: i32, %arg1: i32, %arg2: i32) -> (i32, i32) {
    %c0_i32 = arith.constant 0 : i32
    return %arg0, %arg1 : i32, i32
  }
}

</mosaic_0001>

<llo_original>
// kernel: _lambda_.13
$region0: #{_lambda_.13}
  #allocation0 [shape = 'u32[]', space=smem, size = 0x4, offset = 0x4, fixed_abs, tag = 'smem constant byte address 0x4 - core index']
  #allocation1 [shape = 'u32[72,128]{1,0:T(1,128)}', space=vmem, size = 0x9000, scoped, tag = 'internal scratch']
  %s0 = inlined_call_operand.vmem [shape: bf16[10,128], index: 0, kind: input, shape index: {}]
  %s1 = inlined_call_operand.vmem [shape: f32[1,128], index: 1, kind: input, shape index: {}]
  %s2 = inlined_call_operand.vmem [shape: f32[1,128], index: 2, kind: input, shape index: {}]
  %s3 = inlined_call_operand.vmem [shape: bf16[10,128], index: 3, kind: output, shape index: {}]
  %s4 = sld [smem:[#allocation0]]
  $region22: #{_lambda_.13} parent=0
    _
  %s6 = ssub.s32 1, %s4
  %s7 = scalar_select 0, %s6, %s4
  // Predicated region
  $region2: #{_lambda_.13} parent=0 // pred_check
    _
  $region3: #{_lambda_.13} parent=0 // pred_check_branch
    %9 = sbr.rel (0) target = $region5
  $region4: #{_lambda_.13} parent=0 // pred_region
    _
  $region5: #{_lambda_.13} parent=0 // pred_fallthru
    _
  // Predicated region
  $region6: #{_lambda_.13} parent=0 // pred_check
    _
  $region7: #{_lambda_.13} parent=0 // pred_check_branch
    %11 = sbr.rel (0) target = $region9
  $region8: #{_lambda_.13} parent=0 // pred_region
    _
  $region9: #{_lambda_.13} parent=0 // pred_fallthru
    _
  // Predicated region
  $region10: #{_lambda_.13} parent=0 // pred_check
    _
  $region11: #{_lambda_.13} parent=0 // pred_check_branch
    %13 = sbr.rel (0) target = $region13
  $region12: #{_lambda_.13} parent=0 // pred_region
    _
  $region13: #{_lambda_.13} parent=0 // pred_fallthru
    _
  %v14 = vld [vmem:[%s0] sm:$0xf]
  %v15 = vld [vmem:[%s0 + $0x4] sm:$0x1]
  %v16 = vunpack.c.l.bf16 %v14
  %v17 = vunpack.c.l.bf16 %v15
  %18 = vadd.xlane.f32.xlu0 %v16
  %v19 = vpop.xlane.xlu0 %18
  %vm20 = vcmask 1041408
  %v21 = vsel %vm20, %v17, 0.0
  %22 = vadd.xlane.f32.xlu0 %v21
  %v23 = vpop.xlane.xlu0 %22
  %v24 = vrcp.pop 128.0
  %v25 = vmul.f32 128.0, %v24
  %v26 = vsub.f32 1.0, %v25
  %v27 = vmul.f32 %v24, %v26
  %v28 = vadd.f32 %v24, %v27
  %vm29 = vweird.f32 %v24
  %v30 = vsel %vm29, %v24, %v28
  %v31 = vmul.f32 %v19, %v30
  %v32 = vmul.f32 %v23, %v30
  %v33 = vsub.f32 %v16, %v31
  %v34 = vsub.f32 %v17, %v32
  %v35 = vmul.f32 %v33, %v33
  %v36 = vmul.f32 %v34, %v34
  %37 = vadd.xlane.f32.xlu0 %v35
  %v38 = vpop.xlane.xlu0 %37
  %v39 = vsel %vm20, %v36, 0.0
  %40 = vadd.xlane.f32.xlu0 %v39
  %v41 = vpop.xlane.xlu0 %40
  %v42 = vmul.f32 %v38, %v30
  %v43 = vmul.f32 %v41, %v30
  %v44 = vadd.f32 %v42, 1e-06
  %v45 = vadd.f32 %v43, 1e-06
  %v46 = vrsqrt.pop %v44
  %v47 = vmul.f32 %v46, %v44
  %v48 = vmul.f32 %v47, %v46
  %v49 = vmul.f32 0.5, %v48
  %v50 = vsub.f32 1.5, %v49
  %v51 = vmul.f32 %v46, %v50
  %vm52 = vweird.f32 %v44
  %vm53 = vweird.f32 %v46
  %vm54 = vmor %vm52, %vm53
  %v55 = vsel %vm54, %v46, %v51
  %v56 = vrsqrt.pop %v45
  %v57 = vmul.f32 %v56, %v45
  %v58 = vmul.f32 %v57, %v56
  %v59 = vmul.f32 0.5, %v58
  %v60 = vsub.f32 1.5, %v59
  %v61 = vmul.f32 %v56, %v60
  %vm62 = vweird.f32 %v45
  %vm63 = vweird.f32 %v56
  %vm64 = vmor %vm62, %vm63
  %v65 = vsel %vm64, %v56, %v61
  %v66 = vmul.f32 %v33, %v55
  %v67 = vmul.f32 %v34, %v65
  %v68 = vld [vmem:[%s1] sm:$0x1]
  %v70 = vperm.slane %v68, 0
  %v72 = vmul.f32 %v66, %v70
  %v73 = vmul.f32 %v67, %v70
  %v74 = vld [vmem:[%s2] sm:$0x1]
  %v76 = vperm.slane %v74, 0
  %v78 = vadd.f32 %v72, %v76
  %v79 = vadd.f32 %v73, %v76
  %v80 = vpack.c.bf16 %v78, %v78
  %v81 = vpack.c.bf16 %v79, %v79
  %82 = vst [vmem:[%s3] sm:$0xf] %v80
  %83 = vst [vmem:[%s3 + $0x4] sm:$0x1] %v81
  // Predicated region
  $region14: #{_lambda_.13} parent=0 // pred_check
    _
  $region15: #{_lambda_.13} parent=0 // pred_check_branch
    %85 = sbr.rel (0) target = $region17
  $region16: #{_lambda_.13} parent=0 // pred_region
    _
  $region17: #{_lambda_.13} parent=0 // pred_fallthru
    _
  // Predicated region
  $region18: #{_lambda_.13} parent=0 // pred_check
    _
  $region19: #{_lambda_.13} parent=0 // pred_check_branch
    %87 = sbr.rel (0) target = $region21
  $region20: #{_lambda_.13} parent=0 // pred_region
    _
  $region21: #{_lambda_.13} parent=0 // pred_fallthru
    _

// kernel: _lambda_.12
$region0: #{_lambda_.12}
  #allocation0 [shape = 'u32[]', space=smem, size = 0x4, offset = 0x4, fixed_abs, tag = 'smem constant byte address 0x4 - core index']
  #allocation1 [shape = 'u32[72,128]{1,0:T(1,128)}', space=vmem, size = 0x9000, scoped, tag = 'internal scratch']
  #allocation2 [shape = 'f32[8,128]{1,0:T(8,128)}', space=vmem, size = 0x1000, scoped, tag = 'scratch operand']
  %s0 = inlined_call_operand.vmem [shape: bf16[8,768], index: 0, kind: input, shape index: {}]
  %s1 = inlined_call_operand.vmem [shape: bf16[768,128], index: 1, kind: input, shape index: {}]
  %s2 = inlined_call_operand.vmem [shape: f32[1,128], index: 2, kind: input, shape index: {}]
  %s3 = inlined_call_operand.vmem [shape: bf16[8,128], index: 3, kind: output, shape index: {}]
  %s4 = sld [smem:[#allocation0]]
  $region53: #{_lambda_.12} parent=0
    _
  %s6 = ssub.s32 1, %s4
  %s7 = scalar_select 0, %s6, %s4
  loop: start=0, step=1, limit=5
  $region2: #{_lambda_.12} parent=0 // loop_pre_header
    _
  $region3: #{_lambda_.12} parent=0 // loop_header
    %s9 = sphi 0, %s13
    %p10 = scmp.ge.s32.totalorder %s9, 5
    %s16 = sphi 0, %s35
    %s17 = sphi 0, %s31
    %s18 = sphi 0, %s27
    %s19 = sphi 0, %s16
    %s20 = sphi 0, %s17
    %s21 = sphi 0, %s18
    %s22 = sphi 0, %s19
    %s23 = sphi 0, %s20
    %s24 = sphi 0, %s21
    %s40 = sphi 0, %s42
    %s43 = sphi 0, %s40
    %s44 = sphi 0, %s43
    %s60 = sphi 0, %s44
    %s68 = sphi 0, %s70
    %s71 = sphi 0, %s68
    %s72 = sphi 0, %s71
    %s88 = sphi 0, %s72
    %s94 = sphi 0, %s96
    %s97 = sphi 0, %s94
    %s98 = sphi 0, %s97
    %s114 = sphi 0, %s98
    %s122 = sphi 0, %s124
    %s125 = sphi 0, %s122
    %s126 = sphi 0, %s125
    %s142 = sphi 0, %s126
  $region4: #{_lambda_.12} parent=0 // loop_header_branch
    %12 = sbr.rel (%p10) target = $region8
  $region5: #{_lambda_.12} parent=0 // loop_body
    %s14 = ssub.s32 %s9, 1
    %s15 = ssub.s32 %s9, 2
    %s25 = sadd.s32 1, %s18
    %p26 = scmp.ge.s32.totalorder %s25, 3
    %s27 = scalar_select %p26, 0, %s25
    %s28 = sadd.s32 1, %s17
    %s29 = scalar_select %p26, %s28, %s17
    %p30 = scmp.ge.s32.totalorder %s29, 1
    %s31 = scalar_select %p30, 0, %s29
    %s32 = sadd.s32 1, %s16
    %s33 = scalar_select %p30, %s32, %s16
    %p34 = scmp.ge.s32.totalorder %s33, 1
    %s35 = scalar_select %p34, 0, %s33
    %s36 = ssub.s32 %s16, %s35
    %s37 = ssub.s32 %s18, %s27
    %s38 = sor.u32 %s36, %s37
    %p39 = scmp.eq.s32.totalorder %s38, 0
    %s41 = sadd.s32 %s40, 1
    %s42 = scalar_select %p39, %s40, %s41
    %p45 = pneg %p39
    %p46 = scmp.eq.s32.totalorder %s9, 2
    %p47 = por %p45, %p46
    %p48 = scmp.ne.s32.totalorder %s40, %s43
    %p49 = scmp.eq.s32.totalorder %s9, 0
    %p50 = por %p48, %p49
    %p51 = scmp.ne.s32.totalorder %s40, %s43
    %p52 = scmp.eq.s32.totalorder %s14, 2
    %p53 = por %p51, %p52
    %p54 = scmp.ne.s32.totalorder %s43, %s44
    %p55 = scmp.eq.s32.totalorder %s14, 0
    %p56 = por %p54, %p55
    %p57 = scmp.ne.s32.totalorder %s43, %s44
    %p58 = scmp.eq.s32.totalorder %s15, 2
    %p59 = por %p57, %p58
    %p61 = scmp.ne.s32.totalorder %s44, %s60
    %p62 = scmp.eq.s32.totalorder %s15, 0
    %p63 = por %p61, %p62
    %s64 = ssub.s32 %s18, %s27
    %s65 = ssub.s32 %s17, %s31
    %s66 = sor.u32 %s64, %s65
    %p67 = scmp.eq.s32.totalorder %s66, 0
    %s69 = sadd.s32 %s68, 1
    %s70 = scalar_select %p67, %s68, %s69
    %p73 = pneg %p67
    %p74 = scmp.eq.s32.totalorder %s9, 2
    %p75 = por %p73, %p74
    %p76 = scmp.ne.s32.totalorder %s68, %s71
    %p77 = scmp.eq.s32.totalorder %s9, 0
    %p78 = por %p76, %p77
    %p79 = scmp.ne.s32.totalorder %s68, %s71
    %p80 = scmp.eq.s32.totalorder %s14, 2
    %p81 = por %p79, %p80
    %p82 = scmp.ne.s32.totalorder %s71, %s72
    %p83 = scmp.eq.s32.totalorder %s14, 0
    %p84 = por %p82, %p83
    %p85 = scmp.ne.s32.totalorder %s71, %s72
    %p86 = scmp.eq.s32.totalorder %s15, 2
    %p87 = por %p85, %p86
    %p89 = scmp.ne.s32.totalorder %s72, %s88
    %p90 = scmp.eq.s32.totalorder %s15, 0
    %p91 = por %p89, %p90
    %s92 = ssub.s32 %s17, %s31
    %p93 = scmp.eq.s32.totalorder %s92, 0
    %s95 = sadd.s32 %s94, 1
    %s96 = scalar_select %p93, %s94, %s95
    %p99 = pneg %p93
    %p100 = scmp.eq.s32.totalorder %s9, 2
    %p101 = por %p99, %p100
    %p102 = scmp.ne.s32.totalorder %s94, %s97
    %p103 = scmp.eq.s32.totalorder %s9, 0
    %p104 = por %p102, %p103
    %p105 = scmp.ne.s32.totalorder %s94, %s97
    %p106 = scmp.eq.s32.totalorder %s14, 2
    %p107 = por %p105, %p106
    %p108 = scmp.ne.s32.totalorder %s97, %s98
    %p109 = scmp.eq.s32.totalorder %s14, 0
    %p110 = por %p108, %p109
    %p111 = scmp.ne.s32.totalorder %s97, %s98
    %p112 = scmp.eq.s32.totalorder %s15, 2
    %p113 = por %p111, %p112
    %p115 = scmp.ne.s32.totalorder %s98, %s114
    %p116 = scmp.eq.s32.totalorder %s15, 0
    %p117 = por %p115, %p116
    %s118 = ssub.s32 %s16, %s35
    %s119 = ssub.s32 %s17, %s31
    %s120 = sor.u32 %s118, %s119
    %p121 = scmp.eq.s32.totalorder %s120, 0
    %s123 = sadd.s32 %s122, 1
    %s124 = scalar_select %p121, %s122, %s123
    %p127 = pneg %p121
    %p128 = scmp.eq.s32.totalorder %s9, 2
    %p129 = por %p127, %p128
    %p130 = scmp.ne.s32.totalorder %s122, %s125
    %p131 = scmp.eq.s32.totalorder %s9, 0
    %p132 = por %p130, %p131
    %p133 = scmp.ne.s32.totalorder %s122, %s125
    %p134 = scmp.eq.s32.totalorder %s14, 2
    %p135 = por %p133, %p134
    %p136 = scmp.ne.s32.totalorder %s125, %s126
    %p137 = scmp.eq.s32.totalorder %s14, 0
    %p138 = por %p136, %p137
    %p139 = scmp.ne.s32.totalorder %s125, %s126
    %p140 = scmp.eq.s32.totalorder %s15, 2
    %p141 = por %p139, %p140
    %p143 = scmp.ne.s32.totalorder %s126, %s142
    %p144 = scmp.eq.s32.totalorder %s15, 0
    %p145 = por %p143, %p144
    %p146 = scmp.le.s32.totalorder 1, %s9
    %p147 = scmp.lt.s32.totalorder %s9, 4
    %p148 = pnand %p146, %p147
    %p149 = pneg %p148
    // Predicated region
    $region9: #{_lambda_.12} parent=5 // pred_check
      _
    $region10: #{_lambda_.12} parent=5 // pred_check_branch
      %151 = sbr.rel (%p148) target = $region12
    $region11: #{_lambda_.12} parent=5 // pred_region
      %s152 = ssub.s32 %s9, 1
      // Predicated region
      $region13: #{_lambda_.12} parent=11 // pred_check
        %p153 = pneg %p110
      $region14: #{_lambda_.12} parent=11 // pred_check_branch
        %155 = sbr.rel (%p153) target = $region16
      $region15: #{_lambda_.12} parent=11 // pred_region
        %p156 = scmp.lt.s32.totalorder %s20, 0
        %s157 = scalar_select %p156, %s20, 0
        %s158 = scalar_lea.vmem %s2, %s157
      $region16: #{_lambda_.12} parent=11 // pred_fallthru
        _
    $region12: #{_lambda_.12} parent=5 // pred_fallthru
      _
    %p159 = scmp.lt.s32.totalorder %s9, 3
    // Predicated region
    $region17: #{_lambda_.12} parent=5 // pred_check
      %p160 = pneg %p159
    $region18: #{_lambda_.12} parent=5 // pred_check_branch
      %162 = sbr.rel (%p160) target = $region20
    $region19: #{_lambda_.12} parent=5 // pred_region
      // Predicated region
      $region21: #{_lambda_.12} parent=19 // pred_check
        %p163 = pneg %p50
      $region22: #{_lambda_.12} parent=19 // pred_check_branch
        %165 = sbr.rel (%p163) target = $region24
      $region23: #{_lambda_.12} parent=19 // pred_region
        %s166 = smul.u32 2, %s18
        %p167 = scmp.lt.s32.totalorder %s16, 0
        %s168 = scalar_select %p167, %s16, 0
        %p169 = scmp.lt.s32.totalorder %s166, 5
        %s170 = scalar_select %p169, %s166, 5
        %s171 = smul.addr %s168, 6
        %s172 = sadd.s32 %s170, %s171
        %s173 = smul.addr %s172, 4
        %s174 = scalar_lea.vmem %s0, %s173
        %s175 = smul.u32 2, %s18
      $region24: #{_lambda_.12} parent=19 // pred_fallthru
        _
      // Predicated region
      $region25: #{_lambda_.12} parent=19 // pred_check
        %p176 = pneg %p78
      $region26: #{_lambda_.12} parent=19 // pred_check_branch
        %178 = sbr.rel (%p176) target = $region28
      $region27: #{_lambda_.12} parent=19 // pred_region
        %s179 = smul.u32 32, %s18
        %p180 = scmp.lt.s32.totalorder %s179, 95
        %s181 = scalar_select %p180, %s179, 95
        %p182 = scmp.lt.s32.totalorder %s17, 0
        %s183 = scalar_select %p182, %s17, 0
        %s184 = sadd.s32 %s183, %s181
        %s185 = smul.addr %s184, 4
        %s186 = scalar_lea.vmem %s1, %s185
        %s187 = smul.u32 32, %s18
      $region28: #{_lambda_.12} parent=19 // pred_fallthru
        _
    $region20: #{_lambda_.12} parent=5 // pred_fallthru
      _
    %p188 = scmp.le.s32.totalorder 1, %s9
    %p189 = scmp.lt.s32.totalorder %s9, 4
    %p190 = pnand %p188, %p189
    %p191 = pneg %p190
    // Predicated region
    $region29: #{_lambda_.12} parent=5 // pred_check
      _
    $region30: #{_lambda_.12} parent=5 // pred_check_branch
      %193 = sbr.rel (%p190) target = $region32
    $region31: #{_lambda_.12} parent=5 // pred_region
      %s194 = ssub.s32 %s9, 1
      %s195 = smul.u32 2, %s21
      %p196 = scmp.lt.s32.totalorder %s19, 0
      %s197 = scalar_select %p196, %s19, 0
      %p198 = scmp.lt.s32.totalorder %s195, 5
      %s199 = scalar_select %p198, %s195, 5
      %s200 = smul.addr %s197, 6
      %s201 = sadd.s32 %s199, %s200
      %s202 = smul.addr %s201, 4
      %s203 = scalar_lea.vmem %s0, %s202
      %p204 = pneg %p56
      %p205 = pneg %p53
      %s206 = smul.u32 32, %s21
      %p207 = scmp.lt.s32.totalorder %s206, 95
      %s208 = scalar_select %p207, %s206, 95
      %p209 = scmp.lt.s32.totalorder %s20, 0
      %s210 = scalar_select %p209, %s20, 0
      %s211 = sadd.s32 %s210, %s208
      %s212 = smul.addr %s211, 4
      %s213 = scalar_lea.vmem %s1, %s212
      %p214 = pneg %p84
      %p215 = pneg %p81
      %p216 = scmp.lt.s32.totalorder %s20, 0
      %s217 = scalar_select %p216, %s20, 0
      %s218 = scalar_lea.vmem %s2, %s217
      %p219 = pneg %p110
      %p220 = pneg %p107
      %p221 = pneg %p138
      %p222 = pneg %p135
      %p223 = scmp.lt.s32.totalorder %s19, 0
      %s224 = scalar_select %p223, %s19, 0
      %p225 = scmp.lt.s32.totalorder %s20, 0
      %s226 = scalar_select %p225, %s20, 0
      %s227 = sadd.s32 %s226, %s224
      %s228 = smul.addr %s227, 4
      %s229 = scalar_lea.vmem %s3, %s228
      %s230 = smul.u32 2, %s21
      %p231 = scmp.lt.s32.totalorder %s19, 0
      %s232 = scalar_select %p231, %s19, 0
      %p233 = scmp.lt.s32.totalorder %s230, 5
      %s234 = scalar_select %p233, %s230, 5
      %s235 = smul.addr %s232, 6
      %s236 = sadd.s32 %s234, %s235
      %s237 = smul.addr %s236, 4
      %s238 = scalar_lea.vmem %s0, %s237
      %s239 = smul.u32 2, %s21
      %s240 = smul.u32 32, %s21
      %p241 = scmp.lt.s32.totalorder %s240, 95
      %s242 = scalar_select %p241, %s240, 95
      %p243 = scmp.lt.s32.totalorder %s20, 0
      %s244 = scalar_select %p243, %s20, 0
      %s245 = sadd.s32 %s244, %s242
      %s246 = smul.addr %s245, 4
      %s247 = scalar_lea.vmem %s1, %s246
      %s248 = smul.u32 32, %s21
      %p249 = scmp.lt.s32.totalorder %s20, 0
      %s250 = scalar_select %p249, %s20, 0
      %s251 = scalar_lea.vmem %s2, %s250
      %p252 = scmp.lt.s32.totalorder %s19, 0
      %s253 = scalar_select %p252, %s19, 0
      %p254 = scmp.lt.s32.totalorder %s20, 0
      %s255 = scalar_select %p254, %s20, 0
      %s256 = sadd.s32 %s255, %s253
      %s257 = smul.addr %s256, 4
      %s258 = scalar_lea.vmem %s3, %s257
      %p259 = scmp.eq.s32.totalorder %s21, 0
      // Predicated region
      $region33: #{_lambda_.12} parent=31 // pred_check
        %p260 = pneg %p259
      $region34: #{_lambda_.12} parent=31 // pred_check_branch
        %262 = sbr.rel (%p260) target = $region36
      $region35: #{_lambda_.12} parent=31 // pred_region
        %263 = vst [vmem:[#allocation2] sm:$0xff] 0.0
      $region36: #{_lambda_.12} parent=31 // pred_fallthru
        _
      %v264 = vld [vmem:[#allocation2] sm:$0xff]
      %v265 = vld [vmem:[%s238] sm:$0xff]
      %v266 = vld [vmem:[%s247] sm:$0xf]
      %v267 = vld [vmem:[%s247 + $0x4] sm:$0xf]
      %v268 = vld [vmem:[%s247 + $0x8] sm:$0xf]
      %v269 = vld [vmem:[%s247 + $0xc] sm:$0xf]
      %v270 = vld [vmem:[%s247 + $0x10] sm:$0xf]
      %v271 = vld [vmem:[%s247 + $0x14] sm:$0xf]
      %v272 = vld [vmem:[%s247 + $0x18] sm:$0xf]
      %v273 = vld [vmem:[%s247 + $0x1c] sm:$0xf]
      %v274 = vld [vmem:[%s247 + $0x20] sm:$0xf]
      %v275 = vld [vmem:[%s247 + $0x24] sm:$0xf]
      %v276 = vld [vmem:[%s247 + $0x28] sm:$0xf]
      %v277 = vld [vmem:[%s247 + $0x2c] sm:$0xf]
      %v278 = vld [vmem:[%s247 + $0x30] sm:$0xf]
      %v279 = vld [vmem:[%s247 + $0x34] sm:$0xf]
      %v280 = vld [vmem:[%s247 + $0x38] sm:$0xf]
      %v281 = vld [vmem:[%s247 + $0x3c] sm:$0xf]
      %v282 = vld [vmem:[%s247 + $0x40] sm:$0xf]
      %v283 = vld [vmem:[%s247 + $0x44] sm:$0xf]
      %v284 = vld [vmem:[%s247 + $0x48] sm:$0xf]
      %v285 = vld [vmem:[%s247 + $0x4c] sm:$0xf]
      %v286 = vld [vmem:[%s247 + $0x50] sm:$0xf]
      %v287 = vld [vmem:[%s247 + $0x54] sm:$0xf]
      %v288 = vld [vmem:[%s247 + $0x58] sm:$0xf]
      %v289 = vld [vmem:[%s247 + $0x5c] sm:$0xf]
      %v290 = vld [vmem:[%s247 + $0x60] sm:$0xf]
      %v291 = vld [vmem:[%s247 + $0x64] sm:$0xf]
      %v292 = vld [vmem:[%s247 + $0x68] sm:$0xf]
      %v293 = vld [vmem:[%s247 + $0x6c] sm:$0xf]
      %v294 = vld [vmem:[%s247 + $0x70] sm:$0xf]
      %v295 = vld [vmem:[%s247 + $0x74] sm:$0xf]
      %v296 = vld [vmem:[%s247 + $0x78] sm:$0xf]
      %v297 = vld [vmem:[%s247 + $0x7c] sm:$0xf]
      %v299 = vunpack.c.l.b16 %v265
      %v300 = vunpack.c.h.b16 %v265
      %v301 = vpack.c.b16 %v299, %v299
      %v302 = vpack.c.b16 %v300, %v300
      %v337 = vunpack.c.l.b16 %v266
      %v338 = vunpack.c.l.b16 %v267
      %v339 = vunpack.c.l.b16 %v268
      %v340 = vunpack.c.l.b16 %v269
      %v341 = vunpack.c.l.b16 %v270
      %v342 = vunpack.c.l.b16 %v271
      %v343 = vunpack.c.l.b16 %v272
      %v344 = vunpack.c.l.b16 %v273
      %v345 = vunpack.c.l.b16 %v274
      %v346 = vunpack.c.l.b16 %v275
      %v347 = vunpack.c.l.b16 %v276
      %v348 = vunpack.c.l.b16 %v277
      %v349 = vunpack.c.l.b16 %v278
      %v350 = vunpack.c.l.b16 %v279
      %v351 = vunpack.c.l.b16 %v280
      %v352 = vunpack.c.l.b16 %v281
      %v353 = vunpack.c.l.b16 %v282
      %v354 = vunpack.c.l.b16 %v283
      %v355 = vunpack.c.l.b16 %v284
      %v356 = vunpack.c.l.b16 %v285
      %v357 = vunpack.c.l.b16 %v286
      %v358 = vunpack.c.l.b16 %v287
      %v359 = vunpack.c.l.b16 %v288
      %v360 = vunpack.c.l.b16 %v289
      %v361 = vunpack.c.l.b16 %v290
      %v362 = vunpack.c.l.b16 %v291
      %v363 = vunpack.c.l.b16 %v292
      %v364 = vunpack.c.l.b16 %v293
      %v365 = vunpack.c.l.b16 %v294
      %v366 = vunpack.c.l.b16 %v295
      %v367 = vunpack.c.l.b16 %v296
      %v368 = vunpack.c.l.b16 %v297
      %v369 = vpack.c.b16 %v338, %v337
      %v370 = vpack.c.b16 %v340, %v339
      %v371 = vpack.c.b16 %v342, %v341
      %v372 = vpack.c.b16 %v344, %v343
      %v373 = vpack.c.b16 %v346, %v345
      %v374 = vpack.c.b16 %v348, %v347
      %v375 = vpack.c.b16 %v350, %v349
      %v376 = vpack.c.b16 %v352, %v351
      %v377 = vpack.c.b16 %v354, %v353
      %v378 = vpack.c.b16 %v356, %v355
      %v379 = vpack.c.b16 %v358, %v357
      %v380 = vpack.c.b16 %v360, %v359
      %v381 = vpack.c.b16 %v362, %v361
      %v382 = vpack.c.b16 %v364, %v363
      %v383 = vpack.c.b16 %v366, %v365
      %v384 = vpack.c.b16 %v368, %v367
      %401 = vmatpush.bf16.msra.mxu0 %v376
      %402 = vmatpush.bf16.msra.mxu0 %v375
      %403 = vmatpush.bf16.msra.mxu0 %v374
      %404 = vmatpush.bf16.msra.mxu0 %v373
      %405 = vmatpush.bf16.msra.mxu0 %v372
      %406 = vmatpush.bf16.msra.mxu0 %v371
      %407 = vmatpush.bf16.msra.mxu0 %v370
      %408 = vmatpush.bf16.msra.mxu0 %v369
      %409 = vmatmul.bf16.gmra.mxu0 %v301
      %v410 = vpop.f32.mrf.mxu0
      %v411 = vadd.f32 0.0, %v410
      %v412 = vpop.f32.mrf.mxu0
      %413 = vdwg.mxu0
      %414 = vmatpush.bf16.msra.mxu0 %v384
      %415 = vmatpush.bf16.msra.mxu0 %v383
      %416 = vmatpush.bf16.msra.mxu0 %v382
      %417 = vmatpush.bf16.msra.mxu0 %v381
      %418 = vmatpush.bf16.msra.mxu0 %v380
      %419 = vmatpush.bf16.msra.mxu0 %v379
      %420 = vmatpush.bf16.msra.mxu0 %v378
      %421 = vmatpush.bf16.msra.mxu0 %v377
      %422 = vmatmul.bf16.gmra.mxu0 %v302
      %v423 = vpop.f32.mrf.mxu0
      %v424 = vadd.f32 %v411, %v423
      %v425 = vpop.f32.mrf.mxu0
      %426 = vdwg.mxu0
      %v427 = vadd.f32 %v264, %v424
      %428 = vst [vmem:[#allocation2] sm:$0xff] %v427
      %p429 = scmp.eq.s32.totalorder %s21, 2
      // Predicated region
      $region37: #{_lambda_.12} parent=31 // pred_check
        %p430 = pneg %p429
      $region38: #{_lambda_.12} parent=31 // pred_check_branch
        %432 = sbr.rel (%p430) target = $region40
      $region39: #{_lambda_.12} parent=31 // pred_region
        %v433 = vld [vmem:[#allocation2] sm:$0xff]
        %v434 = vld [vmem:[%s251] sm:$0x1]
        %v436 = vperm.slane %v434, 0
        %v438 = vadd.f32 %v433, %v436
        %v439 = vpack.c.bf16 %v438, %v438
        %440 = vst [vmem:[%s258] sm:$0xf] %v439
      $region40: #{_lambda_.12} parent=31 // pred_fallthru
        _
      %p441 = scmp.lt.s32.totalorder %s19, 0
      %s442 = scalar_select %p441, %s19, 0
      %p443 = scmp.lt.s32.totalorder %s20, 0
      %s444 = scalar_select %p443, %s20, 0
      %s445 = sadd.s32 %s444, %s442
      %s446 = smul.addr %s445, 4
      %s447 = scalar_lea.vmem %s3, %s446
      // Predicated region
      $region41: #{_lambda_.12} parent=31 // pred_check
        %p448 = pneg %p135
      $region42: #{_lambda_.12} parent=31 // pred_check_branch
        %450 = sbr.rel (%p448) target = $region44
      $region43: #{_lambda_.12} parent=31 // pred_region
        _
      $region44: #{_lambda_.12} parent=31 // pred_fallthru
        _
      // Predicated region
      $region45: #{_lambda_.12} parent=31 // pred_check
        %p451 = pneg %p135
      $region46: #{_lambda_.12} parent=31 // pred_check_branch
        %453 = sbr.rel (%p451) target = $region48
      $region47: #{_lambda_.12} parent=31 // pred_region
        %p454 = scmp.lt.s32.totalorder %s19, 0
        %s455 = scalar_select %p454, %s19, 0
        %p456 = scmp.lt.s32.totalorder %s20, 0
        %s457 = scalar_select %p456, %s20, 0
        %s458 = sadd.s32 %s457, %s455
        %s459 = smul.addr %s458, 4
        %s460 = scalar_lea.vmem %s3, %s459
      $region48: #{_lambda_.12} parent=31 // pred_fallthru
        _
    $region32: #{_lambda_.12} parent=5 // pred_fallthru
      _
    %p461 = scmp.le.s32.totalorder 2, %s9
    // Predicated region
    $region49: #{_lambda_.12} parent=5 // pred_check
      %p462 = pneg %p461
    $region50: #{_lambda_.12} parent=5 // pred_check_branch
      %464 = sbr.rel (%p462) target = $region52
    $region51: #{_lambda_.12} parent=5 // pred_region
      %s465 = ssub.s32 %s9, 2
    $region52: #{_lambda_.12} parent=5 // pred_fallthru
      _
  $region6: #{_lambda_.12} parent=0 // loop_footer
    %s13 = sadd.s32 1, %s9
  $region7: #{_lambda_.12} parent=0 // loop_footer_branch
    %8 = sbr.rel target = $region3
  $region8: #{_lambda_.12} parent=0 // loop_exit
    _

// kernel: _lambda_.14
$region0: #{_lambda_.14}
  #allocation0 [shape = 'u32[]', space=smem, size = 0x4, offset = 0x4, fixed_abs, tag = 'smem constant byte address 0x4 - core index']
  #allocation1 [shape = 'u32[72,128]{1,0:T(1,128)}', space=vmem, size = 0x9000, scoped, tag = 'internal scratch']
  #allocation2 [shape = 'f32[10,384]{1,0:T(8,128)}', space=vmem, size = 0x6000, scoped, tag = 'scratch operand']
  %s0 = inlined_call_operand.vmem [shape: bf16[10,128], index: 0, kind: input, shape index: {}]
  %s1 = inlined_call_operand.vmem [shape: bf16[128,384], index: 1, kind: input, shape index: {}]
  %s2 = inlined_call_operand.vmem [shape: f32[1,384], index: 2, kind: input, shape index: {}]
  %s3 = inlined_call_operand.vmem [shape: bf16[10,384], index: 3, kind: output, shape index: {}]
  %s4 = sld [smem:[#allocation0]]
  $region30: #{_lambda_.14} parent=0
    _
  %s6 = ssub.s32 1, %s4
  %s7 = scalar_select 0, %s6, %s4
  // Predicated region
  $region2: #{_lambda_.14} parent=0 // pred_check
    _
  $region3: #{_lambda_.14} parent=0 // pred_check_branch
    %9 = sbr.rel (0) target = $region5
  $region4: #{_lambda_.14} parent=0 // pred_region
    _
  $region5: #{_lambda_.14} parent=0 // pred_fallthru
    _
  // Predicated region
  $region6: #{_lambda_.14} parent=0 // pred_check
    _
  $region7: #{_lambda_.14} parent=0 // pred_check_branch
    %11 = sbr.rel (0) target = $region9
  $region8: #{_lambda_.14} parent=0 // pred_region
    _
  $region9: #{_lambda_.14} parent=0 // pred_fallthru
    _
  // Predicated region
  $region10: #{_lambda_.14} parent=0 // pred_check
    _
  $region11: #{_lambda_.14} parent=0 // pred_check_branch
    %13 = sbr.rel (0) target = $region13
  $region12: #{_lambda_.14} parent=0 // pred_region
    _
  $region13: #{_lambda_.14} parent=0 // pred_fallthru
    _
  %p14 = scmp.eq.s32.totalorder 0, 0
  // Predicated region
  $region14: #{_lambda_.14} parent=0 // pred_check
    %p15 = pneg %p14
  $region15: #{_lambda_.14} parent=0 // pred_check_branch
    %17 = sbr.rel (%p15) target = $region17
  $region16: #{_lambda_.14} parent=0 // pred_region
    %18 = vst [vmem:[#allocation2] sm:$0xff] 0.0
    %19 = vst [vmem:[#allocation2 + $0x8] sm:$0xff] 0.0
    %20 = vst [vmem:[#allocation2 + $0x10] sm:$0xff] 0.0
    %21 = vst [vmem:[#allocation2 + $0x18] sm:$0x3] 0.0
    %22 = vst [vmem:[#allocation2 + $0x20] sm:$0x3] 0.0
    %23 = vst [vmem:[#allocation2 + $0x28] sm:$0x3] 0.0
  $region17: #{_lambda_.14} parent=0 // pred_fallthru
    _
  %v24 = vld [vmem:[#allocation2] sm:$0xff]
  %v25 = vld [vmem:[#allocation2 + $0x8] sm:$0xff]
  %v26 = vld [vmem:[#allocation2 + $0x10] sm:$0xff]
  %v27 = vld [vmem:[#allocation2 + $0x18] sm:$0x3]
  %v28 = vld [vmem:[#allocation2 + $0x20] sm:$0x3]
  %v29 = vld [vmem:[#allocation2 + $0x28] sm:$0x3]
  %v30 = vld [vmem:[%s0] sm:$0xf]
  %v31 = vld [vmem:[%s0 + $0x4] sm:$0x1]
  %v32 = vld [vmem:[%s1] sm:$0xff]
  %v33 = vld [vmem:[%s1 + $0x8] sm:$0xf]
  %v34 = vld [vmem:[%s1 + $0xc] sm:$0xff]
  %v35 = vld [vmem:[%s1 + $0x14] sm:$0xf]
  %v36 = vld [vmem:[%s1 + $0x18] sm:$0xff]
  %v37 = vld [vmem:[%s1 + $0x20] sm:$0xf]
  %v38 = vld [vmem:[%s1 + $0x24] sm:$0xff]
  %v39 = vld [vmem:[%s1 + $0x2c] sm:$0xf]
  %v40 = vld [vmem:[%s1 + $0x30] sm:$0xff]
  %v41 = vld [vmem:[%s1 + $0x38] sm:$0xf]
  %v42 = vld [vmem:[%s1 + $0x3c] sm:$0xff]
  %v43 = vld [vmem:[%s1 + $0x44] sm:$0xf]
  %v44 = vld [vmem:[%s1 + $0x48] sm:$0xff]
  %v45 = vld [vmem:[%s1 + $0x50] sm:$0xf]
  %v46 = vld [vmem:[%s1 + $0x54] sm:$0xff]
  %v47 = vld [vmem:[%s1 + $0x5c] sm:$0xf]
  %v48 = vld [vmem:[%s1 + $0x60] sm:$0xff]
  %v49 = vld [vmem:[%s1 + $0x68] sm:$0xf]
  %v50 = vld [vmem:[%s1 + $0x6c] sm:$0xff]
  %v51 = vld [vmem:[%s1 + $0x74] sm:$0xf]
  %v52 = vld [vmem:[%s1 + $0x78] sm:$0xff]
  %v53 = vld [vmem:[%s1 + $0x80] sm:$0xf]
  %v54 = vld [vmem:[%s1 + $0x84] sm:$0xff]
  %v55 = vld [vmem:[%s1 + $0x8c] sm:$0xf]
  %v56 = vld [vmem:[%s1 + $0x90] sm:$0xff]
  %v57 = vld [vmem:[%s1 + $0x98] sm:$0xf]
  %v58 = vld [vmem:[%s1 + $0x9c] sm:$0xff]
  %v59 = vld [vmem:[%s1 + $0xa4] sm:$0xf]
  %v60 = vld [vmem:[%s1 + $0xa8] sm:$0xff]
  %v61 = vld [vmem:[%s1 + $0xb0] sm:$0xf]
  %v62 = vld [vmem:[%s1 + $0xb4] sm:$0xff]
  %v63 = vld [vmem:[%s1 + $0xbc] sm:$0xf]
  %v66 = vunpack.c.l.b16 %v30
  %v67 = vunpack.c.l.b16 %v31
  %v68 = vpack.c.b16 %v67, %v66
  %v102 = vunpack.c.l.b16 %v32
  %v103 = vunpack.c.h.b16 %v32
  %v104 = vunpack.c.l.b16 %v33
  %v105 = vunpack.c.l.b16 %v34
  %v106 = vunpack.c.h.b16 %v34
  %v107 = vunpack.c.l.b16 %v35
  %v108 = vunpack.c.l.b16 %v36
  %v109 = vunpack.c.h.b16 %v36
  %v110 = vunpack.c.l.b16 %v37
  %v111 = vunpack.c.l.b16 %v38
  %v112 = vunpack.c.h.b16 %v38
  %v113 = vunpack.c.l.b16 %v39
  %v114 = vunpack.c.l.b16 %v40
  %v115 = vunpack.c.h.b16 %v40
  %v116 = vunpack.c.l.b16 %v41
  %v117 = vunpack.c.l.b16 %v42
  %v118 = vunpack.c.h.b16 %v42
  %v119 = vunpack.c.l.b16 %v43
  %v120 = vunpack.c.l.b16 %v44
  %v121 = vunpack.c.h.b16 %v44
  %v122 = vunpack.c.l.b16 %v45
  %v123 = vunpack.c.l.b16 %v46
  %v124 = vunpack.c.h.b16 %v46
  %v125 = vunpack.c.l.b16 %v47
  %v126 = vunpack.c.l.b16 %v48
  %v127 = vunpack.c.h.b16 %v48
  %v128 = vunpack.c.l.b16 %v49
  %v129 = vunpack.c.l.b16 %v50
  %v130 = vunpack.c.h.b16 %v50
  %v131 = vunpack.c.l.b16 %v51
  %v132 = vunpack.c.l.b16 %v52
  %v133 = vunpack.c.h.b16 %v52
  %v134 = vunpack.c.l.b16 %v53
  %v135 = vunpack.c.l.b16 %v54
  %v136 = vunpack.c.h.b16 %v54
  %v137 = vunpack.c.l.b16 %v55
  %v138 = vunpack.c.l.b16 %v56
  %v139 = vunpack.c.h.b16 %v56
  %v140 = vunpack.c.l.b16 %v57
  %v141 = vunpack.c.l.b16 %v58
  %v142 = vunpack.c.h.b16 %v58
  %v143 = vunpack.c.l.b16 %v59
  %v144 = vunpack.c.l.b16 %v60
  %v145 = vunpack.c.h.b16 %v60
  %v146 = vunpack.c.l.b16 %v61
  %v147 = vunpack.c.l.b16 %v62
  %v148 = vunpack.c.h.b16 %v62
  %v149 = vunpack.c.l.b16 %v63
  %v150 = vpack.c.b16 %v105, %v102
  %v151 = vpack.c.b16 %v106, %v103
  %v152 = vpack.c.b16 %v107, %v104
  %v153 = vpack.c.b16 %v111, %v108
  %v154 = vpack.c.b16 %v112, %v109
  %v155 = vpack.c.b16 %v113, %v110
  %v156 = vpack.c.b16 %v117, %v114
  %v157 = vpack.c.b16 %v118, %v115
  %v158 = vpack.c.b16 %v119, %v116
  %v159 = vpack.c.b16 %v123, %v120
  %v160 = vpack.c.b16 %v124, %v121
  %v161 = vpack.c.b16 %v125, %v122
  %v162 = vpack.c.b16 %v129, %v126
  %v163 = vpack.c.b16 %v130, %v127
  %v164 = vpack.c.b16 %v131, %v128
  %v165 = vpack.c.b16 %v135, %v132
  %v166 = vpack.c.b16 %v136, %v133
  %v167 = vpack.c.b16 %v137, %v134
  %v168 = vpack.c.b16 %v141, %v138
  %v169 = vpack.c.b16 %v142, %v139
  %v170 = vpack.c.b16 %v143, %v140
  %v171 = vpack.c.b16 %v147, %v144
  %v172 = vpack.c.b16 %v148, %v145
  %v173 = vpack.c.b16 %v149, %v146
  %198 = vmatpush.bf16.msra.mxu0 %v171
  %199 = vmatpush.bf16.msra.mxu0 %v168
  %200 = vmatpush.bf16.msra.mxu0 %v165
  %201 = vmatpush.bf16.msra.mxu0 %v162
  %202 = vmatpush.bf16.msra.mxu0 %v159
  %203 = vmatpush.bf16.msra.mxu0 %v156
  %204 = vmatpush.bf16.msra.mxu0 %v153
  %205 = vmatpush.bf16.msra.mxu0 %v150
  %206 = vmatmul.bf16.gmra.mxu0 %v68
  %v207 = vpop.f32.mrf.mxu0
  %v208 = vadd.f32 0.0, %v207
  %v209 = vpop.f32.mrf.mxu0
  %v210 = vadd.f32 0.0, %v209
  %211 = vdwg.mxu0
  %212 = vmatpush.bf16.msra.mxu0 %v172
  %213 = vmatpush.bf16.msra.mxu0 %v169
  %214 = vmatpush.bf16.msra.mxu0 %v166
  %215 = vmatpush.bf16.msra.mxu0 %v163
  %216 = vmatpush.bf16.msra.mxu0 %v160
  %217 = vmatpush.bf16.msra.mxu0 %v157
  %218 = vmatpush.bf16.msra.mxu0 %v154
  %219 = vmatpush.bf16.msra.mxu0 %v151
  %220 = vmatmul.bf16.gmra.mxu0 %v68
  %v221 = vpop.f32.mrf.mxu0
  %v222 = vadd.f32 0.0, %v221
  %v223 = vpop.f32.mrf.mxu0
  %v224 = vadd.f32 0.0, %v223
  %225 = vdwg.mxu0
  %226 = vmatpush.bf16.msra.mxu0 %v173
  %227 = vmatpush.bf16.msra.mxu0 %v170
  %228 = vmatpush.bf16.msra.mxu0 %v167
  %229 = vmatpush.bf16.msra.mxu0 %v164
  %230 = vmatpush.bf16.msra.mxu0 %v161
  %231 = vmatpush.bf16.msra.mxu0 %v158
  %232 = vmatpush.bf16.msra.mxu0 %v155
  %233 = vmatpush.bf16.msra.mxu0 %v152
  %234 = vmatmul.bf16.gmra.mxu0 %v68
  %v235 = vpop.f32.mrf.mxu0
  %v236 = vadd.f32 0.0, %v235
  %v237 = vpop.f32.mrf.mxu0
  %v238 = vadd.f32 0.0, %v237
  %239 = vdwg.mxu0
  %v240 = vadd.f32 %v24, %v208
  %v241 = vadd.f32 %v25, %v222
  %v242 = vadd.f32 %v26, %v236
  %v243 = vadd.f32 %v27, %v210
  %v244 = vadd.f32 %v28, %v224
  %v245 = vadd.f32 %v29, %v238
  %246 = vst [vmem:[#allocation2] sm:$0xff] %v240
  %247 = vst [vmem:[#allocation2 + $0x8] sm:$0xff] %v241
  %248 = vst [vmem:[#allocation2 + $0x10] sm:$0xff] %v242
  %249 = vst [vmem:[#allocation2 + $0x18] sm:$0x3] %v243
  %250 = vst [vmem:[#allocation2 + $0x20] sm:$0x3] %v244
  %251 = vst [vmem:[#allocation2 + $0x28] sm:$0x3] %v245
  // Predicated region
  $region18: #{_lambda_.14} parent=0 // pred_check
    %p252 = pneg %p14
  $region19: #{_lambda_.14} parent=0 // pred_check_branch
    %254 = sbr.rel (%p252) target = $region21
  $region20: #{_lambda_.14} parent=0 // pred_region
    %v255 = vld [vmem:[#allocation2] sm:$0xff]
    %v256 = vld [vmem:[#allocation2 + $0x8] sm:$0xff]
    %v257 = vld [vmem:[#allocation2 + $0x10] sm:$0xff]
    %v258 = vld [vmem:[#allocation2 + $0x18] sm:$0x3]
    %v259 = vld [vmem:[#allocation2 + $0x20] sm:$0x3]
    %v260 = vld [vmem:[#allocation2 + $0x28] sm:$0x3]
    %v261 = vld [vmem:[%s2] sm:$0x7]
    %v263 = vperm.slane %v261, 0
    %v264 = vperm.slane %v261, 1
    %v265 = vperm.slane %v261, 2
    %v269 = vadd.f32 %v255, %v263
    %v270 = vadd.f32 %v256, %v264
    %v271 = vadd.f32 %v257, %v265
    %v272 = vadd.f32 %v258, %v263
    %v273 = vadd.f32 %v259, %v264
    %v274 = vadd.f32 %v260, %v265
    %v275 = vpack.c.bf16 %v270, %v269
    %v276 = vpack.c.bf16 %v271, %v271
    %v277 = vpack.c.bf16 %v273, %v272
    %v278 = vpack.c.bf16 %v274, %v274
    %279 = vst [vmem:[%s3] sm:$0xff] %v275
    %280 = vst [vmem:[%s3 + $0x8] sm:$0xf] %v276
    %281 = vst [vmem:[%s3 + $0xc] sm:$0x11] %v277
    %282 = vst [vmem:[%s3 + $0x14] sm:$0x1] %v278
  $region21: #{_lambda_.14} parent=0 // pred_fallthru
    _
  // Predicated region
  $region22: #{_lambda_.14} parent=0 // pred_check
    _
  $region23: #{_lambda_.14} parent=0 // pred_check_branch
    %284 = sbr.rel (0) target = $region25
  $region24: #{_lambda_.14} parent=0 // pred_region
    _
  $region25: #{_lambda_.14} parent=0 // pred_fallthru
    _
  // Predicated region
  $region26: #{_lambda_.14} parent=0 // pred_check
    _
  $region27: #{_lambda_.14} parent=0 // pred_check_branch
    %286 = sbr.rel (0) target = $region29
  $region28: #{_lambda_.14} parent=0 // pred_region
    _
  $region29: #{_lambda_.14} parent=0 // pred_fallthru
    _

// kernel: _lambda_.15
$region0: #{_lambda_.15}
  #allocation0 [shape = 'u32[]', space=smem, size = 0x4, offset = 0x4, fixed_abs, tag = 'smem constant byte address 0x4 - core index']
  #allocation1 [shape = 'u32[72,128]{1,0:T(1,128)}', space=vmem, size = 0x9000, scoped, tag = 'internal scratch']
  #allocation2 [shape = 'f32[4,5,1]{2,1,0:T(8,128)}', space=vmem, size = 0x4000, scoped, tag = 'scratch operand']
  #allocation3 [shape = 'f32[4,5,1]{2,1,0:T(8,128)}', space=vmem, size = 0x4000, scoped, tag = 'scratch operand']
  #allocation4 [shape = 'f32[4,5,32]{2,1,0:T(8,128)}', space=vmem, size = 0x4000, scoped, tag = 'scratch operand']
  %s0 = inlined_call_operand.vmem [shape: bf16[2,5,384], index: 0, kind: input, shape index: {}, may-alias: {0,1,2}]
  %s1 = inlined_call_operand.vmem [shape: bf16[2,5,384], index: 1, kind: input, shape index: {}, may-alias: {0,1,2}]
  %s2 = inlined_call_operand.vmem [shape: bf16[2,5,384], index: 2, kind: input, shape index: {}, may-alias: {0,1,2}]
  %s3 = inlined_call_operand.vmem [shape: bf16[2,5,128], index: 3, kind: output, shape index: {}]
  %s4 = sld [smem:[#allocation0]]
  $region53: #{_lambda_.15} parent=0
    _
  %s6 = ssub.s32 1, %s4
  %s7 = scalar_select 0, %s6, %s4
  loop: start=0, step=1, limit=4
  $region2: #{_lambda_.15} parent=0 // loop_pre_header
    _
  $region3: #{_lambda_.15} parent=0 // loop_header
    %s9 = sphi 0, %s13
    %p10 = scmp.ge.s32.totalorder %s9, 4
    %s16 = sphi 0, %s42
    %s17 = sphi 0, %s38
    %s18 = sphi 0, %s34
    %s19 = sphi 0, %s30
    %s20 = sphi 0, %s16
    %s21 = sphi 0, %s17
    %s22 = sphi 0, %s18
    %s23 = sphi 0, %s19
    %s24 = sphi 0, %s20
    %s25 = sphi 0, %s21
    %s26 = sphi 0, %s22
    %s27 = sphi 0, %s23
    %s49 = sphi 0, %s51
    %s52 = sphi 0, %s49
    %s53 = sphi 0, %s52
    %s69 = sphi 0, %s53
    %s81 = sphi 0, %s83
    %s84 = sphi 0, %s81
    %s85 = sphi 0, %s84
    %s101 = sphi 0, %s85
    %s113 = sphi 0, %s115
    %s116 = sphi 0, %s113
    %s117 = sphi 0, %s116
    %s133 = sphi 0, %s117
    %s143 = sphi 0, %s145
    %s146 = sphi 0, %s143
    %s147 = sphi 0, %s146
    %s163 = sphi 0, %s147
  $region4: #{_lambda_.15} parent=0 // loop_header_branch
    %12 = sbr.rel (%p10) target = $region8
  $region5: #{_lambda_.15} parent=0 // loop_body
    %s14 = ssub.s32 %s9, 1
    %s15 = ssub.s32 %s9, 2
    %s28 = sadd.s32 1, %s19
    %p29 = scmp.ge.s32.totalorder %s28, 1
    %s30 = scalar_select %p29, 0, %s28
    %s31 = sadd.s32 1, %s18
    %s32 = scalar_select %p29, %s31, %s18
    %p33 = scmp.ge.s32.totalorder %s32, 1
    %s34 = scalar_select %p33, 0, %s32
    %s35 = sadd.s32 1, %s17
    %s36 = scalar_select %p33, %s35, %s17
    %p37 = scmp.ge.s32.totalorder %s36, 1
    %s38 = scalar_select %p37, 0, %s36
    %s39 = sadd.s32 1, %s16
    %s40 = scalar_select %p37, %s39, %s16
    %p41 = scmp.ge.s32.totalorder %s40, 2
    %s42 = scalar_select %p41, 0, %s40
    %s43 = ssub.s32 %s16, %s42
    %s44 = ssub.s32 %s18, %s34
    %s45 = sor.u32 %s43, %s44
    %s46 = ssub.s32 %s17, %s38
    %s47 = sor.u32 %s45, %s46
    %p48 = scmp.eq.s32.totalorder %s47, 0
    %s50 = sadd.s32 %s49, 1
    %s51 = scalar_select %p48, %s49, %s50
    %p54 = pneg %p48
    %p55 = scmp.eq.s32.totalorder %s9, 1
    %p56 = por %p54, %p55
    %p57 = scmp.ne.s32.totalorder %s49, %s52
    %p58 = scmp.eq.s32.totalorder %s9, 0
    %p59 = por %p57, %p58
    %p60 = scmp.ne.s32.totalorder %s49, %s52
    %p61 = scmp.eq.s32.totalorder %s14, 1
    %p62 = por %p60, %p61
    %p63 = scmp.ne.s32.totalorder %s52, %s53
    %p64 = scmp.eq.s32.totalorder %s14, 0
    %p65 = por %p63, %p64
    %p66 = scmp.ne.s32.totalorder %s52, %s53
    %p67 = scmp.eq.s32.totalorder %s15, 1
    %p68 = por %p66, %p67
    %p70 = scmp.ne.s32.totalorder %s53, %s69
    %p71 = scmp.eq.s32.totalorder %s15, 0
    %p72 = por %p70, %p71
    %s73 = sadd.s32 %s17, 1
    %s74 = sadd.s32 %s38, 1
    %s75 = ssub.s32 %s16, %s42
    %s76 = ssub.s32 %s19, %s30
    %s77 = sor.u32 %s75, %s76
    %s78 = ssub.s32 %s73, %s74
    %s79 = sor.u32 %s77, %s78
    %p80 = scmp.eq.s32.totalorder %s79, 0
    %s82 = sadd.s32 %s81, 1
    %s83 = scalar_select %p80, %s81, %s82
    %p86 = pneg %p80
    %p87 = scmp.eq.s32.totalorder %s9, 1
    %p88 = por %p86, %p87
    %p89 = scmp.ne.s32.totalorder %s81, %s84
    %p90 = scmp.eq.s32.totalorder %s9, 0
    %p91 = por %p89, %p90
    %p92 = scmp.ne.s32.totalorder %s81, %s84
    %p93 = scmp.eq.s32.totalorder %s14, 1
    %p94 = por %p92, %p93
    %p95 = scmp.ne.s32.totalorder %s84, %s85
    %p96 = scmp.eq.s32.totalorder %s14, 0
    %p97 = por %p95, %p96
    %p98 = scmp.ne.s32.totalorder %s84, %s85
    %p99 = scmp.eq.s32.totalorder %s15, 1
    %p100 = por %p98, %p99
    %p102 = scmp.ne.s32.totalorder %s85, %s101
    %p103 = scmp.eq.s32.totalorder %s15, 0
    %p104 = por %p102, %p103
    %s105 = sadd.s32 %s17, 2
    %s106 = sadd.s32 %s38, 2
    %s107 = ssub.s32 %s16, %s42
    %s108 = ssub.s32 %s19, %s30
    %s109 = sor.u32 %s107, %s108
    %s110 = ssub.s32 %s105, %s106
    %s111 = sor.u32 %s109, %s110
    %p112 = scmp.eq.s32.totalorder %s111, 0
    %s114 = sadd.s32 %s113, 1
    %s115 = scalar_select %p112, %s113, %s114
    %p118 = pneg %p112
    %p119 = scmp.eq.s32.totalorder %s9, 1
    %p120 = por %p118, %p119
    %p121 = scmp.ne.s32.totalorder %s113, %s116
    %p122 = scmp.eq.s32.totalorder %s9, 0
    %p123 = por %p121, %p122
    %p124 = scmp.ne.s32.totalorder %s113, %s116
    %p125 = scmp.eq.s32.totalorder %s14, 1
    %p126 = por %p124, %p125
    %p127 = scmp.ne.s32.totalorder %s116, %s117
    %p128 = scmp.eq.s32.totalorder %s14, 0
    %p129 = por %p127, %p128
    %p130 = scmp.ne.s32.totalorder %s116, %s117
    %p131 = scmp.eq.s32.totalorder %s15, 1
    %p132 = por %p130, %p131
    %p134 = scmp.ne.s32.totalorder %s117, %s133
    %p135 = scmp.eq.s32.totalorder %s15, 0
    %p136 = por %p134, %p135
    %s137 = ssub.s32 %s16, %s42
    %s138 = ssub.s32 %s18, %s34
    %s139 = sor.u32 %s137, %s138
    %s140 = ssub.s32 %s17, %s38
    %s141 = sor.u32 %s139, %s140
    %p142 = scmp.eq.s32.totalorder %s141, 0
    %s144 = sadd.s32 %s143, 1
    %s145 = scalar_select %p142, %s143, %s144
    %p148 = pneg %p142
    %p149 = scmp.eq.s32.totalorder %s9, 1
    %p150 = por %p148, %p149
    %p151 = scmp.ne.s32.totalorder %s143, %s146
    %p152 = scmp.eq.s32.totalorder %s9, 0
    %p153 = por %p151, %p152
    %p154 = scmp.ne.s32.totalorder %s143, %s146
    %p155 = scmp.eq.s32.totalorder %s14, 1
    %p156 = por %p154, %p155
    %p157 = scmp.ne.s32.totalorder %s146, %s147
    %p158 = scmp.eq.s32.totalorder %s14, 0
    %p159 = por %p157, %p158
    %p160 = scmp.ne.s32.totalorder %s146, %s147
    %p161 = scmp.eq.s32.totalorder %s15, 1
    %p162 = por %p160, %p161
    %p164 = scmp.ne.s32.totalorder %s147, %s163
    %p165 = scmp.eq.s32.totalorder %s15, 0
    %p166 = por %p164, %p165
    %p167 = scmp.le.s32.totalorder 1, %s9
    %p168 = scmp.lt.s32.totalorder %s9, 3
    %p169 = pnand %p167, %p168
    %p170 = pneg %p169
    // Predicated region
    $region9: #{_lambda_.15} parent=5 // pred_check
      _
    $region10: #{_lambda_.15} parent=5 // pred_check_branch
      %172 = sbr.rel (%p169) target = $region12
    $region11: #{_lambda_.15} parent=5 // pred_region
      %s173 = ssub.s32 %s9, 1
    $region12: #{_lambda_.15} parent=5 // pred_fallthru
      _
    %p174 = scmp.lt.s32.totalorder %s9, 2
    // Predicated region
    $region13: #{_lambda_.15} parent=5 // pred_check
      %p175 = pneg %p174
    $region14: #{_lambda_.15} parent=5 // pred_check_branch
      %177 = sbr.rel (%p175) target = $region16
    $region15: #{_lambda_.15} parent=5 // pred_region
      // Predicated region
      $region17: #{_lambda_.15} parent=15 // pred_check
        %p178 = pneg %p59
      $region18: #{_lambda_.15} parent=15 // pred_check_branch
        %180 = sbr.rel (%p178) target = $region20
      $region19: #{_lambda_.15} parent=15 // pred_region
        %p181 = scmp.lt.s32.totalorder %s16, 1
        %s182 = scalar_select %p181, %s16, 1
        %p183 = scmp.lt.s32.totalorder %s18, 0
        %s184 = scalar_select %p183, %s18, 0
        %p185 = scmp.lt.s32.totalorder %s17, 2
        %s186 = scalar_select %p185, %s17, 2
        %s187 = smul.addr %s184, 3
        %s188 = sadd.s32 %s186, %s187
        %s189 = smul.addr %s182, 3
        %s190 = sadd.s32 %s188, %s189
        %s191 = smul.addr %s190, 4
        %s192 = scalar_lea.vmem %s0, %s191
      $region20: #{_lambda_.15} parent=15 // pred_fallthru
        _
      // Predicated region
      $region21: #{_lambda_.15} parent=15 // pred_check
        %p193 = pneg %p91
      $region22: #{_lambda_.15} parent=15 // pred_check_branch
        %195 = sbr.rel (%p193) target = $region24
      $region23: #{_lambda_.15} parent=15 // pred_region
        %s196 = sadd.s32 %s17, 1
        %p197 = scmp.lt.s32.totalorder %s16, 1
        %s198 = scalar_select %p197, %s16, 1
        %p199 = scmp.lt.s32.totalorder %s19, 0
        %s200 = scalar_select %p199, %s19, 0
        %p201 = scmp.lt.s32.totalorder %s196, 2
        %s202 = scalar_select %p201, %s196, 2
        %s203 = smul.addr %s200, 3
        %s204 = sadd.s32 %s202, %s203
        %s205 = smul.addr %s198, 3
        %s206 = sadd.s32 %s204, %s205
        %s207 = smul.addr %s206, 4
        %s208 = scalar_lea.vmem %s1, %s207
        %s209 = sadd.s32 %s17, 1
      $region24: #{_lambda_.15} parent=15 // pred_fallthru
        _
      // Predicated region
      $region25: #{_lambda_.15} parent=15 // pred_check
        %p210 = pneg %p123
      $region26: #{_lambda_.15} parent=15 // pred_check_branch
        %212 = sbr.rel (%p210) target = $region28
      $region27: #{_lambda_.15} parent=15 // pred_region
        %s213 = sadd.s32 %s17, 2
        %p214 = scmp.lt.s32.totalorder %s16, 1
        %s215 = scalar_select %p214, %s16, 1
        %p216 = scmp.lt.s32.totalorder %s19, 0
        %s217 = scalar_select %p216, %s19, 0
        %p218 = scmp.lt.s32.totalorder %s213, 2
        %s219 = scalar_select %p218, %s213, 2
        %s220 = smul.addr %s217, 3
        %s221 = sadd.s32 %s219, %s220
        %s222 = smul.addr %s215, 3
        %s223 = sadd.s32 %s221, %s222
        %s224 = smul.addr %s223, 4
        %s225 = scalar_lea.vmem %s2, %s224
        %s226 = sadd.s32 %s17, 2
      $region28: #{_lambda_.15} parent=15 // pred_fallthru
        _
    $region16: #{_lambda_.15} parent=5 // pred_fallthru
      _
    %p227 = scmp.le.s32.totalorder 1, %s9
    %p228 = scmp.lt.s32.totalorder %s9, 3
    %p229 = pnand %p227, %p228
    %p230 = pneg %p229
    // Predicated region
    $region29: #{_lambda_.15} parent=5 // pred_check
      _
    $region30: #{_lambda_.15} parent=5 // pred_check_branch
      %232 = sbr.rel (%p229) target = $region32
    $region31: #{_lambda_.15} parent=5 // pred_region
      %s233 = ssub.s32 %s9, 1
      %p234 = scmp.lt.s32.totalorder %s20, 1
      %s235 = scalar_select %p234, %s20, 1
      %p236 = scmp.lt.s32.totalorder %s22, 0
      %s237 = scalar_select %p236, %s22, 0
      %p238 = scmp.lt.s32.totalorder %s21, 2
      %s239 = scalar_select %p238, %s21, 2
      %s240 = smul.addr %s237, 3
      %s241 = sadd.s32 %s239, %s240
      %s242 = smul.addr %s235, 3
      %s243 = sadd.s32 %s241, %s242
      %s244 = smul.addr %s243, 4
      %s245 = scalar_lea.vmem %s0, %s244
      %p246 = pneg %p65
      %p247 = pneg %p62
      %s248 = sadd.s32 %s21, 1
      %p249 = scmp.lt.s32.totalorder %s20, 1
      %s250 = scalar_select %p249, %s20, 1
      %p251 = scmp.lt.s32.totalorder %s23, 0
      %s252 = scalar_select %p251, %s23, 0
      %p253 = scmp.lt.s32.totalorder %s248, 2
      %s254 = scalar_select %p253, %s248, 2
      %s255 = smul.addr %s252, 3
      %s256 = sadd.s32 %s254, %s255
      %s257 = smul.addr %s250, 3
      %s258 = sadd.s32 %s256, %s257
      %s259 = smul.addr %s258, 4
      %s260 = scalar_lea.vmem %s1, %s259
      %p261 = pneg %p97
      %p262 = pneg %p94
      %s263 = sadd.s32 %s21, 2
      %p264 = scmp.lt.s32.totalorder %s20, 1
      %s265 = scalar_select %p264, %s20, 1
      %p266 = scmp.lt.s32.totalorder %s23, 0
      %s267 = scalar_select %p266, %s23, 0
      %p268 = scmp.lt.s32.totalorder %s263, 2
      %s269 = scalar_select %p268, %s263, 2
      %s270 = smul.addr %s267, 3
      %s271 = sadd.s32 %s269, %s270
      %s272 = smul.addr %s265, 3
      %s273 = sadd.s32 %s271, %s272
      %s274 = smul.addr %s273, 4
      %s275 = scalar_lea.vmem %s2, %s274
      %p276 = pneg %p129
      %p277 = pneg %p126
      %p278 = pneg %p159
      %p279 = pneg %p156
      %p280 = scmp.lt.s32.totalorder %s20, 1
      %s281 = scalar_select %p280, %s20, 1
      %p282 = scmp.lt.s32.totalorder %s22, 0
      %s283 = scalar_select %p282, %s22, 0
      %p284 = scmp.lt.s32.totalorder %s21, 0
      %s285 = scalar_select %p284, %s21, 0
      %s286 = sadd.s32 %s285, %s283
      %s287 = sadd.s32 %s286, %s281
      %s288 = smul.addr %s287, 4
      %s289 = scalar_lea.vmem %s3, %s288
      %p290 = scmp.lt.s32.totalorder %s20, 1
      %s291 = scalar_select %p290, %s20, 1
      %p292 = scmp.lt.s32.totalorder %s22, 0
      %s293 = scalar_select %p292, %s22, 0
      %p294 = scmp.lt.s32.totalorder %s21, 2
      %s295 = scalar_select %p294, %s21, 2
      %s296 = smul.addr %s293, 3
      %s297 = sadd.s32 %s295, %s296
      %s298 = smul.addr %s291, 3
      %s299 = sadd.s32 %s297, %s298
      %s300 = smul.addr %s299, 4
      %s301 = scalar_lea.vmem %s0, %s300
      %s302 = sadd.s32 %s21, 1
      %p303 = scmp.lt.s32.totalorder %s20, 1
      %s304 = scalar_select %p303, %s20, 1
      %p305 = scmp.lt.s32.totalorder %s23, 0
      %s306 = scalar_select %p305, %s23, 0
      %p307 = scmp.lt.s32.totalorder %s302, 2
      %s308 = scalar_select %p307, %s302, 2
      %s309 = smul.addr %s306, 3
      %s310 = sadd.s32 %s308, %s309
      %s311 = smul.addr %s304, 3
      %s312 = sadd.s32 %s310, %s311
      %s313 = smul.addr %s312, 4
      %s314 = scalar_lea.vmem %s1, %s313
      %s315 = sadd.s32 %s21, 1
      %s316 = sadd.s32 %s21, 2
      %p317 = scmp.lt.s32.totalorder %s20, 1
      %s318 = scalar_select %p317, %s20, 1
      %p319 = scmp.lt.s32.totalorder %s23, 0
      %s320 = scalar_select %p319, %s23, 0
      %p321 = scmp.lt.s32.totalorder %s316, 2
      %s322 = scalar_select %p321, %s316, 2
      %s323 = smul.addr %s320, 3
      %s324 = sadd.s32 %s322, %s323
      %s325 = smul.addr %s318, 3
      %s326 = sadd.s32 %s324, %s325
      %s327 = smul.addr %s326, 4
      %s328 = scalar_lea.vmem %s2, %s327
      %s329 = sadd.s32 %s21, 2
      %p330 = scmp.lt.s32.totalorder %s20, 1
      %s331 = scalar_select %p330, %s20, 1
      %p332 = scmp.lt.s32.totalorder %s22, 0
      %s333 = scalar_select %p332, %s22, 0
      %p334 = scmp.lt.s32.totalorder %s21, 0
      %s335 = scalar_select %p334, %s21, 0
      %s336 = sadd.s32 %s335, %s333
      %s337 = sadd.s32 %s336, %s331
      %s338 = smul.addr %s337, 4
      %s339 = scalar_lea.vmem %s3, %s338
      %p341 = scmp.eq.s32.totalorder %s23, 0
      // Predicated region
      $region33: #{_lambda_.15} parent=31 // pred_check
        %p342 = pneg %p341
      $region34: #{_lambda_.15} parent=31 // pred_check_branch
        %344 = sbr.rel (%p342) target = $region36
      $region35: #{_lambda_.15} parent=31 // pred_region
        %vm345 = vcmask 4096
        %346 = vst.msk [vmem:[#allocation2] sm:$0x1f] %vm345, -inf
        %347 = vst.msk [vmem:[#allocation2 + $0x8] sm:$0x1f] %vm345, -inf
        %348 = vst.msk [vmem:[#allocation2 + $0x10] sm:$0x1f] %vm345, -inf
        %349 = vst.msk [vmem:[#allocation2 + $0x18] sm:$0x1f] %vm345, -inf
        %350 = vst.msk [vmem:[#allocation3] sm:$0x1f] %vm345, 0.0
        %351 = vst.msk [vmem:[#allocation3 + $0x8] sm:$0x1f] %vm345, 0.0
        %352 = vst.msk [vmem:[#allocation3 + $0x10] sm:$0x1f] %vm345, 0.0
        %353 = vst.msk [vmem:[#allocation3 + $0x18] sm:$0x1f] %vm345, 0.0
        %vm354 = vcmask 258048
        %355 = vst.msk [vmem:[#allocation4] sm:$0x1f] %vm354, 0.0
        %356 = vst.msk [vmem:[#allocation4 + $0x8] sm:$0x1f] %vm354, 0.0
        %357 = vst.msk [vmem:[#allocation4 + $0x10] sm:$0x1f] %vm354, 0.0
        %358 = vst.msk [vmem:[#allocation4 + $0x18] sm:$0x1f] %vm354, 0.0
      $region36: #{_lambda_.15} parent=31 // pred_fallthru
        _
      %v359 = vld [vmem:[%s301] sm:$0x7]
      %v360 = vld [vmem:[%s314] sm:$0x7]
      %v361 = vld [vmem:[%s328] sm:$0x7]
      %vm362 = vcmask 261120
      %v364 = vsel %vm362, %v359, 0
      %v367 = vsel %vm362, %v360, 0
      %369 = vmatpush.bf16.xpose.msra.mxu0 0
      %370 = vmatpush.bf16.xpose.msra.mxu0 0
      %371 = vmatpush.bf16.xpose.msra.mxu0 0
      %372 = vmatpush.bf16.xpose.msra.mxu0 0
      %373 = vmatpush.bf16.xpose.msra.mxu0 0
      %374 = vmatpush.bf16.xpose.msra.mxu0 0
      %375 = vmatpush.bf16.xpose.msra.mxu0 0
      %376 = vmatpush.bf16.xpose.msra.mxu0 %v367
      %377 = vmatmul.bf16.gmra.mxu0 %v364
      %v378 = vpop.f32.mrf.mxu0
      %v379 = vadd.f32 0.0, %v378
      %v380 = vpop.f32.mrf.mxu0
      %381 = vdwg.mxu0
      %v382 = vld [vmem:[#allocation2] sm:$0x1f]
      %vm383 = vcmask 36864
      %v384 = vsel %vm383, %v379, -inf
      %385 = vmax.xlane.f32.xlu0 %v384
      %v386 = vpop.xlane.xlu0 %385
      %v387 = vmax.f32 %v382, %v386
      %v388 = vsub.f32 %v382, %v387
      %v389 = vmul.f32 %v388, 1.442695
      %v390 = vpow.pop %v389
      %392 = vset.pattern.permute.xlu0 0
      %393 = vperm.xlu0 %392, %v387
      %v394 = vpop.permute.xlu0 %393
      %v396 = vsub.f32 %v379, %v394
      %v397 = vmul.f32 %v396, 1.442695
      %v398 = vpow.pop %v397
      %v399 = vld [vmem:[#allocation3] sm:$0x1f]
      %v400 = vmul.f32 %v390, %v399
      %v401 = vsel %vm383, %v398, 0.0
      %402 = vadd.xlane.f32.xlu0 %v401
      %v403 = vpop.xlane.xlu0 %402
      %v404 = vadd.f32 %v400, %v403
      %vm405 = vcmask 4096
      %406 = vst.msk [vmem:[#allocation3] sm:$0x1f] %vm405, %v404
      %v407 = vld [vmem:[#allocation4] sm:$0x1f]
      %409 = vset.pattern.permute.xlu0 0
      %410 = vperm.xlu0 %409, %v390
      %v411 = vpop.permute.xlu0 %410
      %v413 = vmul.f32 %v411, %v407
      %v414 = vpack.c.bf16 %v398, %v398
      %vm415 = vcmask 39936
      %v417 = vsel %vm415, %v414, 0
      %vm419 = vcmask 1041408
      %vm420 = vcmask 1042432
      %v421 = vsel %vm419, 4294967295, 65535
      %v422 = vsel %vm420, %v421, 0
      %v424 = vand.u32 %v361, %v422
      %426 = vmatpush.bf16.msra.mxu0 0
      %427 = vmatpush.bf16.msra.mxu0 0
      %428 = vmatpush.bf16.msra.mxu0 0
      %429 = vmatpush.bf16.msra.mxu0 0
      %430 = vmatpush.bf16.msra.mxu0 0
      %431 = vmatpush.bf16.msra.mxu0 0
      %432 = vmatpush.bf16.msra.mxu0 0
      %433 = vmatpush.bf16.msra.mxu0 %v424
      %434 = vmatmul.bf16.gmra.mxu0 %v417
      %v435 = vpop.f32.mrf.mxu0
      %v436 = vadd.f32 0.0, %v435
      %v437 = vpop.f32.mrf.mxu0
      %438 = vdwg.mxu0
      %v439 = vadd.f32 %v413, %v436
      %vm440 = vcmask 258048
      %441 = vst.msk [vmem:[#allocation4] sm:$0x1f] %vm440, %v439
      %442 = vst.msk [vmem:[#allocation2] sm:$0x1f] %vm405, %v387
      %v444 = vunpack.c.l.b16 %v359
      %v445 = vpack.c.b16 %v444, %v444
      %446 = vrot.lane.b32.xlu0 %v445, 96
      %v447 = vpop.permute.xlu0 %446
      %v449 = vunpack.c.l.b16 %v360
      %v450 = vpack.c.b16 %v449, %v449
      %451 = vrot.lane.b32.xlu0 %v450, 96
      %v452 = vpop.permute.xlu0 %451
      %v454 = vsel %vm362, %v447, 0
      %v457 = vsel %vm362, %v452, 0
      %459 = vmatpush.bf16.xpose.msra.mxu0 0
      %460 = vmatpush.bf16.xpose.msra.mxu0 0
      %461 = vmatpush.bf16.xpose.msra.mxu0 0
      %462 = vmatpush.bf16.xpose.msra.mxu0 0
      %463 = vmatpush.bf16.xpose.msra.mxu0 0
      %464 = vmatpush.bf16.xpose.msra.mxu0 0
      %465 = vmatpush.bf16.xpose.msra.mxu0 0
      %466 = vmatpush.bf16.xpose.msra.mxu0 %v457
      %467 = vmatmul.bf16.gmra.mxu0 %v454
      %v468 = vpop.f32.mrf.mxu0
      %v469 = vadd.f32 0.0, %v468
      %v470 = vpop.f32.mrf.mxu0
      %471 = vdwg.mxu0
      %s472 = scalar_lea.vmem [#allocation2], 8
      %v473 = vld [vmem:[%s472] sm:$0x1f]
      %v474 = vsel %vm383, %v469, -inf
      %475 = vmax.xlane.f32.xlu0 %v474
      %v476 = vpop.xlane.xlu0 %475
      %v477 = vmax.f32 %v473, %v476
      %v478 = vsub.f32 %v473, %v477
      %v479 = vmul.f32 %v478, 1.442695
      %v480 = vpow.pop %v479
      %482 = vset.pattern.permute.xlu0 0
      %483 = vperm.xlu0 %482, %v477
      %v484 = vpop.permute.xlu0 %483
      %v486 = vsub.f32 %v469, %v484
      %v487 = vmul.f32 %v486, 1.442695
      %v488 = vpow.pop %v487
      %s489 = scalar_lea.vmem [#allocation3], 8
      %v490 = vld [vmem:[%s489] sm:$0x1f]
      %v491 = vmul.f32 %v480, %v490
      %v492 = vsel %vm383, %v488, 0.0
      %493 = vadd.xlane.f32.xlu0 %v492
      %v494 = vpop.xlane.xlu0 %493
      %v495 = vadd.f32 %v491, %v494
      %496 = vst.msk [vmem:[%s489] sm:$0x1f] %vm405, %v495
      %s497 = scalar_lea.vmem [#allocation4], 8
      %v498 = vld [vmem:[%s497] sm:$0x1f]
      %500 = vset.pattern.permute.xlu0 0
      %501 = vperm.xlu0 %500, %v480
      %v502 = vpop.permute.xlu0 %501
      %v504 = vmul.f32 %v502, %v498
      %v505 = vpack.c.bf16 %v488, %v488
      %v507 = vunpack.c.l.b16 %v361
      %v508 = vpack.c.b16 %v507, %v507
      %509 = vrot.lane.b32.xlu0 %v508, 96
      %v510 = vpop.permute.xlu0 %509
      %v512 = vsel %vm415, %v505, 0
      %v515 = vand.u32 %v510, %v422
      %517 = vmatpush.bf16.msra.mxu0 0
      %518 = vmatpush.bf16.msra.mxu0 0
      %519 = vmatpush.bf16.msra.mxu0 0
      %520 = vmatpush.bf16.msra.mxu0 0
      %521 = vmatpush.bf16.msra.mxu0 0
      %522 = vmatpush.bf16.msra.mxu0 0
      %523 = vmatpush.bf16.msra.mxu0 0
      %524 = vmatpush.bf16.msra.mxu0 %v515
      %525 = vmatmul.bf16.gmra.mxu0 %v512
      %v526 = vpop.f32.mrf.mxu0
      %v527 = vadd.f32 0.0, %v526
      %v528 = vpop.f32.mrf.mxu0
      %529 = vdwg.mxu0
      %v530 = vadd.f32 %v504, %v527
      %531 = vst.msk [vmem:[%s497] sm:$0x1f] %vm440, %v530
      %532 = vst.msk [vmem:[%s472] sm:$0x1f] %vm405, %v477
      %533 = vrot.lane.b32.xlu0 %v445, 64
      %v534 = vpop.permute.xlu0 %533
      %535 = vrot.lane.b32.xlu0 %v450, 64
      %v536 = vpop.permute.xlu0 %535
      %v538 = vsel %vm362, %v534, 0
      %v541 = vsel %vm362, %v536, 0
      %543 = vmatpush.bf16.xpose.msra.mxu0 0
      %544 = vmatpush.bf16.xpose.msra.mxu0 0
      %545 = vmatpush.bf16.xpose.msra.mxu0 0
      %546 = vmatpush.bf16.xpose.msra.mxu0 0
      %547 = vmatpush.bf16.xpose.msra.mxu0 0
      %548 = vmatpush.bf16.xpose.msra.mxu0 0
      %549 = vmatpush.bf16.xpose.msra.mxu0 0
      %550 = vmatpush.bf16.xpose.msra.mxu0 %v541
      %551 = vmatmul.bf16.gmra.mxu0 %v538
      %v552 = vpop.f32.mrf.mxu0
      %v553 = vadd.f32 0.0, %v552
      %v554 = vpop.f32.mrf.mxu0
      %555 = vdwg.mxu0
      %s556 = scalar_lea.vmem [#allocation2], 16
      %v557 = vld [vmem:[%s556] sm:$0x1f]
      %v558 = vsel %vm383, %v553, -inf
      %559 = vmax.xlane.f32.xlu0 %v558
      %v560 = vpop.xlane.xlu0 %559
      %v561 = vmax.f32 %v557, %v560
      %v562 = vsub.f32 %v557, %v561
      %v563 = vmul.f32 %v562, 1.442695
      %v564 = vpow.pop %v563
      %566 = vset.pattern.permute.xlu0 0
      %567 = vperm.xlu0 %566, %v561
      %v568 = vpop.permute.xlu0 %567
      %v570 = vsub.f32 %v553, %v568
      %v571 = vmul.f32 %v570, 1.442695
      %v572 = vpow.pop %v571
      %s573 = scalar_lea.vmem [#allocation3], 16
      %v574 = vld [vmem:[%s573] sm:$0x1f]
      %v575 = vmul.f32 %v564, %v574
      %v576 = vsel %vm383, %v572, 0.0
      %577 = vadd.xlane.f32.xlu0 %v576
      %v578 = vpop.xlane.xlu0 %577
      %v579 = vadd.f32 %v575, %v578
      %580 = vst.msk [vmem:[%s573] sm:$0x1f] %vm405, %v579
      %s581 = scalar_lea.vmem [#allocation4], 16
      %v582 = vld [vmem:[%s581] sm:$0x1f]
      %584 = vset.pattern.permute.xlu0 0
      %585 = vperm.xlu0 %584, %v564
      %v586 = vpop.permute.xlu0 %585
      %v588 = vmul.f32 %v586, %v582
      %v589 = vpack.c.bf16 %v572, %v572
      %590 = vrot.lane.b32.xlu0 %v508, 64
      %v591 = vpop.permute.xlu0 %590
      %v593 = vsel %vm415, %v589, 0
      %v596 = vand.u32 %v591, %v422
      %598 = vmatpush.bf16.msra.mxu0 0
      %599 = vmatpush.bf16.msra.mxu0 0
      %600 = vmatpush.bf16.msra.mxu0 0
      %601 = vmatpush.bf16.msra.mxu0 0
      %602 = vmatpush.bf16.msra.mxu0 0
      %603 = vmatpush.bf16.msra.mxu0 0
      %604 = vmatpush.bf16.msra.mxu0 0
      %605 = vmatpush.bf16.msra.mxu0 %v596
      %606 = vmatmul.bf16.gmra.mxu0 %v593
      %v607 = vpop.f32.mrf.mxu0
      %v608 = vadd.f32 0.0, %v607
      %v609 = vpop.f32.mrf.mxu0
      %610 = vdwg.mxu0
      %v611 = vadd.f32 %v588, %v608
      %612 = vst.msk [vmem:[%s581] sm:$0x1f] %vm440, %v611
      %613 = vst.msk [vmem:[%s556] sm:$0x1f] %vm405, %v561
      %614 = vrot.lane.b32.xlu0 %v445, 32
      %v615 = vpop.permute.xlu0 %614
      %616 = vrot.lane.b32.xlu0 %v450, 32
      %v617 = vpop.permute.xlu0 %616
      %v619 = vsel %vm362, %v615, 0
      %v622 = vsel %vm362, %v617, 0
      %624 = vmatpush.bf16.xpose.msra.mxu0 0
      %625 = vmatpush.bf16.xpose.msra.mxu0 0
      %626 = vmatpush.bf16.xpose.msra.mxu0 0
      %627 = vmatpush.bf16.xpose.msra.mxu0 0
      %628 = vmatpush.bf16.xpose.msra.mxu0 0
      %629 = vmatpush.bf16.xpose.msra.mxu0 0
      %630 = vmatpush.bf16.xpose.msra.mxu0 0
      %631 = vmatpush.bf16.xpose.msra.mxu0 %v622
      %632 = vmatmul.bf16.gmra.mxu0 %v619
      %v633 = vpop.f32.mrf.mxu0
      %v634 = vadd.f32 0.0, %v633
      %v635 = vpop.f32.mrf.mxu0
      %636 = vdwg.mxu0
      %s637 = scalar_lea.vmem [#allocation2], 24
      %v638 = vld [vmem:[%s637] sm:$0x1f]
      %v639 = vsel %vm383, %v634, -inf
      %640 = vmax.xlane.f32.xlu0 %v639
      %v641 = vpop.xlane.xlu0 %640
      %v642 = vmax.f32 %v638, %v641
      %v643 = vsub.f32 %v638, %v642
      %v644 = vmul.f32 %v643, 1.442695
      %v645 = vpow.pop %v644
      %647 = vset.pattern.permute.xlu0 0
      %648 = vperm.xlu0 %647, %v642
      %v649 = vpop.permute.xlu0 %648
      %v651 = vsub.f32 %v634, %v649
      %v652 = vmul.f32 %v651, 1.442695
      %v653 = vpow.pop %v652
      %s654 = scalar_lea.vmem [#allocation3], 24
      %v655 = vld [vmem:[%s654] sm:$0x1f]
      %v656 = vmul.f32 %v645, %v655
      %v657 = vsel %vm383, %v653, 0.0
      %658 = vadd.xlane.f32.xlu0 %v657
      %v659 = vpop.xlane.xlu0 %658
      %v660 = vadd.f32 %v656, %v659
      %661 = vst.msk [vmem:[%s654] sm:$0x1f] %vm405, %v660
      %s662 = scalar_lea.vmem [#allocation4], 24
      %v663 = vld [vmem:[%s662] sm:$0x1f]
      %665 = vset.pattern.permute.xlu0 0
      %666 = vperm.xlu0 %665, %v645
      %v667 = vpop.permute.xlu0 %666
      %v669 = vmul.f32 %v667, %v663
      %v670 = vpack.c.bf16 %v653, %v653
      %671 = vrot.lane.b32.xlu0 %v508, 32
      %v672 = vpop.permute.xlu0 %671
      %v674 = vsel %vm415, %v670, 0
      %v677 = vand.u32 %v672, %v422
      %679 = vmatpush.bf16.msra.mxu0 0
      %680 = vmatpush.bf16.msra.mxu0 0
      %681 = vmatpush.bf16.msra.mxu0 0
      %682 = vmatpush.bf16.msra.mxu0 0
      %683 = vmatpush.bf16.msra.mxu0 0
      %684 = vmatpush.bf16.msra.mxu0 0
      %685 = vmatpush.bf16.msra.mxu0 0
      %686 = vmatpush.bf16.msra.mxu0 %v677
      %687 = vmatmul.bf16.gmra.mxu0 %v674
      %v688 = vpop.f32.mrf.mxu0
      %v689 = vadd.f32 0.0, %v688
      %v690 = vpop.f32.mrf.mxu0
      %691 = vdwg.mxu0
      %v692 = vadd.f32 %v669, %v689
      %693 = vst.msk [vmem:[%s662] sm:$0x1f] %vm440, %v692
      %694 = vst.msk [vmem:[%s637] sm:$0x1f] %vm405, %v642
      // Predicated region
      $region37: #{_lambda_.15} parent=31 // pred_check
        %p695 = pneg %p341
      $region38: #{_lambda_.15} parent=31 // pred_check_branch
        %697 = sbr.rel (%p695) target = $region40
      $region39: #{_lambda_.15} parent=31 // pred_region
        %v698 = vld [vmem:[#allocation4] sm:$0x1f]
        %v699 = vld [vmem:[#allocation3] sm:$0x1f]
        %v700 = vrcp.pop %v699
        %702 = vset.pattern.permute.xlu0 0
        %703 = vperm.xlu0 %702, %v700
        %v704 = vpop.permute.xlu0 %703
        %v706 = vmul.f32 %v698, %v704
        %v707 = vld [vmem:[%s497] sm:$0x1f]
        %v708 = vld [vmem:[%s489] sm:$0x1f]
        %v709 = vrcp.pop %v708
        %711 = vset.pattern.permute.xlu0 0
        %712 = vperm.xlu0 %711, %v709
        %v713 = vpop.permute.xlu0 %712
        %v715 = vmul.f32 %v707, %v713
        %v716 = vld [vmem:[%s581] sm:$0x1f]
        %v717 = vld [vmem:[%s573] sm:$0x1f]
        %v718 = vrcp.pop %v717
        %720 = vset.pattern.permute.xlu0 0
        %721 = vperm.xlu0 %720, %v718
        %v722 = vpop.permute.xlu0 %721
        %v724 = vmul.f32 %v716, %v722
        %v725 = vld [vmem:[%s662] sm:$0x1f]
        %v726 = vld [vmem:[%s654] sm:$0x1f]
        %v727 = vrcp.pop %v726
        %729 = vset.pattern.permute.xlu0 0
        %730 = vperm.xlu0 %729, %v727
        %v731 = vpop.permute.xlu0 %730
        %v733 = vmul.f32 %v725, %v731
        %735 = vrot.lane.b32.xlu0 %v715, 32
        %v736 = vpop.permute.xlu0 %735
        %739 = vrot.lane.b32.xlu0 %v724, 64
        %v740 = vpop.permute.xlu0 %739
        %743 = vrot.lane.b32.xlu0 %v733, 96
        %v744 = vpop.permute.xlu0 %743
        %v746 = vsel %vm362, %v706, %v736
        %vm747 = vcmask 523264
        %v748 = vsel %vm747, %v746, %v740
        %vm749 = vcmask 785408
        %v750 = vsel %vm749, %v748, %v744
        %v751 = vpack.c.bf16 %v750, %v750
        %vm752 = vcmask 1042432
        %vm753 = vsmask.f32 2304
        %vm754 = vmand %vm752, %vm753
        %v755 = vld [vmem:[%s339] sm:$0x7]
        %v756 = vsel %vm754, %v751, %v755
        %757 = vst [vmem:[%s339] sm:$0x7] %v756
      $region40: #{_lambda_.15} parent=31 // pred_fallthru
        _
      %p758 = scmp.lt.s32.totalorder %s20, 1
      %s759 = scalar_select %p758, %s20, 1
      %p760 = scmp.lt.s32.totalorder %s22, 0
      %s761 = scalar_select %p760, %s22, 0
      %p762 = scmp.lt.s32.totalorder %s21, 0
      %s763 = scalar_select %p762, %s21, 0
      %s764 = sadd.s32 %s763, %s761
      %s765 = sadd.s32 %s764, %s759
      %s766 = smul.addr %s765, 4
      %s767 = scalar_lea.vmem %s3, %s766
      // Predicated region
      $region41: #{_lambda_.15} parent=31 // pred_check
        %p768 = pneg %p156
      $region42: #{_lambda_.15} parent=31 // pred_check_branch
        %770 = sbr.rel (%p768) target = $region44
      $region43: #{_lambda_.15} parent=31 // pred_region
        _
      $region44: #{_lambda_.15} parent=31 // pred_fallthru
        _
    $region32: #{_lambda_.15} parent=5 // pred_fallthru
      _
    %p771 = scmp.le.s32.totalorder 2, %s9
    // Predicated region
    $region45: #{_lambda_.15} parent=5 // pred_check
      %p772 = pneg %p771
    $region46: #{_lambda_.15} parent=5 // pred_check_branch
      %774 = sbr.rel (%p772) target = $region48
    $region47: #{_lambda_.15} parent=5 // pred_region
      %s775 = ssub.s32 %s9, 2
      // Predicated region
      $region49: #{_lambda_.15} parent=47 // pred_check
        %p776 = pneg %p162
      $region50: #{_lambda_.15} parent=47 // pred_check_branch
        %778 = sbr.rel (%p776) target = $region52
      $region51: #{_lambda_.15} parent=47 // pred_region
        %p779 = scmp.lt.s32.totalorder %s24, 1
        %s780 = scalar_select %p779, %s24, 1
        %p781 = scmp.lt.s32.totalorder %s26, 0
        %s782 = scalar_select %p781, %s26, 0
        %p783 = scmp.lt.s32.totalorder %s25, 0
        %s784 = scalar_select %p783, %s25, 0
        %s785 = sadd.s32 %s784, %s782
        %s786 = sadd.s32 %s785, %s780
        %s787 = smul.addr %s786, 4
        %s788 = scalar_lea.vmem %s3, %s787
      $region52: #{_lambda_.15} parent=47 // pred_fallthru
        _
    $region48: #{_lambda_.15} parent=5 // pred_fallthru
      _
  $region6: #{_lambda_.15} parent=0 // loop_footer
    %s13 = sadd.s32 1, %s9
  $region7: #{_lambda_.15} parent=0 // loop_footer_branch
    %8 = sbr.rel target = $region3
  $region8: #{_lambda_.15} parent=0 // loop_exit
    _

// kernel: _lambda_.19
$region0: #{_lambda_.19}
  #allocation0 [shape = 'u32[]', space=smem, size = 0x4, offset = 0x4, fixed_abs, tag = 'smem constant byte address 0x4 - core index']
  #allocation1 [shape = 'u32[72,128]{1,0:T(1,128)}', space=vmem, size = 0x9000, scoped, tag = 'internal scratch']
  #allocation2 [shape = 'f32[10,384]{1,0:T(8,128)}', space=vmem, size = 0x6000, scoped, tag = 'scratch operand']
  %s0 = inlined_call_operand.vmem [shape: bf16[10,128], index: 0, kind: input, shape index: {}]
  %s1 = inlined_call_operand.hbm [shape: bf16[128,384], index: 1, kind: input, shape index: {}]
  %s2 = inlined_call_operand.vmem [shape: f32[1,384], index: 2, kind: input, shape index: {}]
  %s3 = inlined_call_operand.vmem [shape: bf16[10,384], index: 3, kind: output, shape index: {}]
  %s4 = sld [smem:[#allocation0]]
  $region34: #{_lambda_.19} parent=0
    _
  %s6 = ssub.s32 1, %s4
  %s7 = scalar_select 0, %s6, %s4
  $region1: #{_lambda_.19} parent=0
    #allocation3 [shape = 'u8[98304]{0}', space=vmem, size = 0x18000, scoped, tag = 'input window, operand 1, single buffered']
    #allocation4 [shape = 's32[1]{0}', space=sflag, size = 0x4, scoped, tag = 'scoped memory for _lambda_.19']
    %8 = vsyncpa [#allocation4], 0
    // Predicated region
    $region2: #{_lambda_.19} parent=1 // pred_check
      _
    $region3: #{_lambda_.19} parent=1 // pred_check_branch
      %10 = sbr.rel (0) target = $region5
    $region4: #{_lambda_.19} parent=1 // pred_region
      _
    $region5: #{_lambda_.19} parent=1 // pred_fallthru
      _
    // Predicated region
    $region6: #{_lambda_.19} parent=1 // pred_check
      _
    $region7: #{_lambda_.19} parent=1 // pred_check_branch
      %12 = sbr.rel (0) target = $region9
    $region8: #{_lambda_.19} parent=1 // pred_region
      %14 = vsyncadd [#allocation4], 0
      %s15 = sshll.u32 %s1, 4
      %s16 = int_to_ptr.hbm [resolvable:$true] %s15
      %s17 = sshll.u32 [#allocation3], 4
      %s18 = int_to_ptr.vmem [resolvable:$true] %s17
      %23 = dma.hbm_to_vmem [thread:$0]  %s16, 3072, %s18, [#allocation4], 192, 192, 12
    $region9: #{_lambda_.19} parent=1 // pred_fallthru
      _
    // Predicated region
    $region10: #{_lambda_.19} parent=1 // pred_check
      _
    $region11: #{_lambda_.19} parent=1 // pred_check_branch
      %25 = sbr.rel (0) target = $region13
    $region12: #{_lambda_.19} parent=1 // pred_region
      _
    $region13: #{_lambda_.19} parent=1 // pred_fallthru
      _
    // Predicated region
    $region14: #{_lambda_.19} parent=1 // pred_check
      _
    $region15: #{_lambda_.19} parent=1 // pred_check_branch
      %27 = sbr.rel (0) target = $region17
    $region16: #{_lambda_.19} parent=1 // pred_region
      %29 = dma.done [#allocation4], 3072
    $region17: #{_lambda_.19} parent=1 // pred_fallthru
      _
    %p30 = scmp.eq.s32.totalorder 0, 0
    // Predicated region
    $region18: #{_lambda_.19} parent=1 // pred_check
      %p31 = pneg %p30
    $region19: #{_lambda_.19} parent=1 // pred_check_branch
      %33 = sbr.rel (%p31) target = $region21
    $region20: #{_lambda_.19} parent=1 // pred_region
      %34 = vst [vmem:[#allocation2] sm:$0xff] 0.0
      %35 = vst [vmem:[#allocation2 + $0x8] sm:$0xff] 0.0
      %36 = vst [vmem:[#allocation2 + $0x10] sm:$0xff] 0.0
      %37 = vst [vmem:[#allocation2 + $0x18] sm:$0x3] 0.0
      %38 = vst [vmem:[#allocation2 + $0x20] sm:$0x3] 0.0
      %39 = vst [vmem:[#allocation2 + $0x28] sm:$0x3] 0.0
    $region21: #{_lambda_.19} parent=1 // pred_fallthru
      _
    %v40 = vld [vmem:[#allocation2] sm:$0xff]
    %v41 = vld [vmem:[#allocation2 + $0x8] sm:$0xff]
    %v42 = vld [vmem:[#allocation2 + $0x10] sm:$0xff]
    %v43 = vld [vmem:[#allocation2 + $0x18] sm:$0x3]
    %v44 = vld [vmem:[#allocation2 + $0x20] sm:$0x3]
    %v45 = vld [vmem:[#allocation2 + $0x28] sm:$0x3]
    %v46 = vld [vmem:[%s0] sm:$0xf]
    %v47 = vld [vmem:[%s0 + $0x4] sm:$0x1]
    %v48 = vld [vmem:[#allocation3] sm:$0xff]
    %v49 = vld [vmem:[#allocation3 + $0x8] sm:$0xf]
    %v50 = vld [vmem:[#allocation3 + $0xc] sm:$0xff]
    %v51 = vld [vmem:[#allocation3 + $0x14] sm:$0xf]
    %v52 = vld [vmem:[#allocation3 + $0x18] sm:$0xff]
    %v53 = vld [vmem:[#allocation3 + $0x20] sm:$0xf]
    %v54 = vld [vmem:[#allocation3 + $0x24] sm:$0xff]
    %v55 = vld [vmem:[#allocation3 + $0x2c] sm:$0xf]
    %v56 = vld [vmem:[#allocation3 + $0x30] sm:$0xff]
    %v57 = vld [vmem:[#allocation3 + $0x38] sm:$0xf]
    %v58 = vld [vmem:[#allocation3 + $0x3c] sm:$0xff]
    %v59 = vld [vmem:[#allocation3 + $0x44] sm:$0xf]
    %v60 = vld [vmem:[#allocation3 + $0x48] sm:$0xff]
    %v61 = vld [vmem:[#allocation3 + $0x50] sm:$0xf]
    %v62 = vld [vmem:[#allocation3 + $0x54] sm:$0xff]
    %v63 = vld [vmem:[#allocation3 + $0x5c] sm:$0xf]
    %v64 = vld [vmem:[#allocation3 + $0x60] sm:$0xff]
    %v65 = vld [vmem:[#allocation3 + $0x68] sm:$0xf]
    %v66 = vld [vmem:[#allocation3 + $0x6c] sm:$0xff]
    %v67 = vld [vmem:[#allocation3 + $0x74] sm:$0xf]
    %v68 = vld [vmem:[#allocation3 + $0x78] sm:$0xff]
    %v69 = vld [vmem:[#allocation3 + $0x80] sm:$0xf]
    %v70 = vld [vmem:[#allocation3 + $0x84] sm:$0xff]
    %v71 = vld [vmem:[#allocation3 + $0x8c] sm:$0xf]
    %v72 = vld [vmem:[#allocation3 + $0x90] sm:$0xff]
    %v73 = vld [vmem:[#allocation3 + $0x98] sm:$0xf]
    %v74 = vld [vmem:[#allocation3 + $0x9c] sm:$0xff]
    %v75 = vld [vmem:[#allocation3 + $0xa4] sm:$0xf]
    %v76 = vld [vmem:[#allocation3 + $0xa8] sm:$0xff]
    %v77 = vld [vmem:[#allocation3 + $0xb0] sm:$0xf]
    %v78 = vld [vmem:[#allocation3 + $0xb4] sm:$0xff]
    %v79 = vld [vmem:[#allocation3 + $0xbc] sm:$0xf]
    %v82 = vunpack.c.l.b16 %v46
    %v83 = vunpack.c.l.b16 %v47
    %v84 = vpack.c.b16 %v83, %v82
    %v118 = vunpack.c.l.b16 %v48
    %v119 = vunpack.c.h.b16 %v48
    %v120 = vunpack.c.l.b16 %v49
    %v121 = vunpack.c.l.b16 %v50
    %v122 = vunpack.c.h.b16 %v50
    %v123 = vunpack.c.l.b16 %v51
    %v124 = vunpack.c.l.b16 %v52
    %v125 = vunpack.c.h.b16 %v52
    %v126 = vunpack.c.l.b16 %v53
    %v127 = vunpack.c.l.b16 %v54
    %v128 = vunpack.c.h.b16 %v54
    %v129 = vunpack.c.l.b16 %v55
    %v130 = vunpack.c.l.b16 %v56
    %v131 = vunpack.c.h.b16 %v56
    %v132 = vunpack.c.l.b16 %v57
    %v133 = vunpack.c.l.b16 %v58
    %v134 = vunpack.c.h.b16 %v58
    %v135 = vunpack.c.l.b16 %v59
    %v136 = vunpack.c.l.b16 %v60
    %v137 = vunpack.c.h.b16 %v60
    %v138 = vunpack.c.l.b16 %v61
    %v139 = vunpack.c.l.b16 %v62
    %v140 = vunpack.c.h.b16 %v62
    %v141 = vunpack.c.l.b16 %v63
    %v142 = vunpack.c.l.b16 %v64
    %v143 = vunpack.c.h.b16 %v64
    %v144 = vunpack.c.l.b16 %v65
    %v145 = vunpack.c.l.b16 %v66
    %v146 = vunpack.c.h.b16 %v66
    %v147 = vunpack.c.l.b16 %v67
    %v148 = vunpack.c.l.b16 %v68
    %v149 = vunpack.c.h.b16 %v68
    %v150 = vunpack.c.l.b16 %v69
    %v151 = vunpack.c.l.b16 %v70
    %v152 = vunpack.c.h.b16 %v70
    %v153 = vunpack.c.l.b16 %v71
    %v154 = vunpack.c.l.b16 %v72
    %v155 = vunpack.c.h.b16 %v72
    %v156 = vunpack.c.l.b16 %v73
    %v157 = vunpack.c.l.b16 %v74
    %v158 = vunpack.c.h.b16 %v74
    %v159 = vunpack.c.l.b16 %v75
    %v160 = vunpack.c.l.b16 %v76
    %v161 = vunpack.c.h.b16 %v76
    %v162 = vunpack.c.l.b16 %v77
    %v163 = vunpack.c.l.b16 %v78
    %v164 = vunpack.c.h.b16 %v78
    %v165 = vunpack.c.l.b16 %v79
    %v166 = vpack.c.b16 %v121, %v118
    %v167 = vpack.c.b16 %v122, %v119
    %v168 = vpack.c.b16 %v123, %v120
    %v169 = vpack.c.b16 %v127, %v124
    %v170 = vpack.c.b16 %v128, %v125
    %v171 = vpack.c.b16 %v129, %v126
    %v172 = vpack.c.b16 %v133, %v130
    %v173 = vpack.c.b16 %v134, %v131
    %v174 = vpack.c.b16 %v135, %v132
    %v175 = vpack.c.b16 %v139, %v136
    %v176 = vpack.c.b16 %v140, %v137
    %v177 = vpack.c.b16 %v141, %v138
    %v178 = vpack.c.b16 %v145, %v142
    %v179 = vpack.c.b16 %v146, %v143
    %v180 = vpack.c.b16 %v147, %v144
    %v181 = vpack.c.b16 %v151, %v148
    %v182 = vpack.c.b16 %v152, %v149
    %v183 = vpack.c.b16 %v153, %v150
    %v184 = vpack.c.b16 %v157, %v154
    %v185 = vpack.c.b16 %v158, %v155
    %v186 = vpack.c.b16 %v159, %v156
    %v187 = vpack.c.b16 %v163, %v160
    %v188 = vpack.c.b16 %v164, %v161
    %v189 = vpack.c.b16 %v165, %v162
    %214 = vmatpush.bf16.msra.mxu0 %v187
    %215 = vmatpush.bf16.msra.mxu0 %v184
    %216 = vmatpush.bf16.msra.mxu0 %v181
    %217 = vmatpush.bf16.msra.mxu0 %v178
    %218 = vmatpush.bf16.msra.mxu0 %v175
    %219 = vmatpush.bf16.msra.mxu0 %v172
    %220 = vmatpush.bf16.msra.mxu0 %v169
    %221 = vmatpush.bf16.msra.mxu0 %v166
    %222 = vmatmul.bf16.gmra.mxu0 %v84
    %v223 = vpop.f32.mrf.mxu0
    %v224 = vadd.f32 0.0, %v223
    %v225 = vpop.f32.mrf.mxu0
    %v226 = vadd.f32 0.0, %v225
    %227 = vdwg.mxu0
    %228 = vmatpush.bf16.msra.mxu0 %v188
    %229 = vmatpush.bf16.msra.mxu0 %v185
    %230 = vmatpush.bf16.msra.mxu0 %v182
    %231 = vmatpush.bf16.msra.mxu0 %v179
    %232 = vmatpush.bf16.msra.mxu0 %v176
    %233 = vmatpush.bf16.msra.mxu0 %v173
    %234 = vmatpush.bf16.msra.mxu0 %v170
    %235 = vmatpush.bf16.msra.mxu0 %v167
    %236 = vmatmul.bf16.gmra.mxu0 %v84
    %v237 = vpop.f32.mrf.mxu0
    %v238 = vadd.f32 0.0, %v237
    %v239 = vpop.f32.mrf.mxu0
    %v240 = vadd.f32 0.0, %v239
    %241 = vdwg.mxu0
    %242 = vmatpush.bf16.msra.mxu0 %v189
    %243 = vmatpush.bf16.msra.mxu0 %v186
    %244 = vmatpush.bf16.msra.mxu0 %v183
    %245 = vmatpush.bf16.msra.mxu0 %v180
    %246 = vmatpush.bf16.msra.mxu0 %v177
    %247 = vmatpush.bf16.msra.mxu0 %v174
    %248 = vmatpush.bf16.msra.mxu0 %v171
    %249 = vmatpush.bf16.msra.mxu0 %v168
    %250 = vmatmul.bf16.gmra.mxu0 %v84
    %v251 = vpop.f32.mrf.mxu0
    %v252 = vadd.f32 0.0, %v251
    %v253 = vpop.f32.mrf.mxu0
    %v254 = vadd.f32 0.0, %v253
    %255 = vdwg.mxu0
    %v256 = vadd.f32 %v40, %v224
    %v257 = vadd.f32 %v41, %v238
    %v258 = vadd.f32 %v42, %v252
    %v259 = vadd.f32 %v43, %v226
    %v260 = vadd.f32 %v44, %v240
    %v261 = vadd.f32 %v45, %v254
    %262 = vst [vmem:[#allocation2] sm:$0xff] %v256
    %263 = vst [vmem:[#allocation2 + $0x8] sm:$0xff] %v257
    %264 = vst [vmem:[#allocation2 + $0x10] sm:$0xff] %v258
    %265 = vst [vmem:[#allocation2 + $0x18] sm:$0x3] %v259
    %266 = vst [vmem:[#allocation2 + $0x20] sm:$0x3] %v260
    %267 = vst [vmem:[#allocation2 + $0x28] sm:$0x3] %v261
    // Predicated region
    $region22: #{_lambda_.19} parent=1 // pred_check
      %p268 = pneg %p30
    $region23: #{_lambda_.19} parent=1 // pred_check_branch
      %270 = sbr.rel (%p268) target = $region25
    $region24: #{_lambda_.19} parent=1 // pred_region
      %v271 = vld [vmem:[#allocation2] sm:$0xff]
      %v272 = vld [vmem:[#allocation2 + $0x8] sm:$0xff]
      %v273 = vld [vmem:[#allocation2 + $0x10] sm:$0xff]
      %v274 = vld [vmem:[#allocation2 + $0x18] sm:$0x3]
      %v275 = vld [vmem:[#allocation2 + $0x20] sm:$0x3]
      %v276 = vld [vmem:[#allocation2 + $0x28] sm:$0x3]
      %v277 = vld [vmem:[%s2] sm:$0x7]
      %v279 = vperm.slane %v277, 0
      %v280 = vperm.slane %v277, 1
      %v281 = vperm.slane %v277, 2
      %v285 = vadd.f32 %v271, %v279
      %v286 = vadd.f32 %v272, %v280
      %v287 = vadd.f32 %v273, %v281
      %v288 = vadd.f32 %v274, %v279
      %v289 = vadd.f32 %v275, %v280
      %v290 = vadd.f32 %v276, %v281
      %v291 = vpack.c.bf16 %v286, %v285
      %v292 = vpack.c.bf16 %v287, %v287
      %v293 = vpack.c.bf16 %v289, %v288
      %v294 = vpack.c.bf16 %v290, %v290
      %295 = vst [vmem:[%s3] sm:$0xff] %v291
      %296 = vst [vmem:[%s3 + $0x8] sm:$0xf] %v292
      %297 = vst [vmem:[%s3 + $0xc] sm:$0x11] %v293
      %298 = vst [vmem:[%s3 + $0x14] sm:$0x1] %v294
    $region25: #{_lambda_.19} parent=1 // pred_fallthru
      _
    // Predicated region
    $region26: #{_lambda_.19} parent=1 // pred_check
      _
    $region27: #{_lambda_.19} parent=1 // pred_check_branch
      %300 = sbr.rel (0) target = $region29
    $region28: #{_lambda_.19} parent=1 // pred_region
      _
    $region29: #{_lambda_.19} parent=1 // pred_fallthru
      _
    // Predicated region
    $region30: #{_lambda_.19} parent=1 // pred_check
      _
    $region31: #{_lambda_.19} parent=1 // pred_check_branch
      %302 = sbr.rel (0) target = $region33
    $region32: #{_lambda_.19} parent=1 // pred_region
      _
    $region33: #{_lambda_.19} parent=1 // pred_fallthru
      _
    %303 = vsyncpa [#allocation4], 1

// kernel: _lambda_.17
$region0: #{_lambda_.17}
  #allocation0 [shape = 'u32[]', space=smem, size = 0x4, offset = 0x4, fixed_abs, tag = 'smem constant byte address 0x4 - core index']
  #allocation1 [shape = 'u32[72,128]{1,0:T(1,128)}', space=vmem, size = 0x9000, scoped, tag = 'internal scratch']
  #allocation2 [shape = 'f32[10,512]{1,0:T(8,128)}', space=vmem, size = 0x8000, scoped, tag = 'scratch operand']
  %s0 = inlined_call_operand.vmem [shape: bf16[10,128], index: 0, kind: input, shape index: {}]
  %s1 = inlined_call_operand.vmem [shape: bf16[128,512], index: 1, kind: input, shape index: {}]
  %s2 = inlined_call_operand.vmem [shape: f32[1,512], index: 2, kind: input, shape index: {}]
  %s3 = inlined_call_operand.vmem [shape: bf16[10,512], index: 3, kind: output, shape index: {}]
  %s4 = sld [smem:[#allocation0]]
  $region30: #{_lambda_.17} parent=0
    _
  %s6 = ssub.s32 1, %s4
  %s7 = scalar_select 0, %s6, %s4
  // Predicated region
  $region2: #{_lambda_.17} parent=0 // pred_check
    _
  $region3: #{_lambda_.17} parent=0 // pred_check_branch
    %9 = sbr.rel (0) target = $region5
  $region4: #{_lambda_.17} parent=0 // pred_region
    _
  $region5: #{_lambda_.17} parent=0 // pred_fallthru
    _
  // Predicated region
  $region6: #{_lambda_.17} parent=0 // pred_check
    _
  $region7: #{_lambda_.17} parent=0 // pred_check_branch
    %11 = sbr.rel (0) target = $region9
  $region8: #{_lambda_.17} parent=0 // pred_region
    _
  $region9: #{_lambda_.17} parent=0 // pred_fallthru
    _
  // Predicated region
  $region10: #{_lambda_.17} parent=0 // pred_check
    _
  $region11: #{_lambda_.17} parent=0 // pred_check_branch
    %13 = sbr.rel (0) target = $region13
  $region12: #{_lambda_.17} parent=0 // pred_region
    _
  $region13: #{_lambda_.17} parent=0 // pred_fallthru
    _
  %p14 = scmp.eq.s32.totalorder 0, 0
  // Predicated region
  $region14: #{_lambda_.17} parent=0 // pred_check
    %p15 = pneg %p14
  $region15: #{_lambda_.17} parent=0 // pred_check_branch
    %17 = sbr.rel (%p15) target = $region17
  $region16: #{_lambda_.17} parent=0 // pred_region
    %18 = vst [vmem:[#allocation2] sm:$0xff] 0.0
    %19 = vst [vmem:[#allocation2 + $0x8] sm:$0xff] 0.0
    %20 = vst [vmem:[#allocation2 + $0x10] sm:$0xff] 0.0
    %21 = vst [vmem:[#allocation2 + $0x18] sm:$0xff] 0.0
    %22 = vst [vmem:[#allocation2 + $0x20] sm:$0x3] 0.0
    %23 = vst [vmem:[#allocation2 + $0x28] sm:$0x3] 0.0
    %24 = vst [vmem:[#allocation2 + $0x30] sm:$0x3] 0.0
    %25 = vst [vmem:[#allocation2 + $0x38] sm:$0x3] 0.0
  $region17: #{_lambda_.17} parent=0 // pred_fallthru
    _
  %v26 = vld [vmem:[#allocation2] sm:$0xff]
  %v27 = vld [vmem:[#allocation2 + $0x8] sm:$0xff]
  %v28 = vld [vmem:[#allocation2 + $0x10] sm:$0xff]
  %v29 = vld [vmem:[#allocation2 + $0x18] sm:$0xff]
  %v30 = vld [vmem:[#allocation2 + $0x20] sm:$0x3]
  %v31 = vld [vmem:[#allocation2 + $0x28] sm:$0x3]
  %v32 = vld [vmem:[#allocation2 + $0x30] sm:$0x3]
  %v33 = vld [vmem:[#allocation2 + $0x38] sm:$0x3]
  %v34 = vld [vmem:[%s0] sm:$0xf]
  %v35 = vld [vmem:[%s0 + $0x4] sm:$0x1]
  %v36 = vld [vmem:[%s1] sm:$0xff]
  %v37 = vld [vmem:[%s1 + $0x8] sm:$0xff]
  %v38 = vld [vmem:[%s1 + $0x10] sm:$0xff]
  %v39 = vld [vmem:[%s1 + $0x18] sm:$0xff]
  %v40 = vld [vmem:[%s1 + $0x20] sm:$0xff]
  %v41 = vld [vmem:[%s1 + $0x28] sm:$0xff]
  %v42 = vld [vmem:[%s1 + $0x30] sm:$0xff]
  %v43 = vld [vmem:[%s1 + $0x38] sm:$0xff]
  %v44 = vld [vmem:[%s1 + $0x40] sm:$0xff]
  %v45 = vld [vmem:[%s1 + $0x48] sm:$0xff]
  %v46 = vld [vmem:[%s1 + $0x50] sm:$0xff]
  %v47 = vld [vmem:[%s1 + $0x58] sm:$0xff]
  %v48 = vld [vmem:[%s1 + $0x60] sm:$0xff]
  %v49 = vld [vmem:[%s1 + $0x68] sm:$0xff]
  %v50 = vld [vmem:[%s1 + $0x70] sm:$0xff]
  %v51 = vld [vmem:[%s1 + $0x78] sm:$0xff]
  %v52 = vld [vmem:[%s1 + $0x80] sm:$0xff]
  %v53 = vld [vmem:[%s1 + $0x88] sm:$0xff]
  %v54 = vld [vmem:[%s1 + $0x90] sm:$0xff]
  %v55 = vld [vmem:[%s1 + $0x98] sm:$0xff]
  %v56 = vld [vmem:[%s1 + $0xa0] sm:$0xff]
  %v57 = vld [vmem:[%s1 + $0xa8] sm:$0xff]
  %v58 = vld [vmem:[%s1 + $0xb0] sm:$0xff]
  %v59 = vld [vmem:[%s1 + $0xb8] sm:$0xff]
  %v60 = vld [vmem:[%s1 + $0xc0] sm:$0xff]
  %v61 = vld [vmem:[%s1 + $0xc8] sm:$0xff]
  %v62 = vld [vmem:[%s1 + $0xd0] sm:$0xff]
  %v63 = vld [vmem:[%s1 + $0xd8] sm:$0xff]
  %v64 = vld [vmem:[%s1 + $0xe0] sm:$0xff]
  %v65 = vld [vmem:[%s1 + $0xe8] sm:$0xff]
  %v66 = vld [vmem:[%s1 + $0xf0] sm:$0xff]
  %v67 = vld [vmem:[%s1 + $0xf8] sm:$0xff]
  %v70 = vunpack.c.l.b16 %v34
  %v71 = vunpack.c.l.b16 %v35
  %v72 = vpack.c.b16 %v71, %v70
  %v106 = vunpack.c.l.b16 %v36
  %v107 = vunpack.c.h.b16 %v36
  %v108 = vunpack.c.l.b16 %v37
  %v109 = vunpack.c.h.b16 %v37
  %v110 = vunpack.c.l.b16 %v38
  %v111 = vunpack.c.h.b16 %v38
  %v112 = vunpack.c.l.b16 %v39
  %v113 = vunpack.c.h.b16 %v39
  %v114 = vunpack.c.l.b16 %v40
  %v115 = vunpack.c.h.b16 %v40
  %v116 = vunpack.c.l.b16 %v41
  %v117 = vunpack.c.h.b16 %v41
  %v118 = vunpack.c.l.b16 %v42
  %v119 = vunpack.c.h.b16 %v42
  %v120 = vunpack.c.l.b16 %v43
  %v121 = vunpack.c.h.b16 %v43
  %v122 = vunpack.c.l.b16 %v44
  %v123 = vunpack.c.h.b16 %v44
  %v124 = vunpack.c.l.b16 %v45
  %v125 = vunpack.c.h.b16 %v45
  %v126 = vunpack.c.l.b16 %v46
  %v127 = vunpack.c.h.b16 %v46
  %v128 = vunpack.c.l.b16 %v47
  %v129 = vunpack.c.h.b16 %v47
  %v130 = vunpack.c.l.b16 %v48
  %v131 = vunpack.c.h.b16 %v48
  %v132 = vunpack.c.l.b16 %v49
  %v133 = vunpack.c.h.b16 %v49
  %v134 = vunpack.c.l.b16 %v50
  %v135 = vunpack.c.h.b16 %v50
  %v136 = vunpack.c.l.b16 %v51
  %v137 = vunpack.c.h.b16 %v51
  %v138 = vunpack.c.l.b16 %v52
  %v139 = vunpack.c.h.b16 %v52
  %v140 = vunpack.c.l.b16 %v53
  %v141 = vunpack.c.h.b16 %v53
  %v142 = vunpack.c.l.b16 %v54
  %v143 = vunpack.c.h.b16 %v54
  %v144 = vunpack.c.l.b16 %v55
  %v145 = vunpack.c.h.b16 %v55
  %v146 = vunpack.c.l.b16 %v56
  %v147 = vunpack.c.h.b16 %v56
  %v148 = vunpack.c.l.b16 %v57
  %v149 = vunpack.c.h.b16 %v57
  %v150 = vunpack.c.l.b16 %v58
  %v151 = vunpack.c.h.b16 %v58
  %v152 = vunpack.c.l.b16 %v59
  %v153 = vunpack.c.h.b16 %v59
  %v154 = vunpack.c.l.b16 %v60
  %v155 = vunpack.c.h.b16 %v60
  %v156 = vunpack.c.l.b16 %v61
  %v157 = vunpack.c.h.b16 %v61
  %v158 = vunpack.c.l.b16 %v62
  %v159 = vunpack.c.h.b16 %v62
  %v160 = vunpack.c.l.b16 %v63
  %v161 = vunpack.c.h.b16 %v63
  %v162 = vunpack.c.l.b16 %v64
  %v163 = vunpack.c.h.b16 %v64
  %v164 = vunpack.c.l.b16 %v65
  %v165 = vunpack.c.h.b16 %v65
  %v166 = vunpack.c.l.b16 %v66
  %v167 = vunpack.c.h.b16 %v66
  %v168 = vunpack.c.l.b16 %v67
  %v169 = vunpack.c.h.b16 %v67
  %v170 = vpack.c.b16 %v110, %v106
  %v171 = vpack.c.b16 %v111, %v107
  %v172 = vpack.c.b16 %v112, %v108
  %v173 = vpack.c.b16 %v113, %v109
  %v174 = vpack.c.b16 %v118, %v114
  %v175 = vpack.c.b16 %v119, %v115
  %v176 = vpack.c.b16 %v120, %v116
  %v177 = vpack.c.b16 %v121, %v117
  %v178 = vpack.c.b16 %v126, %v122
  %v179 = vpack.c.b16 %v127, %v123
  %v180 = vpack.c.b16 %v128, %v124
  %v181 = vpack.c.b16 %v129, %v125
  %v182 = vpack.c.b16 %v134, %v130
  %v183 = vpack.c.b16 %v135, %v131
  %v184 = vpack.c.b16 %v136, %v132
  %v185 = vpack.c.b16 %v137, %v133
  %v186 = vpack.c.b16 %v142, %v138
  %v187 = vpack.c.b16 %v143, %v139
  %v188 = vpack.c.b16 %v144, %v140
  %v189 = vpack.c.b16 %v145, %v141
  %v190 = vpack.c.b16 %v150, %v146
  %v191 = vpack.c.b16 %v151, %v147
  %v192 = vpack.c.b16 %v152, %v148
  %v193 = vpack.c.b16 %v153, %v149
  %v194 = vpack.c.b16 %v158, %v154
  %v195 = vpack.c.b16 %v159, %v155
  %v196 = vpack.c.b16 %v160, %v156
  %v197 = vpack.c.b16 %v161, %v157
  %v198 = vpack.c.b16 %v166, %v162
  %v199 = vpack.c.b16 %v167, %v163
  %v200 = vpack.c.b16 %v168, %v164
  %v201 = vpack.c.b16 %v169, %v165
  %234 = vmatpush.bf16.msra.mxu0 %v198
  %235 = vmatpush.bf16.msra.mxu0 %v194
  %236 = vmatpush.bf16.msra.mxu0 %v190
  %237 = vmatpush.bf16.msra.mxu0 %v186
  %238 = vmatpush.bf16.msra.mxu0 %v182
  %239 = vmatpush.bf16.msra.mxu0 %v178
  %240 = vmatpush.bf16.msra.mxu0 %v174
  %241 = vmatpush.bf16.msra.mxu0 %v170
  %242 = vmatmul.bf16.gmra.mxu0 %v72
  %v243 = vpop.f32.mrf.mxu0
  %v244 = vadd.f32 0.0, %v243
  %v245 = vpop.f32.mrf.mxu0
  %v246 = vadd.f32 0.0, %v245
  %247 = vdwg.mxu0
  %248 = vmatpush.bf16.msra.mxu0 %v199
  %249 = vmatpush.bf16.msra.mxu0 %v195
  %250 = vmatpush.bf16.msra.mxu0 %v191
  %251 = vmatpush.bf16.msra.mxu0 %v187
  %252 = vmatpush.bf16.msra.mxu0 %v183
  %253 = vmatpush.bf16.msra.mxu0 %v179
  %254 = vmatpush.bf16.msra.mxu0 %v175
  %255 = vmatpush.bf16.msra.mxu0 %v171
  %256 = vmatmul.bf16.gmra.mxu0 %v72
  %v257 = vpop.f32.mrf.mxu0
  %v258 = vadd.f32 0.0, %v257
  %v259 = vpop.f32.mrf.mxu0
  %v260 = vadd.f32 0.0, %v259
  %261 = vdwg.mxu0
  %262 = vmatpush.bf16.msra.mxu0 %v200
  %263 = vmatpush.bf16.msra.mxu0 %v196
  %264 = vmatpush.bf16.msra.mxu0 %v192
  %265 = vmatpush.bf16.msra.mxu0 %v188
  %266 = vmatpush.bf16.msra.mxu0 %v184
  %267 = vmatpush.bf16.msra.mxu0 %v180
  %268 = vmatpush.bf16.msra.mxu0 %v176
  %269 = vmatpush.bf16.msra.mxu0 %v172
  %270 = vmatmul.bf16.gmra.mxu0 %v72
  %v271 = vpop.f32.mrf.mxu0
  %v272 = vadd.f32 0.0, %v271
  %v273 = vpop.f32.mrf.mxu0
  %v274 = vadd.f32 0.0, %v273
  %275 = vdwg.mxu0
  %276 = vmatpush.bf16.msra.mxu0 %v201
  %277 = vmatpush.bf16.msra.mxu0 %v197
  %278 = vmatpush.bf16.msra.mxu0 %v193
  %279 = vmatpush.bf16.msra.mxu0 %v189
  %280 = vmatpush.bf16.msra.mxu0 %v185
  %281 = vmatpush.bf16.msra.mxu0 %v181
  %282 = vmatpush.bf16.msra.mxu0 %v177
  %283 = vmatpush.bf16.msra.mxu0 %v173
  %284 = vmatmul.bf16.gmra.mxu0 %v72
  %v285 = vpop.f32.mrf.mxu0
  %v286 = vadd.f32 0.0, %v285
  %v287 = vpop.f32.mrf.mxu0
  %v288 = vadd.f32 0.0, %v287
  %289 = vdwg.mxu0
  %v290 = vadd.f32 %v26, %v244
  %v291 = vadd.f32 %v27, %v258
  %v292 = vadd.f32 %v28, %v272
  %v293 = vadd.f32 %v29, %v286
  %v294 = vadd.f32 %v30, %v246
  %v295 = vadd.f32 %v31, %v260
  %v296 = vadd.f32 %v32, %v274
  %v297 = vadd.f32 %v33, %v288
  %298 = vst [vmem:[#allocation2] sm:$0xff] %v290
  %299 = vst [vmem:[#allocation2 + $0x8] sm:$0xff] %v291
  %300 = vst [vmem:[#allocation2 + $0x10] sm:$0xff] %v292
  %301 = vst [vmem:[#allocation2 + $0x18] sm:$0xff] %v293
  %302 = vst [vmem:[#allocation2 + $0x20] sm:$0x3] %v294
  %303 = vst [vmem:[#allocation2 + $0x28] sm:$0x3] %v295
  %304 = vst [vmem:[#allocation2 + $0x30] sm:$0x3] %v296
  %305 = vst [vmem:[#allocation2 + $0x38] sm:$0x3] %v297
  // Predicated region
  $region18: #{_lambda_.17} parent=0 // pred_check
    %p306 = pneg %p14
  $region19: #{_lambda_.17} parent=0 // pred_check_branch
    %308 = sbr.rel (%p306) target = $region21
  $region20: #{_lambda_.17} parent=0 // pred_region
    %v309 = vld [vmem:[#allocation2] sm:$0xff]
    %v310 = vld [vmem:[#allocation2 + $0x8] sm:$0xff]
    %v311 = vld [vmem:[#allocation2 + $0x10] sm:$0xff]
    %v312 = vld [vmem:[#allocation2 + $0x18] sm:$0xff]
    %v313 = vld [vmem:[#allocation2 + $0x20] sm:$0x3]
    %v314 = vld [vmem:[#allocation2 + $0x28] sm:$0x3]
    %v315 = vld [vmem:[#allocation2 + $0x30] sm:$0x3]
    %v316 = vld [vmem:[#allocation2 + $0x38] sm:$0x3]
    %v317 = vld [vmem:[%s2] sm:$0xf]
    %v319 = vperm.slane %v317, 0
    %v320 = vperm.slane %v317, 1
    %v321 = vperm.slane %v317, 2
    %v322 = vperm.slane %v317, 3
    %v327 = vadd.f32 %v309, %v319
    %v328 = vadd.f32 %v310, %v320
    %v329 = vadd.f32 %v311, %v321
    %v330 = vadd.f32 %v312, %v322
    %v331 = vadd.f32 %v313, %v319
    %v332 = vadd.f32 %v314, %v320
    %v333 = vadd.f32 %v315, %v321
    %v334 = vadd.f32 %v316, %v322
    %v335 = vmul.f32 %v327, 0.5
    %v336 = vmul.f32 %v328, 0.5
    %v337 = vmul.f32 %v329, 0.5
    %v338 = vmul.f32 %v330, 0.5
    %v339 = vmul.f32 %v331, 0.5
    %v340 = vmul.f32 %v332, 0.5
    %v341 = vmul.f32 %v333, 0.5
    %v342 = vmul.f32 %v334, 0.5
    %v343 = vmul.f32 %v327, 0.70710677
    %v344 = vmul.f32 %v328, 0.70710677
    %v345 = vmul.f32 %v329, 0.70710677
    %v346 = vmul.f32 %v330, 0.70710677
    %v347 = vmul.f32 %v331, 0.70710677
    %v348 = vmul.f32 %v332, 0.70710677
    %v349 = vmul.f32 %v333, 0.70710677
    %v350 = vmul.f32 %v334, 0.70710677
    %v351 = vmul.f32 %v343, %v343
    %v352 = vmin.f32 16.0, %v351
    %v353 = vmul.f32 %v352, 2.1237322e-06
    %v354 = vadd.f32 %v353, 0.00028619796
    %v355 = vmul.f32 %v352, %v354
    %v356 = vadd.f32 %v355, 0.0036580483
    %v357 = vmul.f32 %v352, %v356
    %v358 = vadd.f32 %v357, 0.05243302
    %v359 = vmul.f32 %v352, %v358
    %v360 = vadd.f32 %v359, 0.18741608
    %v361 = vmul.f32 %v352, %v360
    %v362 = vadd.f32 %v361, 1.1283791
    %v363 = vmul.f32 %v343, %v362
    %v364 = vmul.f32 %v352, 3.8918573e-05
    %v365 = vadd.f32 %v364, 0.001143296
    %v366 = vmul.f32 %v352, %v365
    %v367 = vadd.f32 %v366, 0.014752088
    %v368 = vmul.f32 %v352, %v367
    %v369 = vadd.f32 %v368, 0.112945676
    %v370 = vmul.f32 %v352, %v369
    %v371 = vadd.f32 %v370, 0.4994258
    %v372 = vmul.f32 %v352, %v371
    %v373 = vadd.f32 %v372, 1.0
    %v374 = vrcp.pop %v373
    %v375 = vmul.f32 %v373, %v374
    %v376 = vsub.f32 1.0, %v375
    %v377 = vmul.f32 %v374, %v376
    %v378 = vadd.f32 %v374, %v377
    %vm379 = vweird.f32 %v373
    %vm380 = vweird.f32 %v374
    %vm381 = vmor %vm379, %vm380
    %v382 = vsel %vm381, %v374, %v378
    %v383 = vand.u32 2147483647, %v373
    %vm384 = vcmp.eq.f32.partialorder %v383, 8.507059e+37
    %v385 = vand.u32 %v373, 2147483648
    %v386 = vor.u32 1.1754944e-38, %v385
    %v387 = vsel %vm384, %v386, %v382
    %v388 = vmul.f32 %v363, %v387
    %v389 = vmin.f32 %v388, 1.0
    %v390 = vmax.f32 %v389, -1.0
    %v391 = vmul.f32 %v344, %v344
    %v392 = vmin.f32 16.0, %v391
    %v393 = vmul.f32 %v392, 2.1237322e-06
    %v394 = vadd.f32 %v393, 0.00028619796
    %v395 = vmul.f32 %v392, %v394
    %v396 = vadd.f32 %v395, 0.0036580483
    %v397 = vmul.f32 %v392, %v396
    %v398 = vadd.f32 %v397, 0.05243302
    %v399 = vmul.f32 %v392, %v398
    %v400 = vadd.f32 %v399, 0.18741608
    %v401 = vmul.f32 %v392, %v400
    %v402 = vadd.f32 %v401, 1.1283791
    %v403 = vmul.f32 %v344, %v402
    %v404 = vmul.f32 %v392, 3.8918573e-05
    %v405 = vadd.f32 %v404, 0.001143296
    %v406 = vmul.f32 %v392, %v405
    %v407 = vadd.f32 %v406, 0.014752088
    %v408 = vmul.f32 %v392, %v407
    %v409 = vadd.f32 %v408, 0.112945676
    %v410 = vmul.f32 %v392, %v409
    %v411 = vadd.f32 %v410, 0.4994258
    %v412 = vmul.f32 %v392, %v411
    %v413 = vadd.f32 %v412, 1.0
    %v414 = vrcp.pop %v413
    %v415 = vmul.f32 %v413, %v414
    %v416 = vsub.f32 1.0, %v415
    %v417 = vmul.f32 %v414, %v416
    %v418 = vadd.f32 %v414, %v417
    %vm419 = vweird.f32 %v413
    %vm420 = vweird.f32 %v414
    %vm421 = vmor %vm419, %vm420
    %v422 = vsel %vm421, %v414, %v418
    %v423 = vand.u32 2147483647, %v413
    %vm424 = vcmp.eq.f32.partialorder %v423, 8.507059e+37
    %v425 = vand.u32 %v413, 2147483648
    %v426 = vor.u32 1.1754944e-38, %v425
    %v427 = vsel %vm424, %v426, %v422
    %v428 = vmul.f32 %v403, %v427
    %v429 = vmin.f32 %v428, 1.0
    %v430 = vmax.f32 %v429, -1.0
    %v431 = vmul.f32 %v345, %v345
    %v432 = vmin.f32 16.0, %v431
    %v433 = vmul.f32 %v432, 2.1237322e-06
    %v434 = vadd.f32 %v433, 0.00028619796
    %v435 = vmul.f32 %v432, %v434
    %v436 = vadd.f32 %v435, 0.0036580483
    %v437 = vmul.f32 %v432, %v436
    %v438 = vadd.f32 %v437, 0.05243302
    %v439 = vmul.f32 %v432, %v438
    %v440 = vadd.f32 %v439, 0.18741608
    %v441 = vmul.f32 %v432, %v440
    %v442 = vadd.f32 %v441, 1.1283791
    %v443 = vmul.f32 %v345, %v442
    %v444 = vmul.f32 %v432, 3.8918573e-05
    %v445 = vadd.f32 %v444, 0.001143296
    %v446 = vmul.f32 %v432, %v445
    %v447 = vadd.f32 %v446, 0.014752088
    %v448 = vmul.f32 %v432, %v447
    %v449 = vadd.f32 %v448, 0.112945676
    %v450 = vmul.f32 %v432, %v449
    %v451 = vadd.f32 %v450, 0.4994258
    %v452 = vmul.f32 %v432, %v451
    %v453 = vadd.f32 %v452, 1.0
    %v454 = vrcp.pop %v453
    %v455 = vmul.f32 %v453, %v454
    %v456 = vsub.f32 1.0, %v455
    %v457 = vmul.f32 %v454, %v456
    %v458 = vadd.f32 %v454, %v457
    %vm459 = vweird.f32 %v453
    %vm460 = vweird.f32 %v454
    %vm461 = vmor %vm459, %vm460
    %v462 = vsel %vm461, %v454, %v458
    %v463 = vand.u32 2147483647, %v453
    %vm464 = vcmp.eq.f32.partialorder %v463, 8.507059e+37
    %v465 = vand.u32 %v453, 2147483648
    %v466 = vor.u32 1.1754944e-38, %v465
    %v467 = vsel %vm464, %v466, %v462
    %v468 = vmul.f32 %v443, %v467
    %v469 = vmin.f32 %v468, 1.0
    %v470 = vmax.f32 %v469, -1.0
    %v471 = vmul.f32 %v346, %v346
    %v472 = vmin.f32 16.0, %v471
    %v473 = vmul.f32 %v472, 2.1237322e-06
    %v474 = vadd.f32 %v473, 0.00028619796
    %v475 = vmul.f32 %v472, %v474
    %v476 = vadd.f32 %v475, 0.0036580483
    %v477 = vmul.f32 %v472, %v476
    %v478 = vadd.f32 %v477, 0.05243302
    %v479 = vmul.f32 %v472, %v478
    %v480 = vadd.f32 %v479, 0.18741608
    %v481 = vmul.f32 %v472, %v480
    %v482 = vadd.f32 %v481, 1.1283791
    %v483 = vmul.f32 %v346, %v482
    %v484 = vmul.f32 %v472, 3.8918573e-05
    %v485 = vadd.f32 %v484, 0.001143296
    %v486 = vmul.f32 %v472, %v485
    %v487 = vadd.f32 %v486, 0.014752088
    %v488 = vmul.f32 %v472, %v487
    %v489 = vadd.f32 %v488, 0.112945676
    %v490 = vmul.f32 %v472, %v489
    %v491 = vadd.f32 %v490, 0.4994258
    %v492 = vmul.f32 %v472, %v491
    %v493 = vadd.f32 %v492, 1.0
    %v494 = vrcp.pop %v493
    %v495 = vmul.f32 %v493, %v494
    %v496 = vsub.f32 1.0, %v495
    %v497 = vmul.f32 %v494, %v496
    %v498 = vadd.f32 %v494, %v497
    %vm499 = vweird.f32 %v493
    %vm500 = vweird.f32 %v494
    %vm501 = vmor %vm499, %vm500
    %v502 = vsel %vm501, %v494, %v498
    %v503 = vand.u32 2147483647, %v493
    %vm504 = vcmp.eq.f32.partialorder %v503, 8.507059e+37
    %v505 = vand.u32 %v493, 2147483648
    %v506 = vor.u32 1.1754944e-38, %v505
    %v507 = vsel %vm504, %v506, %v502
    %v508 = vmul.f32 %v483, %v507
    %v509 = vmin.f32 %v508, 1.0
    %v510 = vmax.f32 %v509, -1.0
    %v511 = vmul.f32 %v347, %v347
    %v512 = vmin.f32 16.0, %v511
    %v513 = vmul.f32 %v512, 2.1237322e-06
    %v514 = vadd.f32 %v513, 0.00028619796
    %v515 = vmul.f32 %v512, %v514
    %v516 = vadd.f32 %v515, 0.0036580483
    %v517 = vmul.f32 %v512, %v516
    %v518 = vadd.f32 %v517, 0.05243302
    %v519 = vmul.f32 %v512, %v518
    %v520 = vadd.f32 %v519, 0.18741608
    %v521 = vmul.f32 %v512, %v520
    %v522 = vadd.f32 %v521, 1.1283791
    %v523 = vmul.f32 %v347, %v522
    %v524 = vmul.f32 %v512, 3.8918573e-05
    %v525 = vadd.f32 %v524, 0.001143296
    %v526 = vmul.f32 %v512, %v525
    %v527 = vadd.f32 %v526, 0.014752088
    %v528 = vmul.f32 %v512, %v527
    %v529 = vadd.f32 %v528, 0.112945676
    %v530 = vmul.f32 %v512, %v529
    %v531 = vadd.f32 %v530, 0.4994258
    %v532 = vmul.f32 %v512, %v531
    %v533 = vadd.f32 %v532, 1.0
    %v534 = vrcp.pop %v533
    %v535 = vmul.f32 %v533, %v534
    %v536 = vsub.f32 1.0, %v535
    %v537 = vmul.f32 %v534, %v536
    %v538 = vadd.f32 %v534, %v537
    %vm539 = vweird.f32 %v533
    %vm540 = vweird.f32 %v534
    %vm541 = vmor %vm539, %vm540
    %v542 = vsel %vm541, %v534, %v538
    %v543 = vand.u32 2147483647, %v533
    %vm544 = vcmp.eq.f32.partialorder %v543, 8.507059e+37
    %v545 = vand.u32 %v533, 2147483648
    %v546 = vor.u32 1.1754944e-38, %v545
    %v547 = vsel %vm544, %v546, %v542
    %v548 = vmul.f32 %v523, %v547
    %v549 = vmin.f32 %v548, 1.0
    %v550 = vmax.f32 %v549, -1.0
    %v551 = vmul.f32 %v348, %v348
    %v552 = vmin.f32 16.0, %v551
    %v553 = vmul.f32 %v552, 2.1237322e-06
    %v554 = vadd.f32 %v553, 0.00028619796
    %v555 = vmul.f32 %v552, %v554
    %v556 = vadd.f32 %v555, 0.0036580483
    %v557 = vmul.f32 %v552, %v556
    %v558 = vadd.f32 %v557, 0.05243302
    %v559 = vmul.f32 %v552, %v558
    %v560 = vadd.f32 %v559, 0.18741608
    %v561 = vmul.f32 %v552, %v560
    %v562 = vadd.f32 %v561, 1.1283791
    %v563 = vmul.f32 %v348, %v562
    %v564 = vmul.f32 %v552, 3.8918573e-05
    %v565 = vadd.f32 %v564, 0.001143296
    %v566 = vmul.f32 %v552, %v565
    %v567 = vadd.f32 %v566, 0.014752088
    %v568 = vmul.f32 %v552, %v567
    %v569 = vadd.f32 %v568, 0.112945676
    %v570 = vmul.f32 %v552, %v569
    %v571 = vadd.f32 %v570, 0.4994258
    %v572 = vmul.f32 %v552, %v571
    %v573 = vadd.f32 %v572, 1.0
    %v574 = vrcp.pop %v573
    %v575 = vmul.f32 %v573, %v574
    %v576 = vsub.f32 1.0, %v575
    %v577 = vmul.f32 %v574, %v576
    %v578 = vadd.f32 %v574, %v577
    %vm579 = vweird.f32 %v573
    %vm580 = vweird.f32 %v574
    %vm581 = vmor %vm579, %vm580
    %v582 = vsel %vm581, %v574, %v578
    %v583 = vand.u32 2147483647, %v573
    %vm584 = vcmp.eq.f32.partialorder %v583, 8.507059e+37
    %v585 = vand.u32 %v573, 2147483648
    %v586 = vor.u32 1.1754944e-38, %v585
    %v587 = vsel %vm584, %v586, %v582
    %v588 = vmul.f32 %v563, %v587
    %v589 = vmin.f32 %v588, 1.0
    %v590 = vmax.f32 %v589, -1.0
    %v591 = vmul.f32 %v349, %v349
    %v592 = vmin.f32 16.0, %v591
    %v593 = vmul.f32 %v592, 2.1237322e-06
    %v594 = vadd.f32 %v593, 0.00028619796
    %v595 = vmul.f32 %v592, %v594
    %v596 = vadd.f32 %v595, 0.0036580483
    %v597 = vmul.f32 %v592, %v596
    %v598 = vadd.f32 %v597, 0.05243302
    %v599 = vmul.f32 %v592, %v598
    %v600 = vadd.f32 %v599, 0.18741608
    %v601 = vmul.f32 %v592, %v600
    %v602 = vadd.f32 %v601, 1.1283791
    %v603 = vmul.f32 %v349, %v602
    %v604 = vmul.f32 %v592, 3.8918573e-05
    %v605 = vadd.f32 %v604, 0.001143296
    %v606 = vmul.f32 %v592, %v605
    %v607 = vadd.f32 %v606, 0.014752088
    %v608 = vmul.f32 %v592, %v607
    %v609 = vadd.f32 %v608, 0.112945676
    %v610 = vmul.f32 %v592, %v609
    %v611 = vadd.f32 %v610, 0.4994258
    %v612 = vmul.f32 %v592, %v611
    %v613 = vadd.f32 %v612, 1.0
    %v614 = vrcp.pop %v613
    %v615 = vmul.f32 %v613, %v614
    %v616 = vsub.f32 1.0, %v615
    %v617 = vmul.f32 %v614, %v616
    %v618 = vadd.f32 %v614, %v617
    %vm619 = vweird.f32 %v613
    %vm620 = vweird.f32 %v614
    %vm621 = vmor %vm619, %vm620
    %v622 = vsel %vm621, %v614, %v618
    %v623 = vand.u32 2147483647, %v613
    %vm624 = vcmp.eq.f32.partialorder %v623, 8.507059e+37
    %v625 = vand.u32 %v613, 2147483648
    %v626 = vor.u32 1.1754944e-38, %v625
    %v627 = vsel %vm624, %v626, %v622
    %v628 = vmul.f32 %v603, %v627
    %v629 = vmin.f32 %v628, 1.0
    %v630 = vmax.f32 %v629, -1.0
    %v631 = vmul.f32 %v350, %v350
    %v632 = vmin.f32 16.0, %v631
    %v633 = vmul.f32 %v632, 2.1237322e-06
    %v634 = vadd.f32 %v633, 0.00028619796
    %v635 = vmul.f32 %v632, %v634
    %v636 = vadd.f32 %v635, 0.0036580483
    %v637 = vmul.f32 %v632, %v636
    %v638 = vadd.f32 %v637, 0.05243302
    %v639 = vmul.f32 %v632, %v638
    %v640 = vadd.f32 %v639, 0.18741608
    %v641 = vmul.f32 %v632, %v640
    %v642 = vadd.f32 %v641, 1.1283791
    %v643 = vmul.f32 %v350, %v642
    %v644 = vmul.f32 %v632, 3.8918573e-05
    %v645 = vadd.f32 %v644, 0.001143296
    %v646 = vmul.f32 %v632, %v645
    %v647 = vadd.f32 %v646, 0.014752088
    %v648 = vmul.f32 %v632, %v647
    %v649 = vadd.f32 %v648, 0.112945676
    %v650 = vmul.f32 %v632, %v649
    %v651 = vadd.f32 %v650, 0.4994258
    %v652 = vmul.f32 %v632, %v651
    %v653 = vadd.f32 %v652, 1.0
    %v654 = vrcp.pop %v653
    %v655 = vmul.f32 %v653, %v654
    %v656 = vsub.f32 1.0, %v655
    %v657 = vmul.f32 %v654, %v656
    %v658 = vadd.f32 %v654, %v657
    %vm659 = vweird.f32 %v653
    %vm660 = vweird.f32 %v654
    %vm661 = vmor %vm659, %vm660
    %v662 = vsel %vm661, %v654, %v658
    %v663 = vand.u32 2147483647, %v653
    %vm664 = vcmp.eq.f32.partialorder %v663, 8.507059e+37
    %v665 = vand.u32 %v653, 2147483648
    %v666 = vor.u32 1.1754944e-38, %v665
    %v667 = vsel %vm664, %v666, %v662
    %v668 = vmul.f32 %v643, %v667
    %v669 = vmin.f32 %v668, 1.0
    %v670 = vmax.f32 %v669, -1.0
    %v671 = vadd.f32 %v390, 1.0
    %v672 = vadd.f32 %v430, 1.0
    %v673 = vadd.f32 %v470, 1.0
    %v674 = vadd.f32 %v510, 1.0
    %v675 = vadd.f32 %v550, 1.0
    %v676 = vadd.f32 %v590, 1.0
    %v677 = vadd.f32 %v630, 1.0
    %v678 = vadd.f32 %v670, 1.0
    %v679 = vmul.f32 %v335, %v671
    %v680 = vmul.f32 %v336, %v672
    %v681 = vmul.f32 %v337, %v673
    %v682 = vmul.f32 %v338, %v674
    %v683 = vmul.f32 %v339, %v675
    %v684 = vmul.f32 %v340, %v676
    %v685 = vmul.f32 %v341, %v677
    %v686 = vmul.f32 %v342, %v678
    %v687 = vpack.c.bf16 %v680, %v679
    %v688 = vpack.c.bf16 %v682, %v681
    %v689 = vpack.c.bf16 %v684, %v683
    %v690 = vpack.c.bf16 %v686, %v685
    %691 = vst [vmem:[%s3] sm:$0xff] %v687
    %692 = vst [vmem:[%s3 + $0x8] sm:$0xff] %v688
    %693 = vst [vmem:[%s3 + $0x10] sm:$0x11] %v689
    %694 = vst [vmem:[%s3 + $0x18] sm:$0x11] %v690
  $region21: #{_lambda_.17} parent=0 // pred_fallthru
    _
  // Predicated region
  $region22: #{_lambda_.17} parent=0 // pred_check
    _
  $region23: #{_lambda_.17} parent=0 // pred_check_branch
    %696 = sbr.rel (0) target = $region25
  $region24: #{_lambda_.17} parent=0 // pred_region
    _
  $region25: #{_lambda_.17} parent=0 // pred_fallthru
    _
  // Predicated region
  $region26: #{_lambda_.17} parent=0 // pred_check
    _
  $region27: #{_lambda_.17} parent=0 // pred_check_branch
    %698 = sbr.rel (0) target = $region29
  $region28: #{_lambda_.17} parent=0 // pred_region
    _
  $region29: #{_lambda_.17} parent=0 // pred_fallthru
    _

// kernel: _lambda_.18
$region0: #{_lambda_.18}
  #allocation0 [shape = 'u32[]', space=smem, size = 0x4, offset = 0x4, fixed_abs, tag = 'smem constant byte address 0x4 - core index']
  #allocation1 [shape = 'u32[72,128]{1,0:T(1,128)}', space=vmem, size = 0x9000, scoped, tag = 'internal scratch']
  #allocation2 [shape = 'f32[10,128]{1,0:T(8,128)}', space=vmem, size = 0x2000, scoped, tag = 'scratch operand']
  %s0 = inlined_call_operand.vmem [shape: bf16[10,512], index: 0, kind: input, shape index: {}]
  %s1 = inlined_call_operand.vmem [shape: bf16[512,128], index: 1, kind: input, shape index: {}]
  %s2 = inlined_call_operand.vmem [shape: f32[1,128], index: 2, kind: input, shape index: {}]
  %s3 = inlined_call_operand.vmem [shape: bf16[10,128], index: 3, kind: input, shape index: {}]
  %s4 = inlined_call_operand.vmem [shape: f32[1,128], index: 4, kind: input, shape index: {}]
  %s5 = inlined_call_operand.vmem [shape: f32[1,128], index: 5, kind: input, shape index: {}]
  %s6 = inlined_call_operand.vmem [shape: f32[1,128], index: 6, kind: input, shape index: {}]
  %s7 = inlined_call_operand.vmem [shape: bf16[10,128], index: 7, kind: output, shape index: {0}]
  %s8 = inlined_call_operand.vmem [shape: bf16[10,128], index: 8, kind: output, shape index: {1}]
  %9 = xla_tuple %s7, %s8
  %s10 = sld [smem:[#allocation0]]
  $region54: #{_lambda_.18} parent=0
    _
  %s12 = ssub.s32 1, %s10
  %s13 = scalar_select 0, %s12, %s10
  // Predicated region
  $region2: #{_lambda_.18} parent=0 // pred_check
    _
  $region3: #{_lambda_.18} parent=0 // pred_check_branch
    %15 = sbr.rel (0) target = $region5
  $region4: #{_lambda_.18} parent=0 // pred_region
    _
  $region5: #{_lambda_.18} parent=0 // pred_fallthru
    _
  // Predicated region
  $region6: #{_lambda_.18} parent=0 // pred_check
    _
  $region7: #{_lambda_.18} parent=0 // pred_check_branch
    %17 = sbr.rel (0) target = $region9
  $region8: #{_lambda_.18} parent=0 // pred_region
    _
  $region9: #{_lambda_.18} parent=0 // pred_fallthru
    _
  // Predicated region
  $region10: #{_lambda_.18} parent=0 // pred_check
    _
  $region11: #{_lambda_.18} parent=0 // pred_check_branch
    %19 = sbr.rel (0) target = $region13
  $region12: #{_lambda_.18} parent=0 // pred_region
    _
  $region13: #{_lambda_.18} parent=0 // pred_fallthru
    _
  // Predicated region
  $region14: #{_lambda_.18} parent=0 // pred_check
    _
  $region15: #{_lambda_.18} parent=0 // pred_check_branch
    %21 = sbr.rel (0) target = $region17
  $region16: #{_lambda_.18} parent=0 // pred_region
    _
  $region17: #{_lambda_.18} parent=0 // pred_fallthru
    _
  // Predicated region
  $region18: #{_lambda_.18} parent=0 // pred_check
    _
  $region19: #{_lambda_.18} parent=0 // pred_check_branch
    %23 = sbr.rel (0) target = $region21
  $region20: #{_lambda_.18} parent=0 // pred_region
    _
  $region21: #{_lambda_.18} parent=0 // pred_fallthru
    _
  // Predicated region
  $region22: #{_lambda_.18} parent=0 // pred_check
    _
  $region23: #{_lambda_.18} parent=0 // pred_check_branch
    %25 = sbr.rel (0) target = $region25
  $region24: #{_lambda_.18} parent=0 // pred_region
    _
  $region25: #{_lambda_.18} parent=0 // pred_fallthru
    _
  // Predicated region
  $region26: #{_lambda_.18} parent=0 // pred_check
    _
  $region27: #{_lambda_.18} parent=0 // pred_check_branch
    %27 = sbr.rel (0) target = $region29
  $region28: #{_lambda_.18} parent=0 // pred_region
    _
  $region29: #{_lambda_.18} parent=0 // pred_fallthru
    _
  %p28 = scmp.eq.s32.totalorder 0, 0
  // Predicated region
  $region30: #{_lambda_.18} parent=0 // pred_check
    %p29 = pneg %p28
  $region31: #{_lambda_.18} parent=0 // pred_check_branch
    %31 = sbr.rel (%p29) target = $region33
  $region32: #{_lambda_.18} parent=0 // pred_region
    %32 = vst [vmem:[#allocation2] sm:$0xff] 0.0
    %33 = vst [vmem:[#allocation2 + $0x8] sm:$0x3] 0.0
  $region33: #{_lambda_.18} parent=0 // pred_fallthru
    _
  %v34 = vld [vmem:[#allocation2] sm:$0xff]
  %v35 = vld [vmem:[#allocation2 + $0x8] sm:$0x3]
  %v36 = vld [vmem:[%s0] sm:$0xff]
  %v37 = vld [vmem:[%s0 + $0x8] sm:$0xff]
  %v38 = vld [vmem:[%s0 + $0x10] sm:$0x11]
  %v39 = vld [vmem:[%s0 + $0x18] sm:$0x11]
  %v40 = vld [vmem:[%s1] sm:$0xf]
  %v41 = vld [vmem:[%s1 + $0x4] sm:$0xf]
  %v42 = vld [vmem:[%s1 + $0x8] sm:$0xf]
  %v43 = vld [vmem:[%s1 + $0xc] sm:$0xf]
  %v44 = vld [vmem:[%s1 + $0x10] sm:$0xf]
  %v45 = vld [vmem:[%s1 + $0x14] sm:$0xf]
  %v46 = vld [vmem:[%s1 + $0x18] sm:$0xf]
  %v47 = vld [vmem:[%s1 + $0x1c] sm:$0xf]
  %v48 = vld [vmem:[%s1 + $0x20] sm:$0xf]
  %v49 = vld [vmem:[%s1 + $0x24] sm:$0xf]
  %v50 = vld [vmem:[%s1 + $0x28] sm:$0xf]
  %v51 = vld [vmem:[%s1 + $0x2c] sm:$0xf]
  %v52 = vld [vmem:[%s1 + $0x30] sm:$0xf]
  %v53 = vld [vmem:[%s1 + $0x34] sm:$0xf]
  %v54 = vld [vmem:[%s1 + $0x38] sm:$0xf]
  %v55 = vld [vmem:[%s1 + $0x3c] sm:$0xf]
  %v56 = vld [vmem:[%s1 + $0x40] sm:$0xf]
  %v57 = vld [vmem:[%s1 + $0x44] sm:$0xf]
  %v58 = vld [vmem:[%s1 + $0x48] sm:$0xf]
  %v59 = vld [vmem:[%s1 + $0x4c] sm:$0xf]
  %v60 = vld [vmem:[%s1 + $0x50] sm:$0xf]
  %v61 = vld [vmem:[%s1 + $0x54] sm:$0xf]
  %v62 = vld [vmem:[%s1 + $0x58] sm:$0xf]
  %v63 = vld [vmem:[%s1 + $0x5c] sm:$0xf]
  %v64 = vld [vmem:[%s1 + $0x60] sm:$0xf]
  %v65 = vld [vmem:[%s1 + $0x64] sm:$0xf]
  %v66 = vld [vmem:[%s1 + $0x68] sm:$0xf]
  %v67 = vld [vmem:[%s1 + $0x6c] sm:$0xf]
  %v68 = vld [vmem:[%s1 + $0x70] sm:$0xf]
  %v69 = vld [vmem:[%s1 + $0x74] sm:$0xf]
  %v70 = vld [vmem:[%s1 + $0x78] sm:$0xf]
  %v71 = vld [vmem:[%s1 + $0x7c] sm:$0xf]
  %v72 = vld [vmem:[%s1 + $0x80] sm:$0xf]
  %v73 = vld [vmem:[%s1 + $0x84] sm:$0xf]
  %v74 = vld [vmem:[%s1 + $0x88] sm:$0xf]
  %v75 = vld [vmem:[%s1 + $0x8c] sm:$0xf]
  %v76 = vld [vmem:[%s1 + $0x90] sm:$0xf]
  %v77 = vld [vmem:[%s1 + $0x94] sm:$0xf]
  %v78 = vld [vmem:[%s1 + $0x98] sm:$0xf]
  %v79 = vld [vmem:[%s1 + $0x9c] sm:$0xf]
  %v80 = vld [vmem:[%s1 + $0xa0] sm:$0xf]
  %v81 = vld [vmem:[%s1 + $0xa4] sm:$0xf]
  %v82 = vld [vmem:[%s1 + $0xa8] sm:$0xf]
  %v83 = vld [vmem:[%s1 + $0xac] sm:$0xf]
  %v84 = vld [vmem:[%s1 + $0xb0] sm:$0xf]
  %v85 = vld [vmem:[%s1 + $0xb4] sm:$0xf]
  %v86 = vld [vmem:[%s1 + $0xb8] sm:$0xf]
  %v87 = vld [vmem:[%s1 + $0xbc] sm:$0xf]
  %v88 = vld [vmem:[%s1 + $0xc0] sm:$0xf]
  %v89 = vld [vmem:[%s1 + $0xc4] sm:$0xf]
  %v90 = vld [vmem:[%s1 + $0xc8] sm:$0xf]
  %v91 = vld [vmem:[%s1 + $0xcc] sm:$0xf]
  %v92 = vld [vmem:[%s1 + $0xd0] sm:$0xf]
  %v93 = vld [vmem:[%s1 + $0xd4] sm:$0xf]
  %v94 = vld [vmem:[%s1 + $0xd8] sm:$0xf]
  %v95 = vld [vmem:[%s1 + $0xdc] sm:$0xf]
  %v96 = vld [vmem:[%s1 + $0xe0] sm:$0xf]
  %v97 = vld [vmem:[%s1 + $0xe4] sm:$0xf]
  %v98 = vld [vmem:[%s1 + $0xe8] sm:$0xf]
  %v99 = vld [vmem:[%s1 + $0xec] sm:$0xf]
  %v100 = vld [vmem:[%s1 + $0xf0] sm:$0xf]
  %v101 = vld [vmem:[%s1 + $0xf4] sm:$0xf]
  %v102 = vld [vmem:[%s1 + $0xf8] sm:$0xf]
  %v103 = vld [vmem:[%s1 + $0xfc] sm:$0xf]
  %v108 = vunpack.c.l.b16 %v36
  %v109 = vunpack.c.h.b16 %v36
  %v110 = vunpack.c.l.b16 %v37
  %v111 = vunpack.c.h.b16 %v37
  %v112 = vunpack.c.l.b16 %v38
  %v113 = vunpack.c.h.b16 %v38
  %v114 = vunpack.c.l.b16 %v39
  %v115 = vunpack.c.h.b16 %v39
  %v116 = vpack.c.b16 %v112, %v108
  %v117 = vpack.c.b16 %v113, %v109
  %v118 = vpack.c.b16 %v114, %v110
  %v119 = vpack.c.b16 %v115, %v111
  %v188 = vunpack.c.l.b16 %v40
  %v189 = vunpack.c.l.b16 %v41
  %v190 = vunpack.c.l.b16 %v42
  %v191 = vunpack.c.l.b16 %v43
  %v192 = vunpack.c.l.b16 %v44
  %v193 = vunpack.c.l.b16 %v45
  %v194 = vunpack.c.l.b16 %v46
  %v195 = vunpack.c.l.b16 %v47
  %v196 = vunpack.c.l.b16 %v48
  %v197 = vunpack.c.l.b16 %v49
  %v198 = vunpack.c.l.b16 %v50
  %v199 = vunpack.c.l.b16 %v51
  %v200 = vunpack.c.l.b16 %v52
  %v201 = vunpack.c.l.b16 %v53
  %v202 = vunpack.c.l.b16 %v54
  %v203 = vunpack.c.l.b16 %v55
  %v204 = vunpack.c.l.b16 %v56
  %v205 = vunpack.c.l.b16 %v57
  %v206 = vunpack.c.l.b16 %v58
  %v207 = vunpack.c.l.b16 %v59
  %v208 = vunpack.c.l.b16 %v60
  %v209 = vunpack.c.l.b16 %v61
  %v210 = vunpack.c.l.b16 %v62
  %v211 = vunpack.c.l.b16 %v63
  %v212 = vunpack.c.l.b16 %v64
  %v213 = vunpack.c.l.b16 %v65
  %v214 = vunpack.c.l.b16 %v66
  %v215 = vunpack.c.l.b16 %v67
  %v216 = vunpack.c.l.b16 %v68
  %v217 = vunpack.c.l.b16 %v69
  %v218 = vunpack.c.l.b16 %v70
  %v219 = vunpack.c.l.b16 %v71
  %v220 = vunpack.c.l.b16 %v72
  %v221 = vunpack.c.l.b16 %v73
  %v222 = vunpack.c.l.b16 %v74
  %v223 = vunpack.c.l.b16 %v75
  %v224 = vunpack.c.l.b16 %v76
  %v225 = vunpack.c.l.b16 %v77
  %v226 = vunpack.c.l.b16 %v78
  %v227 = vunpack.c.l.b16 %v79
  %v228 = vunpack.c.l.b16 %v80
  %v229 = vunpack.c.l.b16 %v81
  %v230 = vunpack.c.l.b16 %v82
  %v231 = vunpack.c.l.b16 %v83
  %v232 = vunpack.c.l.b16 %v84
  %v233 = vunpack.c.l.b16 %v85
  %v234 = vunpack.c.l.b16 %v86
  %v235 = vunpack.c.l.b16 %v87
  %v236 = vunpack.c.l.b16 %v88
  %v237 = vunpack.c.l.b16 %v89
  %v238 = vunpack.c.l.b16 %v90
  %v239 = vunpack.c.l.b16 %v91
  %v240 = vunpack.c.l.b16 %v92
  %v241 = vunpack.c.l.b16 %v93
  %v242 = vunpack.c.l.b16 %v94
  %v243 = vunpack.c.l.b16 %v95
  %v244 = vunpack.c.l.b16 %v96
  %v245 = vunpack.c.l.b16 %v97
  %v246 = vunpack.c.l.b16 %v98
  %v247 = vunpack.c.l.b16 %v99
  %v248 = vunpack.c.l.b16 %v100
  %v249 = vunpack.c.l.b16 %v101
  %v250 = vunpack.c.l.b16 %v102
  %v251 = vunpack.c.l.b16 %v103
  %v252 = vpack.c.b16 %v189, %v188
  %v253 = vpack.c.b16 %v191, %v190
  %v254 = vpack.c.b16 %v193, %v192
  %v255 = vpack.c.b16 %v195, %v194
  %v256 = vpack.c.b16 %v197, %v196
  %v257 = vpack.c.b16 %v199, %v198
  %v258 = vpack.c.b16 %v201, %v200
  %v259 = vpack.c.b16 %v203, %v202
  %v260 = vpack.c.b16 %v205, %v204
  %v261 = vpack.c.b16 %v207, %v206
  %v262 = vpack.c.b16 %v209, %v208
  %v263 = vpack.c.b16 %v211, %v210
  %v264 = vpack.c.b16 %v213, %v212
  %v265 = vpack.c.b16 %v215, %v214
  %v266 = vpack.c.b16 %v217, %v216
  %v267 = vpack.c.b16 %v219, %v218
  %v268 = vpack.c.b16 %v221, %v220
  %v269 = vpack.c.b16 %v223, %v222
  %v270 = vpack.c.b16 %v225, %v224
  %v271 = vpack.c.b16 %v227, %v226
  %v272 = vpack.c.b16 %v229, %v228
  %v273 = vpack.c.b16 %v231, %v230
  %v274 = vpack.c.b16 %v233, %v232
  %v275 = vpack.c.b16 %v235, %v234
  %v276 = vpack.c.b16 %v237, %v236
  %v277 = vpack.c.b16 %v239, %v238
  %v278 = vpack.c.b16 %v241, %v240
  %v279 = vpack.c.b16 %v243, %v242
  %v280 = vpack.c.b16 %v245, %v244
  %v281 = vpack.c.b16 %v247, %v246
  %v282 = vpack.c.b16 %v249, %v248
  %v283 = vpack.c.b16 %v251, %v250
  %316 = vmatpush.bf16.msra.mxu0 %v259
  %317 = vmatpush.bf16.msra.mxu0 %v258
  %318 = vmatpush.bf16.msra.mxu0 %v257
  %319 = vmatpush.bf16.msra.mxu0 %v256
  %320 = vmatpush.bf16.msra.mxu0 %v255
  %321 = vmatpush.bf16.msra.mxu0 %v254
  %322 = vmatpush.bf16.msra.mxu0 %v253
  %323 = vmatpush.bf16.msra.mxu0 %v252
  %324 = vmatmul.bf16.gmra.mxu0 %v116
  %v325 = vpop.f32.mrf.mxu0
  %v326 = vadd.f32 0.0, %v325
  %v327 = vpop.f32.mrf.mxu0
  %v328 = vadd.f32 0.0, %v327
  %329 = vdwg.mxu0
  %330 = vmatpush.bf16.msra.mxu0 %v267
  %331 = vmatpush.bf16.msra.mxu0 %v266
  %332 = vmatpush.bf16.msra.mxu0 %v265
  %333 = vmatpush.bf16.msra.mxu0 %v264
  %334 = vmatpush.bf16.msra.mxu0 %v263
  %335 = vmatpush.bf16.msra.mxu0 %v262
  %336 = vmatpush.bf16.msra.mxu0 %v261
  %337 = vmatpush.bf16.msra.mxu0 %v260
  %338 = vmatmul.bf16.gmra.mxu0 %v117
  %v339 = vpop.f32.mrf.mxu0
  %v340 = vadd.f32 %v326, %v339
  %v341 = vpop.f32.mrf.mxu0
  %v342 = vadd.f32 %v328, %v341
  %343 = vdwg.mxu0
  %344 = vmatpush.bf16.msra.mxu0 %v275
  %345 = vmatpush.bf16.msra.mxu0 %v274
  %346 = vmatpush.bf16.msra.mxu0 %v273
  %347 = vmatpush.bf16.msra.mxu0 %v272
  %348 = vmatpush.bf16.msra.mxu0 %v271
  %349 = vmatpush.bf16.msra.mxu0 %v270
  %350 = vmatpush.bf16.msra.mxu0 %v269
  %351 = vmatpush.bf16.msra.mxu0 %v268
  %352 = vmatmul.bf16.gmra.mxu0 %v118
  %v353 = vpop.f32.mrf.mxu0
  %v354 = vadd.f32 %v340, %v353
  %v355 = vpop.f32.mrf.mxu0
  %v356 = vadd.f32 %v342, %v355
  %357 = vdwg.mxu0
  %358 = vmatpush.bf16.msra.mxu0 %v283
  %359 = vmatpush.bf16.msra.mxu0 %v282
  %360 = vmatpush.bf16.msra.mxu0 %v281
  %361 = vmatpush.bf16.msra.mxu0 %v280
  %362 = vmatpush.bf16.msra.mxu0 %v279
  %363 = vmatpush.bf16.msra.mxu0 %v278
  %364 = vmatpush.bf16.msra.mxu0 %v277
  %365 = vmatpush.bf16.msra.mxu0 %v276
  %366 = vmatmul.bf16.gmra.mxu0 %v119
  %v367 = vpop.f32.mrf.mxu0
  %v368 = vadd.f32 %v354, %v367
  %v369 = vpop.f32.mrf.mxu0
  %v370 = vadd.f32 %v356, %v369
  %371 = vdwg.mxu0
  %v372 = vadd.f32 %v34, %v368
  %v373 = vadd.f32 %v35, %v370
  %374 = vst [vmem:[#allocation2] sm:$0xff] %v372
  %375 = vst [vmem:[#allocation2 + $0x8] sm:$0x3] %v373
  // Predicated region
  $region34: #{_lambda_.18} parent=0 // pred_check
    %p376 = pneg %p28
  $region35: #{_lambda_.18} parent=0 // pred_check_branch
    %378 = sbr.rel (%p376) target = $region37
  $region36: #{_lambda_.18} parent=0 // pred_region
    %v379 = vld [vmem:[#allocation2] sm:$0xff]
    %v380 = vld [vmem:[#allocation2 + $0x8] sm:$0x3]
    %v381 = vld [vmem:[%s2] sm:$0x1]
    %v383 = vperm.slane %v381, 0
    %v385 = vadd.f32 %v379, %v383
    %v386 = vadd.f32 %v380, %v383
    %v387 = vld [vmem:[%s3] sm:$0xf]
    %v388 = vld [vmem:[%s3 + $0x4] sm:$0x1]
    %v389 = vunpack.c.l.bf16 %v387
    %v390 = vunpack.c.l.bf16 %v388
    %v391 = vld [vmem:[%s4] sm:$0x1]
    %v393 = vperm.slane %v391, 0
    %v395 = vmul.f32 %v385, %v393
    %v396 = vmul.f32 %v386, %v393
    %v397 = vadd.f32 %v389, %v395
    %v398 = vadd.f32 %v390, %v396
    %v399 = vpack.c.bf16 %v397, %v397
    %v400 = vpack.c.bf16 %v398, %v398
    %401 = vst [vmem:[%s7] sm:$0xf] %v399
    %402 = vst [vmem:[%s7 + $0x4] sm:$0x1] %v400
    %403 = vadd.xlane.f32.xlu0 %v397
    %v404 = vpop.xlane.xlu0 %403
    %vm405 = vcmask 1041408
    %v406 = vsel %vm405, %v398, 0.0
    %407 = vadd.xlane.f32.xlu0 %v406
    %v408 = vpop.xlane.xlu0 %407
    %v409 = vrcp.pop 128.0
    %v410 = vmul.f32 128.0, %v409
    %v411 = vsub.f32 1.0, %v410
    %v412 = vmul.f32 %v409, %v411
    %v413 = vadd.f32 %v409, %v412
    %vm414 = vweird.f32 %v409
    %v415 = vsel %vm414, %v409, %v413
    %v416 = vmul.f32 %v404, %v415
    %v417 = vmul.f32 %v408, %v415
    %v418 = vsub.f32 %v397, %v416
    %v419 = vsub.f32 %v398, %v417
    %v420 = vmul.f32 %v418, %v418
    %v421 = vmul.f32 %v419, %v419
    %422 = vadd.xlane.f32.xlu0 %v420
    %v423 = vpop.xlane.xlu0 %422
    %v424 = vsel %vm405, %v421, 0.0
    %425 = vadd.xlane.f32.xlu0 %v424
    %v426 = vpop.xlane.xlu0 %425
    %v427 = vmul.f32 %v423, %v415
    %v428 = vmul.f32 %v426, %v415
    %v429 = vadd.f32 %v427, 1e-06
    %v430 = vadd.f32 %v428, 1e-06
    %v431 = vrsqrt.pop %v429
    %v432 = vmul.f32 %v431, %v429
    %v433 = vmul.f32 %v432, %v431
    %v434 = vmul.f32 0.5, %v433
    %v435 = vsub.f32 1.5, %v434
    %v436 = vmul.f32 %v431, %v435
    %vm437 = vweird.f32 %v429
    %vm438 = vweird.f32 %v431
    %vm439 = vmor %vm437, %vm438
    %v440 = vsel %vm439, %v431, %v436
    %v441 = vrsqrt.pop %v430
    %v442 = vmul.f32 %v441, %v430
    %v443 = vmul.f32 %v442, %v441
    %v444 = vmul.f32 0.5, %v443
    %v445 = vsub.f32 1.5, %v444
    %v446 = vmul.f32 %v441, %v445
    %vm447 = vweird.f32 %v430
    %vm448 = vweird.f32 %v441
    %vm449 = vmor %vm447, %vm448
    %v450 = vsel %vm449, %v441, %v446
    %v451 = vmul.f32 %v418, %v440
    %v452 = vmul.f32 %v419, %v450
    %v453 = vld [vmem:[%s5] sm:$0x1]
    %v455 = vperm.slane %v453, 0
    %v457 = vmul.f32 %v451, %v455
    %v458 = vmul.f32 %v452, %v455
    %v459 = vld [vmem:[%s6] sm:$0x1]
    %v461 = vperm.slane %v459, 0
    %v463 = vadd.f32 %v457, %v461
    %v464 = vadd.f32 %v458, %v461
    %v465 = vpack.c.bf16 %v463, %v463
    %v466 = vpack.c.bf16 %v464, %v464
    %467 = vst [vmem:[%s8] sm:$0xf] %v465
    %468 = vst [vmem:[%s8 + $0x4] sm:$0x1] %v466
  $region37: #{_lambda_.18} parent=0 // pred_fallthru
    _
  // Predicated region
  $region38: #{_lambda_.18} parent=0 // pred_check
    _
  $region39: #{_lambda_.18} parent=0 // pred_check_branch
    %470 = sbr.rel (0) target = $region41
  $region40: #{_lambda_.18} parent=0 // pred_region
    _
  $region41: #{_lambda_.18} parent=0 // pred_fallthru
    _
  // Predicated region
  $region42: #{_lambda_.18} parent=0 // pred_check
    _
  $region43: #{_lambda_.18} parent=0 // pred_check_branch
    %472 = sbr.rel (0) target = $region45
  $region44: #{_lambda_.18} parent=0 // pred_region
    _
  $region45: #{_lambda_.18} parent=0 // pred_fallthru
    _
  // Predicated region
  $region46: #{_lambda_.18} parent=0 // pred_check
    _
  $region47: #{_lambda_.18} parent=0 // pred_check_branch
    %474 = sbr.rel (0) target = $region49
  $region48: #{_lambda_.18} parent=0 // pred_region
    _
  $region49: #{_lambda_.18} parent=0 // pred_fallthru
    _
  // Predicated region
  $region50: #{_lambda_.18} parent=0 // pred_check
    _
  $region51: #{_lambda_.18} parent=0 // pred_check_branch
    %476 = sbr.rel (0) target = $region53
  $region52: #{_lambda_.18} parent=0 // pred_region
    _
  $region53: #{_lambda_.18} parent=0 // pred_fallthru
    _

// kernel: _lambda_.16
$region0: #{_lambda_.16}
  #allocation0 [shape = 'u32[]', space=smem, size = 0x4, offset = 0x4, fixed_abs, tag = 'smem constant byte address 0x4 - core index']
  #allocation1 [shape = 'u32[72,128]{1,0:T(1,128)}', space=vmem, size = 0x9000, scoped, tag = 'internal scratch']
  #allocation2 [shape = 'f32[10,128]{1,0:T(8,128)}', space=vmem, size = 0x2000, scoped, tag = 'scratch operand']
  %s0 = inlined_call_operand.vmem [shape: bf16[10,128], index: 0, kind: input, shape index: {}]
  %s1 = inlined_call_operand.vmem [shape: bf16[128,128], index: 1, kind: input, shape index: {}]
  %s2 = inlined_call_operand.vmem [shape: f32[1,128], index: 2, kind: input, shape index: {}]
  %s3 = inlined_call_operand.vmem [shape: bf16[10,128], index: 3, kind: input, shape index: {}]
  %s4 = inlined_call_operand.vmem [shape: f32[1,128], index: 4, kind: input, shape index: {}]
  %s5 = inlined_call_operand.vmem [shape: f32[1,128], index: 5, kind: input, shape index: {}]
  %s6 = inlined_call_operand.vmem [shape: f32[1,128], index: 6, kind: input, shape index: {}]
  %s7 = inlined_call_operand.vmem [shape: bf16[10,128], index: 7, kind: output, shape index: {0}]
  %s8 = inlined_call_operand.vmem [shape: bf16[10,128], index: 8, kind: output, shape index: {1}]
  %9 = xla_tuple %s7, %s8
  %s10 = sld [smem:[#allocation0]]
  $region54: #{_lambda_.16} parent=0
    _
  %s12 = ssub.s32 1, %s10
  %s13 = scalar_select 0, %s12, %s10
  // Predicated region
  $region2: #{_lambda_.16} parent=0 // pred_check
    _
  $region3: #{_lambda_.16} parent=0 // pred_check_branch
    %15 = sbr.rel (0) target = $region5
  $region4: #{_lambda_.16} parent=0 // pred_region
    _
  $region5: #{_lambda_.16} parent=0 // pred_fallthru
    _
  // Predicated region
  $region6: #{_lambda_.16} parent=0 // pred_check
    _
  $region7: #{_lambda_.16} parent=0 // pred_check_branch
    %17 = sbr.rel (0) target = $region9
  $region8: #{_lambda_.16} parent=0 // pred_region
    _
  $region9: #{_lambda_.16} parent=0 // pred_fallthru
    _
  // Predicated region
  $region10: #{_lambda_.16} parent=0 // pred_check
    _
  $region11: #{_lambda_.16} parent=0 // pred_check_branch
    %19 = sbr.rel (0) target = $region13
  $region12: #{_lambda_.16} parent=0 // pred_region
    _
  $region13: #{_lambda_.16} parent=0 // pred_fallthru
    _
  // Predicated region
  $region14: #{_lambda_.16} parent=0 // pred_check
    _
  $region15: #{_lambda_.16} parent=0 // pred_check_branch
    %21 = sbr.rel (0) target = $region17
  $region16: #{_lambda_.16} parent=0 // pred_region
    _
  $region17: #{_lambda_.16} parent=0 // pred_fallthru
    _
  // Predicated region
  $region18: #{_lambda_.16} parent=0 // pred_check
    _
  $region19: #{_lambda_.16} parent=0 // pred_check_branch
    %23 = sbr.rel (0) target = $region21
  $region20: #{_lambda_.16} parent=0 // pred_region
    _
  $region21: #{_lambda_.16} parent=0 // pred_fallthru
    _
  // Predicated region
  $region22: #{_lambda_.16} parent=0 // pred_check
    _
  $region23: #{_lambda_.16} parent=0 // pred_check_branch
    %25 = sbr.rel (0) target = $region25
  $region24: #{_lambda_.16} parent=0 // pred_region
    _
  $region25: #{_lambda_.16} parent=0 // pred_fallthru
    _
  // Predicated region
  $region26: #{_lambda_.16} parent=0 // pred_check
    _
  $region27: #{_lambda_.16} parent=0 // pred_check_branch
    %27 = sbr.rel (0) target = $region29
  $region28: #{_lambda_.16} parent=0 // pred_region
    _
  $region29: #{_lambda_.16} parent=0 // pred_fallthru
    _
  %p28 = scmp.eq.s32.totalorder 0, 0
  // Predicated region
  $region30: #{_lambda_.16} parent=0 // pred_check
    %p29 = pneg %p28
  $region31: #{_lambda_.16} parent=0 // pred_check_branch
    %31 = sbr.rel (%p29) target = $region33
  $region32: #{_lambda_.16} parent=0 // pred_region
    %32 = vst [vmem:[#allocation2] sm:$0xff] 0.0
    %33 = vst [vmem:[#allocation2 + $0x8] sm:$0x3] 0.0
  $region33: #{_lambda_.16} parent=0 // pred_fallthru
    _
  %v34 = vld [vmem:[#allocation2] sm:$0xff]
  %v35 = vld [vmem:[#allocation2 + $0x8] sm:$0x3]
  %v36 = vld [vmem:[%s0] sm:$0xf]
  %v37 = vld [vmem:[%s0 + $0x4] sm:$0x1]
  %v38 = vld [vmem:[%s1] sm:$0xf]
  %v39 = vld [vmem:[%s1 + $0x4] sm:$0xf]
  %v40 = vld [vmem:[%s1 + $0x8] sm:$0xf]
  %v41 = vld [vmem:[%s1 + $0xc] sm:$0xf]
  %v42 = vld [vmem:[%s1 + $0x10] sm:$0xf]
  %v43 = vld [vmem:[%s1 + $0x14] sm:$0xf]
  %v44 = vld [vmem:[%s1 + $0x18] sm:$0xf]
  %v45 = vld [vmem:[%s1 + $0x1c] sm:$0xf]
  %v46 = vld [vmem:[%s1 + $0x20] sm:$0xf]
  %v47 = vld [vmem:[%s1 + $0x24] sm:$0xf]
  %v48 = vld [vmem:[%s1 + $0x28] sm:$0xf]
  %v49 = vld [vmem:[%s1 + $0x2c] sm:$0xf]
  %v50 = vld [vmem:[%s1 + $0x30] sm:$0xf]
  %v51 = vld [vmem:[%s1 + $0x34] sm:$0xf]
  %v52 = vld [vmem:[%s1 + $0x38] sm:$0xf]
  %v53 = vld [vmem:[%s1 + $0x3c] sm:$0xf]
  %v56 = vunpack.c.l.b16 %v36
  %v57 = vunpack.c.l.b16 %v37
  %v58 = vpack.c.b16 %v57, %v56
  %v76 = vunpack.c.l.b16 %v38
  %v77 = vunpack.c.l.b16 %v39
  %v78 = vunpack.c.l.b16 %v40
  %v79 = vunpack.c.l.b16 %v41
  %v80 = vunpack.c.l.b16 %v42
  %v81 = vunpack.c.l.b16 %v43
  %v82 = vunpack.c.l.b16 %v44
  %v83 = vunpack.c.l.b16 %v45
  %v84 = vunpack.c.l.b16 %v46
  %v85 = vunpack.c.l.b16 %v47
  %v86 = vunpack.c.l.b16 %v48
  %v87 = vunpack.c.l.b16 %v49
  %v88 = vunpack.c.l.b16 %v50
  %v89 = vunpack.c.l.b16 %v51
  %v90 = vunpack.c.l.b16 %v52
  %v91 = vunpack.c.l.b16 %v53
  %v92 = vpack.c.b16 %v77, %v76
  %v93 = vpack.c.b16 %v79, %v78
  %v94 = vpack.c.b16 %v81, %v80
  %v95 = vpack.c.b16 %v83, %v82
  %v96 = vpack.c.b16 %v85, %v84
  %v97 = vpack.c.b16 %v87, %v86
  %v98 = vpack.c.b16 %v89, %v88
  %v99 = vpack.c.b16 %v91, %v90
  %108 = vmatpush.bf16.msra.mxu0 %v99
  %109 = vmatpush.bf16.msra.mxu0 %v98
  %110 = vmatpush.bf16.msra.mxu0 %v97
  %111 = vmatpush.bf16.msra.mxu0 %v96
  %112 = vmatpush.bf16.msra.mxu0 %v95
  %113 = vmatpush.bf16.msra.mxu0 %v94
  %114 = vmatpush.bf16.msra.mxu0 %v93
  %115 = vmatpush.bf16.msra.mxu0 %v92
  %116 = vmatmul.bf16.gmra.mxu0 %v58
  %v117 = vpop.f32.mrf.mxu0
  %v118 = vadd.f32 0.0, %v117
  %v119 = vpop.f32.mrf.mxu0
  %v120 = vadd.f32 0.0, %v119
  %121 = vdwg.mxu0
  %v122 = vadd.f32 %v34, %v118
  %v123 = vadd.f32 %v35, %v120
  %124 = vst [vmem:[#allocation2] sm:$0xff] %v122
  %125 = vst [vmem:[#allocation2 + $0x8] sm:$0x3] %v123
  // Predicated region
  $region34: #{_lambda_.16} parent=0 // pred_check
    %p126 = pneg %p28
  $region35: #{_lambda_.16} parent=0 // pred_check_branch
    %128 = sbr.rel (%p126) target = $region37
  $region36: #{_lambda_.16} parent=0 // pred_region
    %v129 = vld [vmem:[#allocation2] sm:$0xff]
    %v130 = vld [vmem:[#allocation2 + $0x8] sm:$0x3]
    %v131 = vld [vmem:[%s2] sm:$0x1]
    %v133 = vperm.slane %v131, 0
    %v135 = vadd.f32 %v129, %v133
    %v136 = vadd.f32 %v130, %v133
    %v137 = vld [vmem:[%s3] sm:$0xf]
    %v138 = vld [vmem:[%s3 + $0x4] sm:$0x1]
    %v139 = vunpack.c.l.bf16 %v137
    %v140 = vunpack.c.l.bf16 %v138
    %v141 = vld [vmem:[%s4] sm:$0x1]
    %v143 = vperm.slane %v141, 0
    %v145 = vmul.f32 %v135, %v143
    %v146 = vmul.f32 %v136, %v143
    %v147 = vadd.f32 %v139, %v145
    %v148 = vadd.f32 %v140, %v146
    %v149 = vpack.c.bf16 %v147, %v147
    %v150 = vpack.c.bf16 %v148, %v148
    %151 = vst [vmem:[%s7] sm:$0xf] %v149
    %152 = vst [vmem:[%s7 + $0x4] sm:$0x1] %v150
    %153 = vadd.xlane.f32.xlu0 %v147
    %v154 = vpop.xlane.xlu0 %153
    %vm155 = vcmask 1041408
    %v156 = vsel %vm155, %v148, 0.0
    %157 = vadd.xlane.f32.xlu0 %v156
    %v158 = vpop.xlane.xlu0 %157
    %v159 = vrcp.pop 128.0
    %v160 = vmul.f32 128.0, %v159
    %v161 = vsub.f32 1.0, %v160
    %v162 = vmul.f32 %v159, %v161
    %v163 = vadd.f32 %v159, %v162
    %vm164 = vweird.f32 %v159
    %v165 = vsel %vm164, %v159, %v163
    %v166 = vmul.f32 %v154, %v165
    %v167 = vmul.f32 %v158, %v165
    %v168 = vsub.f32 %v147, %v166
    %v169 = vsub.f32 %v148, %v167
    %v170 = vmul.f32 %v168, %v168
    %v171 = vmul.f32 %v169, %v169
    %172 = vadd.xlane.f32.xlu0 %v170
    %v173 = vpop.xlane.xlu0 %172
    %v174 = vsel %vm155, %v171, 0.0
    %175 = vadd.xlane.f32.xlu0 %v174
    %v176 = vpop.xlane.xlu0 %175
    %v177 = vmul.f32 %v173, %v165
    %v178 = vmul.f32 %v176, %v165
    %v179 = vadd.f32 %v177, 1e-06
    %v180 = vadd.f32 %v178, 1e-06
    %v181 = vrsqrt.pop %v179
    %v182 = vmul.f32 %v181, %v179
    %v183 = vmul.f32 %v182, %v181
    %v184 = vmul.f32 0.5, %v183
    %v185 = vsub.f32 1.5, %v184
    %v186 = vmul.f32 %v181, %v185
    %vm187 = vweird.f32 %v179
    %vm188 = vweird.f32 %v181
    %vm189 = vmor %vm187, %vm188
    %v190 = vsel %vm189, %v181, %v186
    %v191 = vrsqrt.pop %v180
    %v192 = vmul.f32 %v191, %v180
    %v193 = vmul.f32 %v192, %v191
    %v194 = vmul.f32 0.5, %v193
    %v195 = vsub.f32 1.5, %v194
    %v196 = vmul.f32 %v191, %v195
    %vm197 = vweird.f32 %v180
    %vm198 = vweird.f32 %v191
    %vm199 = vmor %vm197, %vm198
    %v200 = vsel %vm199, %v191, %v196
    %v201 = vmul.f32 %v168, %v190
    %v202 = vmul.f32 %v169, %v200
    %v203 = vld [vmem:[%s5] sm:$0x1]
    %v205 = vperm.slane %v203, 0
    %v207 = vmul.f32 %v201, %v205
    %v208 = vmul.f32 %v202, %v205
    %v209 = vld [vmem:[%s6] sm:$0x1]
    %v211 = vperm.slane %v209, 0
    %v213 = vadd.f32 %v207, %v211
    %v214 = vadd.f32 %v208, %v211
    %v215 = vpack.c.bf16 %v213, %v213
    %v216 = vpack.c.bf16 %v214, %v214
    %217 = vst [vmem:[%s8] sm:$0xf] %v215
    %218 = vst [vmem:[%s8 + $0x4] sm:$0x1] %v216
  $region37: #{_lambda_.16} parent=0 // pred_fallthru
    _
  // Predicated region
  $region38: #{_lambda_.16} parent=0 // pred_check
    _
  $region39: #{_lambda_.16} parent=0 // pred_check_branch
    %220 = sbr.rel (0) target = $region41
  $region40: #{_lambda_.16} parent=0 // pred_region
    _
  $region41: #{_lambda_.16} parent=0 // pred_fallthru
    _
  // Predicated region
  $region42: #{_lambda_.16} parent=0 // pred_check
    _
  $region43: #{_lambda_.16} parent=0 // pred_check_branch
    %222 = sbr.rel (0) target = $region45
  $region44: #{_lambda_.16} parent=0 // pred_region
    _
  $region45: #{_lambda_.16} parent=0 // pred_fallthru
    _
  // Predicated region
  $region46: #{_lambda_.16} parent=0 // pred_check
    _
  $region47: #{_lambda_.16} parent=0 // pred_check_branch
    %224 = sbr.rel (0) target = $region49
  $region48: #{_lambda_.16} parent=0 // pred_region
    _
  $region49: #{_lambda_.16} parent=0 // pred_fallthru
    _
  // Predicated region
  $region50: #{_lambda_.16} parent=0 // pred_check
    _
  $region51: #{_lambda_.16} parent=0 // pred_check_branch
    %226 = sbr.rel (0) target = $region53
  $region52: #{_lambda_.16} parent=0 // pred_region
    _
  $region53: #{_lambda_.16} parent=0 // pred_fallthru
    _

// kernel: _lambda_.22
$region0: #{_lambda_.22}
  #allocation0 [shape = 'u32[]', space=smem, size = 0x4, offset = 0x4, fixed_abs, tag = 'smem constant byte address 0x4 - core index']
  #allocation1 [shape = 'u32[72,128]{1,0:T(1,128)}', space=vmem, size = 0x9000, scoped, tag = 'internal scratch']
  #allocation2 [shape = 'f32[10,512]{1,0:T(8,128)}', space=vmem, size = 0x8000, scoped, tag = 'scratch operand']
  %s0 = inlined_call_operand.vmem [shape: bf16[10,128], index: 0, kind: input, shape index: {}]
  %s1 = inlined_call_operand.hbm [shape: bf16[128,512], index: 1, kind: input, shape index: {}]
  %s2 = inlined_call_operand.vmem [shape: f32[1,512], index: 2, kind: input, shape index: {}]
  %s3 = inlined_call_operand.vmem [shape: bf16[10,512], index: 3, kind: output, shape index: {}]
  %s4 = sld [smem:[#allocation0]]
  $region34: #{_lambda_.22} parent=0
    _
  %s6 = ssub.s32 1, %s4
  %s7 = scalar_select 0, %s6, %s4
  $region1: #{_lambda_.22} parent=0
    #allocation3 [shape = 'u8[131072]{0}', space=vmem, size = 0x20000, scoped, tag = 'input window, operand 1, single buffered']
    #allocation4 [shape = 's32[1]{0}', space=sflag, size = 0x4, scoped, tag = 'scoped memory for _lambda_.22']
    %8 = vsyncpa [#allocation4], 0
    // Predicated region
    $region2: #{_lambda_.22} parent=1 // pred_check
      _
    $region3: #{_lambda_.22} parent=1 // pred_check_branch
      %10 = sbr.rel (0) target = $region5
    $region4: #{_lambda_.22} parent=1 // pred_region
      _
    $region5: #{_lambda_.22} parent=1 // pred_fallthru
      _
    // Predicated region
    $region6: #{_lambda_.22} parent=1 // pred_check
      _
    $region7: #{_lambda_.22} parent=1 // pred_check_branch
      %12 = sbr.rel (0) target = $region9
    $region8: #{_lambda_.22} parent=1 // pred_region
      %14 = vsyncadd [#allocation4], 0
      %s15 = sshll.u32 %s1, 4
      %s16 = int_to_ptr.hbm [resolvable:$true] %s15
      %s17 = sshll.u32 [#allocation3], 4
      %s18 = int_to_ptr.vmem [resolvable:$true] %s17
      %23 = dma.hbm_to_vmem [thread:$0]  %s16, 4096, %s18, [#allocation4], 256, 256, 16
    $region9: #{_lambda_.22} parent=1 // pred_fallthru
      _
    // Predicated region
    $region10: #{_lambda_.22} parent=1 // pred_check
      _
    $region11: #{_lambda_.22} parent=1 // pred_check_branch
      %25 = sbr.rel (0) target = $region13
    $region12: #{_lambda_.22} parent=1 // pred_region
      _
    $region13: #{_lambda_.22} parent=1 // pred_fallthru
      _
    // Predicated region
    $region14: #{_lambda_.22} parent=1 // pred_check
      _
    $region15: #{_lambda_.22} parent=1 // pred_check_branch
      %27 = sbr.rel (0) target = $region17
    $region16: #{_lambda_.22} parent=1 // pred_region
      %29 = dma.done [#allocation4], 4096
    $region17: #{_lambda_.22} parent=1 // pred_fallthru
      _
    %p30 = scmp.eq.s32.totalorder 0, 0
    // Predicated region
    $region18: #{_lambda_.22} parent=1 // pred_check
      %p31 = pneg %p30
    $region19: #{_lambda_.22} parent=1 // pred_check_branch
      %33 = sbr.rel (%p31) target = $region21
    $region20: #{_lambda_.22} parent=1 // pred_region
      %34 = vst [vmem:[#allocation2] sm:$0xff] 0.0
      %35 = vst [vmem:[#allocation2 + $0x8] sm:$0xff] 0.0
      %36 = vst [vmem:[#allocation2 + $0x10] sm:$0xff] 0.0
      %37 = vst [vmem:[#allocation2 + $0x18] sm:$0xff] 0.0
      %38 = vst [vmem:[#allocation2 + $0x20] sm:$0x3] 0.0
      %39 = vst [vmem:[#allocation2 + $0x28] sm:$0x3] 0.0
      %40 = vst [vmem:[#allocation2 + $0x30] sm:$0x3] 0.0
      %41 = vst [vmem:[#allocation2 + $0x38] sm:$0x3] 0.0
    $region21: #{_lambda_.22} parent=1 // pred_fallthru
      _
    %v42 = vld [vmem:[#allocation2] sm:$0xff]
    %v43 = vld [vmem:[#allocation2 + $0x8] sm:$0xff]
    %v44 = vld [vmem:[#allocation2 + $0x10] sm:$0xff]
    %v45 = vld [vmem:[#allocation2 + $0x18] sm:$0xff]
    %v46 = vld [vmem:[#allocation2 + $0x20] sm:$0x3]
    %v47 = vld [vmem:[#allocation2 + $0x28] sm:$0x3]
    %v48 = vld [vmem:[#allocation2 + $0x30] sm:$0x3]
    %v49 = vld [vmem:[#allocation2 + $0x38] sm:$0x3]
    %v50 = vld [vmem:[%s0] sm:$0xf]
    %v51 = vld [vmem:[%s0 + $0x4] sm:$0x1]
    %v52 = vld [vmem:[#allocation3] sm:$0xff]
    %v53 = vld [vmem:[#allocation3 + $0x8] sm:$0xff]
    %v54 = vld [vmem:[#allocation3 + $0x10] sm:$0xff]
    %v55 = vld [vmem:[#allocation3 + $0x18] sm:$0xff]
    %v56 = vld [vmem:[#allocation3 + $0x20] sm:$0xff]
    %v57 = vld [vmem:[#allocation3 + $0x28] sm:$0xff]
    %v58 = vld [vmem:[#allocation3 + $0x30] sm:$0xff]
    %v59 = vld [vmem:[#allocation3 + $0x38] sm:$0xff]
    %v60 = vld [vmem:[#allocation3 + $0x40] sm:$0xff]
    %v61 = vld [vmem:[#allocation3 + $0x48] sm:$0xff]
    %v62 = vld [vmem:[#allocation3 + $0x50] sm:$0xff]
    %v63 = vld [vmem:[#allocation3 + $0x58] sm:$0xff]
    %v64 = vld [vmem:[#allocation3 + $0x60] sm:$0xff]
    %v65 = vld [vmem:[#allocation3 + $0x68] sm:$0xff]
    %v66 = vld [vmem:[#allocation3 + $0x70] sm:$0xff]
    %v67 = vld [vmem:[#allocation3 + $0x78] sm:$0xff]
    %v68 = vld [vmem:[#allocation3 + $0x80] sm:$0xff]
    %v69 = vld [vmem:[#allocation3 + $0x88] sm:$0xff]
    %v70 = vld [vmem:[#allocation3 + $0x90] sm:$0xff]
    %v71 = vld [vmem:[#allocation3 + $0x98] sm:$0xff]
    %v72 = vld [vmem:[#allocation3 + $0xa0] sm:$0xff]
    %v73 = vld [vmem:[#allocation3 + $0xa8] sm:$0xff]
    %v74 = vld [vmem:[#allocation3 + $0xb0] sm:$0xff]
    %v75 = vld [vmem:[#allocation3 + $0xb8] sm:$0xff]
    %v76 = vld [vmem:[#allocation3 + $0xc0] sm:$0xff]
    %v77 = vld [vmem:[#allocation3 + $0xc8] sm:$0xff]
    %v78 = vld [vmem:[#allocation3 + $0xd0] sm:$0xff]
    %v79 = vld [vmem:[#allocation3 + $0xd8] sm:$0xff]
    %v80 = vld [vmem:[#allocation3 + $0xe0] sm:$0xff]
    %v81 = vld [vmem:[#allocation3 + $0xe8] sm:$0xff]
    %v82 = vld [vmem:[#allocation3 + $0xf0] sm:$0xff]
    %v83 = vld [vmem:[#allocation3 + $0xf8] sm:$0xff]
    %v86 = vunpack.c.l.b16 %v50
    %v87 = vunpack.c.l.b16 %v51
    %v88 = vpack.c.b16 %v87, %v86
    %v122 = vunpack.c.l.b16 %v52
    %v123 = vunpack.c.h.b16 %v52
    %v124 = vunpack.c.l.b16 %v53
    %v125 = vunpack.c.h.b16 %v53
    %v126 = vunpack.c.l.b16 %v54
    %v127 = vunpack.c.h.b16 %v54
    %v128 = vunpack.c.l.b16 %v55
    %v129 = vunpack.c.h.b16 %v55
    %v130 = vunpack.c.l.b16 %v56
    %v131 = vunpack.c.h.b16 %v56
    %v132 = vunpack.c.l.b16 %v57
    %v133 = vunpack.c.h.b16 %v57
    %v134 = vunpack.c.l.b16 %v58
    %v135 = vunpack.c.h.b16 %v58
    %v136 = vunpack.c.l.b16 %v59
    %v137 = vunpack.c.h.b16 %v59
    %v138 = vunpack.c.l.b16 %v60
    %v139 = vunpack.c.h.b16 %v60
    %v140 = vunpack.c.l.b16 %v61
    %v141 = vunpack.c.h.b16 %v61
    %v142 = vunpack.c.l.b16 %v62
    %v143 = vunpack.c.h.b16 %v62
    %v144 = vunpack.c.l.b16 %v63
    %v145 = vunpack.c.h.b16 %v63
    %v146 = vunpack.c.l.b16 %v64
    %v147 = vunpack.c.h.b16 %v64
    %v148 = vunpack.c.l.b16 %v65
    %v149 = vunpack.c.h.b16 %v65
    %v150 = vunpack.c.l.b16 %v66
    %v151 = vunpack.c.h.b16 %v66
    %v152 = vunpack.c.l.b16 %v67
    %v153 = vunpack.c.h.b16 %v67
    %v154 = vunpack.c.l.b16 %v68
    %v155 = vunpack.c.h.b16 %v68
    %v156 = vunpack.c.l.b16 %v69
    %v157 = vunpack.c.h.b16 %v69
    %v158 = vunpack.c.l.b16 %v70
    %v159 = vunpack.c.h.b16 %v70
    %v160 = vunpack.c.l.b16 %v71
    %v161 = vunpack.c.h.b16 %v71
    %v162 = vunpack.c.l.b16 %v72
    %v163 = vunpack.c.h.b16 %v72
    %v164 = vunpack.c.l.b16 %v73
    %v165 = vunpack.c.h.b16 %v73
    %v166 = vunpack.c.l.b16 %v74
    %v167 = vunpack.c.h.b16 %v74
    %v168 = vunpack.c.l.b16 %v75
    %v169 = vunpack.c.h.b16 %v75
    %v170 = vunpack.c.l.b16 %v76
    %v171 = vunpack.c.h.b16 %v76
    %v172 = vunpack.c.l.b16 %v77
    %v173 = vunpack.c.h.b16 %v77
    %v174 = vunpack.c.l.b16 %v78
    %v175 = vunpack.c.h.b16 %v78
    %v176 = vunpack.c.l.b16 %v79
    %v177 = vunpack.c.h.b16 %v79
    %v178 = vunpack.c.l.b16 %v80
    %v179 = vunpack.c.h.b16 %v80
    %v180 = vunpack.c.l.b16 %v81
    %v181 = vunpack.c.h.b16 %v81
    %v182 = vunpack.c.l.b16 %v82
    %v183 = vunpack.c.h.b16 %v82
    %v184 = vunpack.c.l.b16 %v83
    %v185 = vunpack.c.h.b16 %v83
    %v186 = vpack.c.b16 %v126, %v122
    %v187 = vpack.c.b16 %v127, %v123
    %v188 = vpack.c.b16 %v128, %v124
    %v189 = vpack.c.b16 %v129, %v125
    %v190 = vpack.c.b16 %v134, %v130
    %v191 = vpack.c.b16 %v135, %v131
    %v192 = vpack.c.b16 %v136, %v132
    %v193 = vpack.c.b16 %v137, %v133
    %v194 = vpack.c.b16 %v142, %v138
    %v195 = vpack.c.b16 %v143, %v139
    %v196 = vpack.c.b16 %v144, %v140
    %v197 = vpack.c.b16 %v145, %v141
    %v198 = vpack.c.b16 %v150, %v146
    %v199 = vpack.c.b16 %v151, %v147
    %v200 = vpack.c.b16 %v152, %v148
    %v201 = vpack.c.b16 %v153, %v149
    %v202 = vpack.c.b16 %v158, %v154
    %v203 = vpack.c.b16 %v159, %v155
    %v204 = vpack.c.b16 %v160, %v156
    %v205 = vpack.c.b16 %v161, %v157
    %v206 = vpack.c.b16 %v166, %v162
    %v207 = vpack.c.b16 %v167, %v163
    %v208 = vpack.c.b16 %v168, %v164
    %v209 = vpack.c.b16 %v169, %v165
    %v210 = vpack.c.b16 %v174, %v170
    %v211 = vpack.c.b16 %v175, %v171
    %v212 = vpack.c.b16 %v176, %v172
    %v213 = vpack.c.b16 %v177, %v173
    %v214 = vpack.c.b16 %v182, %v178
    %v215 = vpack.c.b16 %v183, %v179
    %v216 = vpack.c.b16 %v184, %v180
    %v217 = vpack.c.b16 %v185, %v181
    %250 = vmatpush.bf16.msra.mxu0 %v214
    %251 = vmatpush.bf16.msra.mxu0 %v210
    %252 = vmatpush.bf16.msra.mxu0 %v206
    %253 = vmatpush.bf16.msra.mxu0 %v202
    %254 = vmatpush.bf16.msra.mxu0 %v198
    %255 = vmatpush.bf16.msra.mxu0 %v194
    %256 = vmatpush.bf16.msra.mxu0 %v190
    %257 = vmatpush.bf16.msra.mxu0 %v186
    %258 = vmatmul.bf16.gmra.mxu0 %v88
    %v259 = vpop.f32.mrf.mxu0
    %v260 = vadd.f32 0.0, %v259
    %v261 = vpop.f32.mrf.mxu0
    %v262 = vadd.f32 0.0, %v261
    %263 = vdwg.mxu0
    %264 = vmatpush.bf16.msra.mxu0 %v215
    %265 = vmatpush.bf16.msra.mxu0 %v211
    %266 = vmatpush.bf16.msra.mxu0 %v207
    %267 = vmatpush.bf16.msra.mxu0 %v203
    %268 = vmatpush.bf16.msra.mxu0 %v199
    %269 = vmatpush.bf16.msra.mxu0 %v195
    %270 = vmatpush.bf16.msra.mxu0 %v191
    %271 = vmatpush.bf16.msra.mxu0 %v187
    %272 = vmatmul.bf16.gmra.mxu0 %v88
    %v273 = vpop.f32.mrf.mxu0
    %v274 = vadd.f32 0.0, %v273
    %v275 = vpop.f32.mrf.mxu0
    %v276 = vadd.f32 0.0, %v275
    %277 = vdwg.mxu0
    %278 = vmatpush.bf16.msra.mxu0 %v216
    %279 = vmatpush.bf16.msra.mxu0 %v212
    %280 = vmatpush.bf16.msra.mxu0 %v208
    %281 = vmatpush.bf16.msra.mxu0 %v204
    %282 = vmatpush.bf16.msra.mxu0 %v200
    %283 = vmatpush.bf16.msra.mxu0 %v196
    %284 = vmatpush.bf16.msra.mxu0 %v192
    %285 = vmatpush.bf16.msra.mxu0 %v188
    %286 = vmatmul.bf16.gmra.mxu0 %v88
    %v287 = vpop.f32.mrf.mxu0
    %v288 = vadd.f32 0.0, %v287
    %v289 = vpop.f32.mrf.mxu0
    %v290 = vadd.f32 0.0, %v289
    %291 = vdwg.mxu0
    %292 = vmatpush.bf16.msra.mxu0 %v217
    %293 = vmatpush.bf16.msra.mxu0 %v213
    %294 = vmatpush.bf16.msra.mxu0 %v209
    %295 = vmatpush.bf16.msra.mxu0 %v205
    %296 = vmatpush.bf16.msra.mxu0 %v201
    %297 = vmatpush.bf16.msra.mxu0 %v197
    %298 = vmatpush.bf16.msra.mxu0 %v193
    %299 = vmatpush.bf16.msra.mxu0 %v189
    %300 = vmatmul.bf16.gmra.mxu0 %v88
    %v301 = vpop.f32.mrf.mxu0
    %v302 = vadd.f32 0.0, %v301
    %v303 = vpop.f32.mrf.mxu0
    %v304 = vadd.f32 0.0, %v303
    %305 = vdwg.mxu0
    %v306 = vadd.f32 %v42, %v260
    %v307 = vadd.f32 %v43, %v274
    %v308 = vadd.f32 %v44, %v288
    %v309 = vadd.f32 %v45, %v302
    %v310 = vadd.f32 %v46, %v262
    %v311 = vadd.f32 %v47, %v276
    %v312 = vadd.f32 %v48, %v290
    %v313 = vadd.f32 %v49, %v304
    %314 = vst [vmem:[#allocation2] sm:$0xff] %v306
    %315 = vst [vmem:[#allocation2 + $0x8] sm:$0xff] %v307
    %316 = vst [vmem:[#allocation2 + $0x10] sm:$0xff] %v308
    %317 = vst [vmem:[#allocation2 + $0x18] sm:$0xff] %v309
    %318 = vst [vmem:[#allocation2 + $0x20] sm:$0x3] %v310
    %319 = vst [vmem:[#allocation2 + $0x28] sm:$0x3] %v311
    %320 = vst [vmem:[#allocation2 + $0x30] sm:$0x3] %v312
    %321 = vst [vmem:[#allocation2 + $0x38] sm:$0x3] %v313
    // Predicated region
    $region22: #{_lambda_.22} parent=1 // pred_check
      %p322 = pneg %p30
    $region23: #{_lambda_.22} parent=1 // pred_check_branch
      %324 = sbr.rel (%p322) target = $region25
    $region24: #{_lambda_.22} parent=1 // pred_region
      %v325 = vld [vmem:[#allocation2] sm:$0xff]
      %v326 = vld [vmem:[#allocation2 + $0x8] sm:$0xff]
      %v327 = vld [vmem:[#allocation2 + $0x10] sm:$0xff]
      %v328 = vld [vmem:[#allocation2 + $0x18] sm:$0xff]
      %v329 = vld [vmem:[#allocation2 + $0x20] sm:$0x3]
      %v330 = vld [vmem:[#allocation2 + $0x28] sm:$0x3]
      %v331 = vld [vmem:[#allocation2 + $0x30] sm:$0x3]
      %v332 = vld [vmem:[#allocation2 + $0x38] sm:$0x3]
      %v333 = vld [vmem:[%s2] sm:$0xf]
      %v335 = vperm.slane %v333, 0
      %v336 = vperm.slane %v333, 1
      %v337 = vperm.slane %v333, 2
      %v338 = vperm.slane %v333, 3
      %v343 = vadd.f32 %v325, %v335
      %v344 = vadd.f32 %v326, %v336
      %v345 = vadd.f32 %v327, %v337
      %v346 = vadd.f32 %v328, %v338
      %v347 = vadd.f32 %v329, %v335
      %v348 = vadd.f32 %v330, %v336
      %v349 = vadd.f32 %v331, %v337
      %v350 = vadd.f32 %v332, %v338
      %v351 = vmul.f32 %v343, 0.5
      %v352 = vmul.f32 %v344, 0.5
      %v353 = vmul.f32 %v345, 0.5
      %v354 = vmul.f32 %v346, 0.5
      %v355 = vmul.f32 %v347, 0.5
      %v356 = vmul.f32 %v348, 0.5
      %v357 = vmul.f32 %v349, 0.5
      %v358 = vmul.f32 %v350, 0.5
      %v359 = vmul.f32 %v343, 0.70710677
      %v360 = vmul.f32 %v344, 0.70710677
      %v361 = vmul.f32 %v345, 0.70710677
      %v362 = vmul.f32 %v346, 0.70710677
      %v363 = vmul.f32 %v347, 0.70710677
      %v364 = vmul.f32 %v348, 0.70710677
      %v365 = vmul.f32 %v349, 0.70710677
      %v366 = vmul.f32 %v350, 0.70710677
      %v367 = vmul.f32 %v359, %v359
      %v368 = vmin.f32 16.0, %v367
      %v369 = vmul.f32 %v368, 2.1237322e-06
      %v370 = vadd.f32 %v369, 0.00028619796
      %v371 = vmul.f32 %v368, %v370
      %v372 = vadd.f32 %v371, 0.0036580483
      %v373 = vmul.f32 %v368, %v372
      %v374 = vadd.f32 %v373, 0.05243302
      %v375 = vmul.f32 %v368, %v374
      %v376 = vadd.f32 %v375, 0.18741608
      %v377 = vmul.f32 %v368, %v376
      %v378 = vadd.f32 %v377, 1.1283791
      %v379 = vmul.f32 %v359, %v378
      %v380 = vmul.f32 %v368, 3.8918573e-05
      %v381 = vadd.f32 %v380, 0.001143296
      %v382 = vmul.f32 %v368, %v381
      %v383 = vadd.f32 %v382, 0.014752088
      %v384 = vmul.f32 %v368, %v383
      %v385 = vadd.f32 %v384, 0.112945676
      %v386 = vmul.f32 %v368, %v385
      %v387 = vadd.f32 %v386, 0.4994258
      %v388 = vmul.f32 %v368, %v387
      %v389 = vadd.f32 %v388, 1.0
      %v390 = vrcp.pop %v389
      %v391 = vmul.f32 %v389, %v390
      %v392 = vsub.f32 1.0, %v391
      %v393 = vmul.f32 %v390, %v392
      %v394 = vadd.f32 %v390, %v393
      %vm395 = vweird.f32 %v389
      %vm396 = vweird.f32 %v390
      %vm397 = vmor %vm395, %vm396
      %v398 = vsel %vm397, %v390, %v394
      %v399 = vand.u32 2147483647, %v389
      %vm400 = vcmp.eq.f32.partialorder %v399, 8.507059e+37
      %v401 = vand.u32 %v389, 2147483648
      %v402 = vor.u32 1.1754944e-38, %v401
      %v403 = vsel %vm400, %v402, %v398
      %v404 = vmul.f32 %v379, %v403
      %v405 = vmin.f32 %v404, 1.0
      %v406 = vmax.f32 %v405, -1.0
      %v407 = vmul.f32 %v360, %v360
      %v408 = vmin.f32 16.0, %v407
      %v409 = vmul.f32 %v408, 2.1237322e-06
      %v410 = vadd.f32 %v409, 0.00028619796
      %v411 = vmul.f32 %v408, %v410
      %v412 = vadd.f32 %v411, 0.0036580483
      %v413 = vmul.f32 %v408, %v412
      %v414 = vadd.f32 %v413, 0.05243302
      %v415 = vmul.f32 %v408, %v414
      %v416 = vadd.f32 %v415, 0.18741608
      %v417 = vmul.f32 %v408, %v416
      %v418 = vadd.f32 %v417, 1.1283791
      %v419 = vmul.f32 %v360, %v418
      %v420 = vmul.f32 %v408, 3.8918573e-05
      %v421 = vadd.f32 %v420, 0.001143296
      %v422 = vmul.f32 %v408, %v421
      %v423 = vadd.f32 %v422, 0.014752088
      %v424 = vmul.f32 %v408, %v423
      %v425 = vadd.f32 %v424, 0.112945676
      %v426 = vmul.f32 %v408, %v425
      %v427 = vadd.f32 %v426, 0.4994258
      %v428 = vmul.f32 %v408, %v427
      %v429 = vadd.f32 %v428, 1.0
      %v430 = vrcp.pop %v429
      %v431 = vmul.f32 %v429, %v430
      %v432 = vsub.f32 1.0, %v431
      %v433 = vmul.f32 %v430, %v432
      %v434 = vadd.f32 %v430, %v433
      %vm435 = vweird.f32 %v429
      %vm436 = vweird.f32 %v430
      %vm437 = vmor %vm435, %vm436
      %v438 = vsel %vm437, %v430, %v434
      %v439 = vand.u32 2147483647, %v429
      %vm440 = vcmp.eq.f32.partialorder %v439, 8.507059e+37
      %v441 = vand.u32 %v429, 2147483648
      %v442 = vor.u32 1.1754944e-38, %v441
      %v443 = vsel %vm440, %v442, %v438
      %v444 = vmul.f32 %v419, %v443
      %v445 = vmin.f32 %v444, 1.0
      %v446 = vmax.f32 %v445, -1.0
      %v447 = vmul.f32 %v361, %v361
      %v448 = vmin.f32 16.0, %v447
      %v449 = vmul.f32 %v448, 2.1237322e-06
      %v450 = vadd.f32 %v449, 0.00028619796
      %v451 = vmul.f32 %v448, %v450
      %v452 = vadd.f32 %v451, 0.0036580483
      %v453 = vmul.f32 %v448, %v452
      %v454 = vadd.f32 %v453, 0.05243302
      %v455 = vmul.f32 %v448, %v454
      %v456 = vadd.f32 %v455, 0.18741608
      %v457 = vmul.f32 %v448, %v456
      %v458 = vadd.f32 %v457, 1.1283791
      %v459 = vmul.f32 %v361, %v458
      %v460 = vmul.f32 %v448, 3.8918573e-05
      %v461 = vadd.f32 %v460, 0.001143296
      %v462 = vmul.f32 %v448, %v461
      %v463 = vadd.f32 %v462, 0.014752088
      %v464 = vmul.f32 %v448, %v463
      %v465 = vadd.f32 %v464, 0.112945676
      %v466 = vmul.f32 %v448, %v465
      %v467 = vadd.f32 %v466, 0.4994258
      %v468 = vmul.f32 %v448, %v467
      %v469 = vadd.f32 %v468, 1.0
      %v470 = vrcp.pop %v469
      %v471 = vmul.f32 %v469, %v470
      %v472 = vsub.f32 1.0, %v471
      %v473 = vmul.f32 %v470, %v472
      %v474 = vadd.f32 %v470, %v473
      %vm475 = vweird.f32 %v469
      %vm476 = vweird.f32 %v470
      %vm477 = vmor %vm475, %vm476
      %v478 = vsel %vm477, %v470, %v474
      %v479 = vand.u32 2147483647, %v469
      %vm480 = vcmp.eq.f32.partialorder %v479, 8.507059e+37
      %v481 = vand.u32 %v469, 2147483648
      %v482 = vor.u32 1.1754944e-38, %v481
      %v483 = vsel %vm480, %v482, %v478
      %v484 = vmul.f32 %v459, %v483
      %v485 = vmin.f32 %v484, 1.0
      %v486 = vmax.f32 %v485, -1.0
      %v487 = vmul.f32 %v362, %v362
      %v488 = vmin.f32 16.0, %v487
      %v489 = vmul.f32 %v488, 2.1237322e-06
      %v490 = vadd.f32 %v489, 0.00028619796
      %v491 = vmul.f32 %v488, %v490
      %v492 = vadd.f32 %v491, 0.0036580483
      %v493 = vmul.f32 %v488, %v492
      %v494 = vadd.f32 %v493, 0.05243302
      %v495 = vmul.f32 %v488, %v494
      %v496 = vadd.f32 %v495, 0.18741608
      %v497 = vmul.f32 %v488, %v496
      %v498 = vadd.f32 %v497, 1.1283791
      %v499 = vmul.f32 %v362, %v498
      %v500 = vmul.f32 %v488, 3.8918573e-05
      %v501 = vadd.f32 %v500, 0.001143296
      %v502 = vmul.f32 %v488, %v501
      %v503 = vadd.f32 %v502, 0.014752088
      %v504 = vmul.f32 %v488, %v503
      %v505 = vadd.f32 %v504, 0.112945676
      %v506 = vmul.f32 %v488, %v505
      %v507 = vadd.f32 %v506, 0.4994258
      %v508 = vmul.f32 %v488, %v507
      %v509 = vadd.f32 %v508, 1.0
      %v510 = vrcp.pop %v509
      %v511 = vmul.f32 %v509, %v510
      %v512 = vsub.f32 1.0, %v511
      %v513 = vmul.f32 %v510, %v512
      %v514 = vadd.f32 %v510, %v513
      %vm515 = vweird.f32 %v509
      %vm516 = vweird.f32 %v510
      %vm517 = vmor %vm515, %vm516
      %v518 = vsel %vm517, %v510, %v514
      %v519 = vand.u32 2147483647, %v509
      %vm520 = vcmp.eq.f32.partialorder %v519, 8.507059e+37
      %v521 = vand.u32 %v509, 2147483648
      %v522 = vor.u32 1.1754944e-38, %v521
      %v523 = vsel %vm520, %v522, %v518
      %v524 = vmul.f32 %v499, %v523
      %v525 = vmin.f32 %v524, 1.0
      %v526 = vmax.f32 %v525, -1.0
      %v527 = vmul.f32 %v363, %v363
      %v528 = vmin.f32 16.0, %v527
      %v529 = vmul.f32 %v528, 2.1237322e-06
      %v530 = vadd.f32 %v529, 0.00028619796
      %v531 = vmul.f32 %v528, %v530
      %v532 = vadd.f32 %v531, 0.0036580483
      %v533 = vmul.f32 %v528, %v532
      %v534 = vadd.f32 %v533, 0.05243302
      %v535 = vmul.f32 %v528, %v534
      %v536 = vadd.f32 %v535, 0.18741608
      %v537 = vmul.f32 %v528, %v536
      %v538 = vadd.f32 %v537, 1.1283791
      %v539 = vmul.f32 %v363, %v538
      %v540 = vmul.f32 %v528, 3.8918573e-05
      %v541 = vadd.f32 %v540, 0.001143296
      %v542 = vmul.f32 %v528, %v541
      %v543 = vadd.f32 %v542, 0.014752088
      %v544 = vmul.f32 %v528, %v543
      %v545 = vadd.f32 %v544, 0.112945676
      %v546 = vmul.f32 %v528, %v545
      %v547 = vadd.f32 %v546, 0.4994258
      %v548 = vmul.f32 %v528, %v547
      %v549 = vadd.f32 %v548, 1.0
      %v550 = vrcp.pop %v549
      %v551 = vmul.f32 %v549, %v550
      %v552 = vsub.f32 1.0, %v551
      %v553 = vmul.f32 %v550, %v552
      %v554 = vadd.f32 %v550, %v553
      %vm555 = vweird.f32 %v549
      %vm556 = vweird.f32 %v550
      %vm557 = vmor %vm555, %vm556
      %v558 = vsel %vm557, %v550, %v554
      %v559 = vand.u32 2147483647, %v549
      %vm560 = vcmp.eq.f32.partialorder %v559, 8.507059e+37
      %v561 = vand.u32 %v549, 2147483648
      %v562 = vor.u32 1.1754944e-38, %v561
      %v563 = vsel %vm560, %v562, %v558
      %v564 = vmul.f32 %v539, %v563
      %v565 = vmin.f32 %v564, 1.0
      %v566 = vmax.f32 %v565, -1.0
      %v567 = vmul.f32 %v364, %v364
      %v568 = vmin.f32 16.0, %v567
      %v569 = vmul.f32 %v568, 2.1237322e-06
      %v570 = vadd.f32 %v569, 0.00028619796
      %v571 = vmul.f32 %v568, %v570
      %v572 = vadd.f32 %v571, 0.0036580483
      %v573 = vmul.f32 %v568, %v572
      %v574 = vadd.f32 %v573, 0.05243302
      %v575 = vmul.f32 %v568, %v574
      %v576 = vadd.f32 %v575, 0.18741608
      %v577 = vmul.f32 %v568, %v576
      %v578 = vadd.f32 %v577, 1.1283791
      %v579 = vmul.f32 %v364, %v578
      %v580 = vmul.f32 %v568, 3.8918573e-05
      %v581 = vadd.f32 %v580, 0.001143296
      %v582 = vmul.f32 %v568, %v581
      %v583 = vadd.f32 %v582, 0.014752088
      %v584 = vmul.f32 %v568, %v583
      %v585 = vadd.f32 %v584, 0.112945676
      %v586 = vmul.f32 %v568, %v585
      %v587 = vadd.f32 %v586, 0.4994258
      %v588 = vmul.f32 %v568, %v587
      %v589 = vadd.f32 %v588, 1.0
      %v590 = vrcp.pop %v589
      %v591 = vmul.f32 %v589, %v590
      %v592 = vsub.f32 1.0, %v591
      %v593 = vmul.f32 %v590, %v592
      %v594 = vadd.f32 %v590, %v593
      %vm595 = vweird.f32 %v589
      %vm596 = vweird.f32 %v590
      %vm597 = vmor %vm595, %vm596
      %v598 = vsel %vm597, %v590, %v594
      %v599 = vand.u32 2147483647, %v589
      %vm600 = vcmp.eq.f32.partialorder %v599, 8.507059e+37
      %v601 = vand.u32 %v589, 2147483648
      %v602 = vor.u32 1.1754944e-38, %v601
      %v603 = vsel %vm600, %v602, %v598
      %v604 = vmul.f32 %v579, %v603
      %v605 = vmin.f32 %v604, 1.0
      %v606 = vmax.f32 %v605, -1.0
      %v607 = vmul.f32 %v365, %v365
      %v608 = vmin.f32 16.0, %v607
      %v609 = vmul.f32 %v608, 2.1237322e-06
      %v610 = vadd.f32 %v609, 0.00028619796
      %v611 = vmul.f32 %v608, %v610
      %v612 = vadd.f32 %v611, 0.0036580483
      %v613 = vmul.f32 %v608, %v612
      %v614 = vadd.f32 %v613, 0.05243302
      %v615 = vmul.f32 %v608, %v614
      %v616 = vadd.f32 %v615, 0.18741608
      %v617 = vmul.f32 %v608, %v616
      %v618 = vadd.f32 %v617, 1.1283791
      %v619 = vmul.f32 %v365, %v618
      %v620 = vmul.f32 %v608, 3.8918573e-05
      %v621 = vadd.f32 %v620, 0.001143296
      %v622 = vmul.f32 %v608, %v621
      %v623 = vadd.f32 %v622, 0.014752088
      %v624 = vmul.f32 %v608, %v623
      %v625 = vadd.f32 %v624, 0.112945676
      %v626 = vmul.f32 %v608, %v625
      %v627 = vadd.f32 %v626, 0.4994258
      %v628 = vmul.f32 %v608, %v627
      %v629 = vadd.f32 %v628, 1.0
      %v630 = vrcp.pop %v629
      %v631 = vmul.f32 %v629, %v630
      %v632 = vsub.f32 1.0, %v631
      %v633 = vmul.f32 %v630, %v632
      %v634 = vadd.f32 %v630, %v633
      %vm635 = vweird.f32 %v629
      %vm636 = vweird.f32 %v630
      %vm637 = vmor %vm635, %vm636
      %v638 = vsel %vm637, %v630, %v634
      %v639 = vand.u32 2147483647, %v629
      %vm640 = vcmp.eq.f32.partialorder %v639, 8.507059e+37
      %v641 = vand.u32 %v629, 2147483648
      %v642 = vor.u32 1.1754944e-38, %v641
      %v643 = vsel %vm640, %v642, %v638
      %v644 = vmul.f32 %v619, %v643
      %v645 = vmin.f32 %v644, 1.0
      %v646 = vmax.f32 %v645, -1.0
      %v647 = vmul.f32 %v366, %v366
      %v648 = vmin.f32 16.0, %v647
      %v649 = vmul.f32 %v648, 2.1237322e-06
      %v650 = vadd.f32 %v649, 0.00028619796
      %v651 = vmul.f32 %v648, %v650
      %v652 = vadd.f32 %v651, 0.0036580483
      %v653 = vmul.f32 %v648, %v652
      %v654 = vadd.f32 %v653, 0.05243302
      %v655 = vmul.f32 %v648, %v654
      %v656 = vadd.f32 %v655, 0.18741608
      %v657 = vmul.f32 %v648, %v656
      %v658 = vadd.f32 %v657, 1.1283791
      %v659 = vmul.f32 %v366, %v658
      %v660 = vmul.f32 %v648, 3.8918573e-05
      %v661 = vadd.f32 %v660, 0.001143296
      %v662 = vmul.f32 %v648, %v661
      %v663 = vadd.f32 %v662, 0.014752088
      %v664 = vmul.f32 %v648, %v663
      %v665 = vadd.f32 %v664, 0.112945676
      %v666 = vmul.f32 %v648, %v665
      %v667 = vadd.f32 %v666, 0.4994258
      %v668 = vmul.f32 %v648, %v667
      %v669 = vadd.f32 %v668, 1.0
      %v670 = vrcp.pop %v669
      %v671 = vmul.f32 %v669, %v670
      %v672 = vsub.f32 1.0, %v671
      %v673 = vmul.f32 %v670, %v672
      %v674 = vadd.f32 %v670, %v673
      %vm675 = vweird.f32 %v669
      %vm676 = vweird.f32 %v670
      %vm677 = vmor %vm675, %vm676
      %v678 = vsel %vm677, %v670, %v674
      %v679 = vand.u32 2147483647, %v669
      %vm680 = vcmp.eq.f32.partialorder %v679, 8.507059e+37
      %v681 = vand.u32 %v669, 2147483648
      %v682 = vor.u32 1.1754944e-38, %v681
      %v683 = vsel %vm680, %v682, %v678
      %v684 = vmul.f32 %v659, %v683
      %v685 = vmin.f32 %v684, 1.0
      %v686 = vmax.f32 %v685, -1.0
      %v687 = vadd.f32 %v406, 1.0
      %v688 = vadd.f32 %v446, 1.0
      %v689 = vadd.f32 %v486, 1.0
      %v690 = vadd.f32 %v526, 1.0
      %v691 = vadd.f32 %v566, 1.0
      %v692 = vadd.f32 %v606, 1.0
      %v693 = vadd.f32 %v646, 1.0
      %v694 = vadd.f32 %v686, 1.0
      %v695 = vmul.f32 %v351, %v687
      %v696 = vmul.f32 %v352, %v688
      %v697 = vmul.f32 %v353, %v689
      %v698 = vmul.f32 %v354, %v690
      %v699 = vmul.f32 %v355, %v691
      %v700 = vmul.f32 %v356, %v692
      %v701 = vmul.f32 %v357, %v693
      %v702 = vmul.f32 %v358, %v694
      %v703 = vpack.c.bf16 %v696, %v695
      %v704 = vpack.c.bf16 %v698, %v697
      %v705 = vpack.c.bf16 %v700, %v699
      %v706 = vpack.c.bf16 %v702, %v701
      %707 = vst [vmem:[%s3] sm:$0xff] %v703
      %708 = vst [vmem:[%s3 + $0x8] sm:$0xff] %v704
      %709 = vst [vmem:[%s3 + $0x10] sm:$0x11] %v705
      %710 = vst [vmem:[%s3 + $0x18] sm:$0x11] %v706
    $region25: #{_lambda_.22} parent=1 // pred_fallthru
      _
    // Predicated region
    $region26: #{_lambda_.22} parent=1 // pred_check
      _
    $region27: #{_lambda_.22} parent=1 // pred_check_branch
      %712 = sbr.rel (0) target = $region29
    $region28: #{_lambda_.22} parent=1 // pred_region
      _
    $region29: #{_lambda_.22} parent=1 // pred_fallthru
      _
    // Predicated region
    $region30: #{_lambda_.22} parent=1 // pred_check
      _
    $region31: #{_lambda_.22} parent=1 // pred_check_branch
      %714 = sbr.rel (0) target = $region33
    $region32: #{_lambda_.22} parent=1 // pred_region
      _
    $region33: #{_lambda_.22} parent=1 // pred_fallthru
      _
    %715 = vsyncpa [#allocation4], 1

// kernel: _lambda_.23
$region0: #{_lambda_.23}
  #allocation0 [shape = 'u32[]', space=smem, size = 0x4, offset = 0x4, fixed_abs, tag = 'smem constant byte address 0x4 - core index']
  #allocation1 [shape = 'u32[72,128]{1,0:T(1,128)}', space=vmem, size = 0x9000, scoped, tag = 'internal scratch']
  #allocation2 [shape = 'f32[10,128]{1,0:T(8,128)}', space=vmem, size = 0x2000, scoped, tag = 'scratch operand']
  %s0 = inlined_call_operand.vmem [shape: bf16[10,512], index: 0, kind: input, shape index: {}]
  %s1 = inlined_call_operand.hbm [shape: bf16[512,128], index: 1, kind: input, shape index: {}]
  %s2 = inlined_call_operand.vmem [shape: f32[1,128], index: 2, kind: input, shape index: {}]
  %s3 = inlined_call_operand.vmem [shape: bf16[10,128], index: 3, kind: input, shape index: {}]
  %s4 = inlined_call_operand.vmem [shape: f32[1,128], index: 4, kind: input, shape index: {}]
  %s5 = inlined_call_operand.vmem [shape: f32[1,128], index: 5, kind: input, shape index: {}]
  %s6 = inlined_call_operand.vmem [shape: f32[1,128], index: 6, kind: input, shape index: {}]
  %s7 = inlined_call_operand.hbm [shape: bf16[10,128], index: 7, kind: output, shape index: {0}]
  %s8 = inlined_call_operand.vmem [shape: bf16[10,128], index: 8, kind: output, shape index: {1}]
  %9 = xla_tuple %s7, %s8
  %s10 = sld [smem:[#allocation0]]
  $region58: #{_lambda_.23} parent=0
    _
  %s12 = ssub.s32 1, %s10
  %s13 = scalar_select 0, %s12, %s10
  $region1: #{_lambda_.23} parent=0
    #allocation3 [shape = 'u8[131072]{0}', space=vmem, size = 0x20000, scoped, tag = 'input window, operand 1, single buffered']
    #allocation4 [shape = 's32[1]{0}', space=sflag, size = 0x4, scoped, tag = 'scoped memory for _lambda_.23']
    #allocation5 [shape = 's32[1]{0}', space=sflag, size = 0x4, scoped, tag = 'scoped memory for _lambda_.23']
    #allocation6 [shape = 'u8[4096]{0}', space=vmem, size = 0x1000, scoped, tag = 'output window, operand 0, single buffered']
    %14 = vsyncpa [#allocation4], 0
    %15 = vsyncpa [#allocation5], 0
    // Predicated region
    $region2: #{_lambda_.23} parent=1 // pred_check
      _
    $region3: #{_lambda_.23} parent=1 // pred_check_branch
      %17 = sbr.rel (0) target = $region5
    $region4: #{_lambda_.23} parent=1 // pred_region
      _
    $region5: #{_lambda_.23} parent=1 // pred_fallthru
      _
    // Predicated region
    $region6: #{_lambda_.23} parent=1 // pred_check
      _
    $region7: #{_lambda_.23} parent=1 // pred_check_branch
      %19 = sbr.rel (0) target = $region9
    $region8: #{_lambda_.23} parent=1 // pred_region
      %21 = vsyncadd [#allocation4], 0
      %s22 = sshll.u32 %s1, 4
      %s23 = int_to_ptr.hbm [resolvable:$true] %s22
      %s24 = sshll.u32 [#allocation3], 4
      %s25 = int_to_ptr.vmem [resolvable:$true] %s24
      %30 = dma.hbm_to_vmem [thread:$0]  %s23, 4096, %s25, [#allocation4], 64, 64, 4
    $region9: #{_lambda_.23} parent=1 // pred_fallthru
      _
    // Predicated region
    $region10: #{_lambda_.23} parent=1 // pred_check
      _
    $region11: #{_lambda_.23} parent=1 // pred_check_branch
      %32 = sbr.rel (0) target = $region13
    $region12: #{_lambda_.23} parent=1 // pred_region
      _
    $region13: #{_lambda_.23} parent=1 // pred_fallthru
      _
    // Predicated region
    $region14: #{_lambda_.23} parent=1 // pred_check
      _
    $region15: #{_lambda_.23} parent=1 // pred_check_branch
      %34 = sbr.rel (0) target = $region17
    $region16: #{_lambda_.23} parent=1 // pred_region
      _
    $region17: #{_lambda_.23} parent=1 // pred_fallthru
      _
    // Predicated region
    $region18: #{_lambda_.23} parent=1 // pred_check
      _
    $region19: #{_lambda_.23} parent=1 // pred_check_branch
      %36 = sbr.rel (0) target = $region21
    $region20: #{_lambda_.23} parent=1 // pred_region
      _
    $region21: #{_lambda_.23} parent=1 // pred_fallthru
      _
    // Predicated region
    $region22: #{_lambda_.23} parent=1 // pred_check
      _
    $region23: #{_lambda_.23} parent=1 // pred_check_branch
      %38 = sbr.rel (0) target = $region25
    $region24: #{_lambda_.23} parent=1 // pred_region
      _
    $region25: #{_lambda_.23} parent=1 // pred_fallthru
      _
    // Predicated region
    $region26: #{_lambda_.23} parent=1 // pred_check
      _
    $region27: #{_lambda_.23} parent=1 // pred_check_branch
      %40 = sbr.rel (0) target = $region29
    $region28: #{_lambda_.23} parent=1 // pred_region
      _
    $region29: #{_lambda_.23} parent=1 // pred_fallthru
      _
    // Predicated region
    $region30: #{_lambda_.23} parent=1 // pred_check
      _
    $region31: #{_lambda_.23} parent=1 // pred_check_branch
      %42 = sbr.rel (0) target = $region33
    $region32: #{_lambda_.23} parent=1 // pred_region
      %44 = dma.done [#allocation4], 4096
    $region33: #{_lambda_.23} parent=1 // pred_fallthru
      _
    %p45 = scmp.eq.s32.totalorder 0, 0
    // Predicated region
    $region34: #{_lambda_.23} parent=1 // pred_check
      %p46 = pneg %p45
    $region35: #{_lambda_.23} parent=1 // pred_check_branch
      %48 = sbr.rel (%p46) target = $region37
    $region36: #{_lambda_.23} parent=1 // pred_region
      %49 = vst [vmem:[#allocation2] sm:$0xff] 0.0
      %50 = vst [vmem:[#allocation2 + $0x8] sm:$0x3] 0.0
    $region37: #{_lambda_.23} parent=1 // pred_fallthru
      _
    %v51 = vld [vmem:[#allocation2] sm:$0xff]
    %v52 = vld [vmem:[#allocation2 + $0x8] sm:$0x3]
    %v53 = vld [vmem:[%s0] sm:$0xff]
    %v54 = vld [vmem:[%s0 + $0x8] sm:$0xff]
    %v55 = vld [vmem:[%s0 + $0x10] sm:$0x11]
    %v56 = vld [vmem:[%s0 + $0x18] sm:$0x11]
    %v57 = vld [vmem:[#allocation3] sm:$0xf]
    %v58 = vld [vmem:[#allocation3 + $0x4] sm:$0xf]
    %v59 = vld [vmem:[#allocation3 + $0x8] sm:$0xf]
    %v60 = vld [vmem:[#allocation3 + $0xc] sm:$0xf]
    %v61 = vld [vmem:[#allocation3 + $0x10] sm:$0xf]
    %v62 = vld [vmem:[#allocation3 + $0x14] sm:$0xf]
    %v63 = vld [vmem:[#allocation3 + $0x18] sm:$0xf]
    %v64 = vld [vmem:[#allocation3 + $0x1c] sm:$0xf]
    %v65 = vld [vmem:[#allocation3 + $0x20] sm:$0xf]
    %v66 = vld [vmem:[#allocation3 + $0x24] sm:$0xf]
    %v67 = vld [vmem:[#allocation3 + $0x28] sm:$0xf]
    %v68 = vld [vmem:[#allocation3 + $0x2c] sm:$0xf]
    %v69 = vld [vmem:[#allocation3 + $0x30] sm:$0xf]
    %v70 = vld [vmem:[#allocation3 + $0x34] sm:$0xf]
    %v71 = vld [vmem:[#allocation3 + $0x38] sm:$0xf]
    %v72 = vld [vmem:[#allocation3 + $0x3c] sm:$0xf]
    %v73 = vld [vmem:[#allocation3 + $0x40] sm:$0xf]
    %v74 = vld [vmem:[#allocation3 + $0x44] sm:$0xf]
    %v75 = vld [vmem:[#allocation3 + $0x48] sm:$0xf]
    %v76 = vld [vmem:[#allocation3 + $0x4c] sm:$0xf]
    %v77 = vld [vmem:[#allocation3 + $0x50] sm:$0xf]
    %v78 = vld [vmem:[#allocation3 + $0x54] sm:$0xf]
    %v79 = vld [vmem:[#allocation3 + $0x58] sm:$0xf]
    %v80 = vld [vmem:[#allocation3 + $0x5c] sm:$0xf]
    %v81 = vld [vmem:[#allocation3 + $0x60] sm:$0xf]
    %v82 = vld [vmem:[#allocation3 + $0x64] sm:$0xf]
    %v83 = vld [vmem:[#allocation3 + $0x68] sm:$0xf]
    %v84 = vld [vmem:[#allocation3 + $0x6c] sm:$0xf]
    %v85 = vld [vmem:[#allocation3 + $0x70] sm:$0xf]
    %v86 = vld [vmem:[#allocation3 + $0x74] sm:$0xf]
    %v87 = vld [vmem:[#allocation3 + $0x78] sm:$0xf]
    %v88 = vld [vmem:[#allocation3 + $0x7c] sm:$0xf]
    %v89 = vld [vmem:[#allocation3 + $0x80] sm:$0xf]
    %v90 = vld [vmem:[#allocation3 + $0x84] sm:$0xf]
    %v91 = vld [vmem:[#allocation3 + $0x88] sm:$0xf]
    %v92 = vld [vmem:[#allocation3 + $0x8c] sm:$0xf]
    %v93 = vld [vmem:[#allocation3 + $0x90] sm:$0xf]
    %v94 = vld [vmem:[#allocation3 + $0x94] sm:$0xf]
    %v95 = vld [vmem:[#allocation3 + $0x98] sm:$0xf]
    %v96 = vld [vmem:[#allocation3 + $0x9c] sm:$0xf]
    %v97 = vld [vmem:[#allocation3 + $0xa0] sm:$0xf]
    %v98 = vld [vmem:[#allocation3 + $0xa4] sm:$0xf]
    %v99 = vld [vmem:[#allocation3 + $0xa8] sm:$0xf]
    %v100 = vld [vmem:[#allocation3 + $0xac] sm:$0xf]
    %v101 = vld [vmem:[#allocation3 + $0xb0] sm:$0xf]
    %v102 = vld [vmem:[#allocation3 + $0xb4] sm:$0xf]
    %v103 = vld [vmem:[#allocation3 + $0xb8] sm:$0xf]
    %v104 = vld [vmem:[#allocation3 + $0xbc] sm:$0xf]
    %v105 = vld [vmem:[#allocation3 + $0xc0] sm:$0xf]
    %v106 = vld [vmem:[#allocation3 + $0xc4] sm:$0xf]
    %v107 = vld [vmem:[#allocation3 + $0xc8] sm:$0xf]
    %v108 = vld [vmem:[#allocation3 + $0xcc] sm:$0xf]
    %v109 = vld [vmem:[#allocation3 + $0xd0] sm:$0xf]
    %v110 = vld [vmem:[#allocation3 + $0xd4] sm:$0xf]
    %v111 = vld [vmem:[#allocation3 + $0xd8] sm:$0xf]
    %v112 = vld [vmem:[#allocation3 + $0xdc] sm:$0xf]
    %v113 = vld [vmem:[#allocation3 + $0xe0] sm:$0xf]
    %v114 = vld [vmem:[#allocation3 + $0xe4] sm:$0xf]
    %v115 = vld [vmem:[#allocation3 + $0xe8] sm:$0xf]
    %v116 = vld [vmem:[#allocation3 + $0xec] sm:$0xf]
    %v117 = vld [vmem:[#allocation3 + $0xf0] sm:$0xf]
    %v118 = vld [vmem:[#allocation3 + $0xf4] sm:$0xf]
    %v119 = vld [vmem:[#allocation3 + $0xf8] sm:$0xf]
    %v120 = vld [vmem:[#allocation3 + $0xfc] sm:$0xf]
    %v125 = vunpack.c.l.b16 %v53
    %v126 = vunpack.c.h.b16 %v53
    %v127 = vunpack.c.l.b16 %v54
    %v128 = vunpack.c.h.b16 %v54
    %v129 = vunpack.c.l.b16 %v55
    %v130 = vunpack.c.h.b16 %v55
    %v131 = vunpack.c.l.b16 %v56
    %v132 = vunpack.c.h.b16 %v56
    %v133 = vpack.c.b16 %v129, %v125
    %v134 = vpack.c.b16 %v130, %v126
    %v135 = vpack.c.b16 %v131, %v127
    %v136 = vpack.c.b16 %v132, %v128
    %v205 = vunpack.c.l.b16 %v57
    %v206 = vunpack.c.l.b16 %v58
    %v207 = vunpack.c.l.b16 %v59
    %v208 = vunpack.c.l.b16 %v60
    %v209 = vunpack.c.l.b16 %v61
    %v210 = vunpack.c.l.b16 %v62
    %v211 = vunpack.c.l.b16 %v63
    %v212 = vunpack.c.l.b16 %v64
    %v213 = vunpack.c.l.b16 %v65
    %v214 = vunpack.c.l.b16 %v66
    %v215 = vunpack.c.l.b16 %v67
    %v216 = vunpack.c.l.b16 %v68
    %v217 = vunpack.c.l.b16 %v69
    %v218 = vunpack.c.l.b16 %v70
    %v219 = vunpack.c.l.b16 %v71
    %v220 = vunpack.c.l.b16 %v72
    %v221 = vunpack.c.l.b16 %v73
    %v222 = vunpack.c.l.b16 %v74
    %v223 = vunpack.c.l.b16 %v75
    %v224 = vunpack.c.l.b16 %v76
    %v225 = vunpack.c.l.b16 %v77
    %v226 = vunpack.c.l.b16 %v78
    %v227 = vunpack.c.l.b16 %v79
    %v228 = vunpack.c.l.b16 %v80
    %v229 = vunpack.c.l.b16 %v81
    %v230 = vunpack.c.l.b16 %v82
    %v231 = vunpack.c.l.b16 %v83
    %v232 = vunpack.c.l.b16 %v84
    %v233 = vunpack.c.l.b16 %v85
    %v234 = vunpack.c.l.b16 %v86
    %v235 = vunpack.c.l.b16 %v87
    %v236 = vunpack.c.l.b16 %v88
    %v237 = vunpack.c.l.b16 %v89
    %v238 = vunpack.c.l.b16 %v90
    %v239 = vunpack.c.l.b16 %v91
    %v240 = vunpack.c.l.b16 %v92
    %v241 = vunpack.c.l.b16 %v93
    %v242 = vunpack.c.l.b16 %v94
    %v243 = vunpack.c.l.b16 %v95
    %v244 = vunpack.c.l.b16 %v96
    %v245 = vunpack.c.l.b16 %v97
    %v246 = vunpack.c.l.b16 %v98
    %v247 = vunpack.c.l.b16 %v99
    %v248 = vunpack.c.l.b16 %v100
    %v249 = vunpack.c.l.b16 %v101
    %v250 = vunpack.c.l.b16 %v102
    %v251 = vunpack.c.l.b16 %v103
    %v252 = vunpack.c.l.b16 %v104
    %v253 = vunpack.c.l.b16 %v105
    %v254 = vunpack.c.l.b16 %v106
    %v255 = vunpack.c.l.b16 %v107
    %v256 = vunpack.c.l.b16 %v108
    %v257 = vunpack.c.l.b16 %v109
    %v258 = vunpack.c.l.b16 %v110
    %v259 = vunpack.c.l.b16 %v111
    %v260 = vunpack.c.l.b16 %v112
    %v261 = vunpack.c.l.b16 %v113
    %v262 = vunpack.c.l.b16 %v114
    %v263 = vunpack.c.l.b16 %v115
    %v264 = vunpack.c.l.b16 %v116
    %v265 = vunpack.c.l.b16 %v117
    %v266 = vunpack.c.l.b16 %v118
    %v267 = vunpack.c.l.b16 %v119
    %v268 = vunpack.c.l.b16 %v120
    %v269 = vpack.c.b16 %v206, %v205
    %v270 = vpack.c.b16 %v208, %v207
    %v271 = vpack.c.b16 %v210, %v209
    %v272 = vpack.c.b16 %v212, %v211
    %v273 = vpack.c.b16 %v214, %v213
    %v274 = vpack.c.b16 %v216, %v215
    %v275 = vpack.c.b16 %v218, %v217
    %v276 = vpack.c.b16 %v220, %v219
    %v277 = vpack.c.b16 %v222, %v221
    %v278 = vpack.c.b16 %v224, %v223
    %v279 = vpack.c.b16 %v226, %v225
    %v280 = vpack.c.b16 %v228, %v227
    %v281 = vpack.c.b16 %v230, %v229
    %v282 = vpack.c.b16 %v232, %v231
    %v283 = vpack.c.b16 %v234, %v233
    %v284 = vpack.c.b16 %v236, %v235
    %v285 = vpack.c.b16 %v238, %v237
    %v286 = vpack.c.b16 %v240, %v239
    %v287 = vpack.c.b16 %v242, %v241
    %v288 = vpack.c.b16 %v244, %v243
    %v289 = vpack.c.b16 %v246, %v245
    %v290 = vpack.c.b16 %v248, %v247
    %v291 = vpack.c.b16 %v250, %v249
    %v292 = vpack.c.b16 %v252, %v251
    %v293 = vpack.c.b16 %v254, %v253
    %v294 = vpack.c.b16 %v256, %v255
    %v295 = vpack.c.b16 %v258, %v257
    %v296 = vpack.c.b16 %v260, %v259
    %v297 = vpack.c.b16 %v262, %v261
    %v298 = vpack.c.b16 %v264, %v263
    %v299 = vpack.c.b16 %v266, %v265
    %v300 = vpack.c.b16 %v268, %v267
    %333 = vmatpush.bf16.msra.mxu0 %v276
    %334 = vmatpush.bf16.msra.mxu0 %v275
    %335 = vmatpush.bf16.msra.mxu0 %v274
    %336 = vmatpush.bf16.msra.mxu0 %v273
    %337 = vmatpush.bf16.msra.mxu0 %v272
    %338 = vmatpush.bf16.msra.mxu0 %v271
    %339 = vmatpush.bf16.msra.mxu0 %v270
    %340 = vmatpush.bf16.msra.mxu0 %v269
    %341 = vmatmul.bf16.gmra.mxu0 %v133
    %v342 = vpop.f32.mrf.mxu0
    %v343 = vadd.f32 0.0, %v342
    %v344 = vpop.f32.mrf.mxu0
    %v345 = vadd.f32 0.0, %v344
    %346 = vdwg.mxu0
    %347 = vmatpush.bf16.msra.mxu0 %v284
    %348 = vmatpush.bf16.msra.mxu0 %v283
    %349 = vmatpush.bf16.msra.mxu0 %v282
    %350 = vmatpush.bf16.msra.mxu0 %v281
    %351 = vmatpush.bf16.msra.mxu0 %v280
    %352 = vmatpush.bf16.msra.mxu0 %v279
    %353 = vmatpush.bf16.msra.mxu0 %v278
    %354 = vmatpush.bf16.msra.mxu0 %v277
    %355 = vmatmul.bf16.gmra.mxu0 %v134
    %v356 = vpop.f32.mrf.mxu0
    %v357 = vadd.f32 %v343, %v356
    %v358 = vpop.f32.mrf.mxu0
    %v359 = vadd.f32 %v345, %v358
    %360 = vdwg.mxu0
    %361 = vmatpush.bf16.msra.mxu0 %v292
    %362 = vmatpush.bf16.msra.mxu0 %v291
    %363 = vmatpush.bf16.msra.mxu0 %v290
    %364 = vmatpush.bf16.msra.mxu0 %v289
    %365 = vmatpush.bf16.msra.mxu0 %v288
    %366 = vmatpush.bf16.msra.mxu0 %v287
    %367 = vmatpush.bf16.msra.mxu0 %v286
    %368 = vmatpush.bf16.msra.mxu0 %v285
    %369 = vmatmul.bf16.gmra.mxu0 %v135
    %v370 = vpop.f32.mrf.mxu0
    %v371 = vadd.f32 %v357, %v370
    %v372 = vpop.f32.mrf.mxu0
    %v373 = vadd.f32 %v359, %v372
    %374 = vdwg.mxu0
    %375 = vmatpush.bf16.msra.mxu0 %v300
    %376 = vmatpush.bf16.msra.mxu0 %v299
    %377 = vmatpush.bf16.msra.mxu0 %v298
    %378 = vmatpush.bf16.msra.mxu0 %v297
    %379 = vmatpush.bf16.msra.mxu0 %v296
    %380 = vmatpush.bf16.msra.mxu0 %v295
    %381 = vmatpush.bf16.msra.mxu0 %v294
    %382 = vmatpush.bf16.msra.mxu0 %v293
    %383 = vmatmul.bf16.gmra.mxu0 %v136
    %v384 = vpop.f32.mrf.mxu0
    %v385 = vadd.f32 %v371, %v384
    %v386 = vpop.f32.mrf.mxu0
    %v387 = vadd.f32 %v373, %v386
    %388 = vdwg.mxu0
    %v389 = vadd.f32 %v51, %v385
    %v390 = vadd.f32 %v52, %v387
    %391 = vst [vmem:[#allocation2] sm:$0xff] %v389
    %392 = vst [vmem:[#allocation2 + $0x8] sm:$0x3] %v390
    // Predicated region
    $region38: #{_lambda_.23} parent=1 // pred_check
      %p393 = pneg %p45
    $region39: #{_lambda_.23} parent=1 // pred_check_branch
      %395 = sbr.rel (%p393) target = $region41
    $region40: #{_lambda_.23} parent=1 // pred_region
      %v396 = vld [vmem:[#allocation2] sm:$0xff]
      %v397 = vld [vmem:[#allocation2 + $0x8] sm:$0x3]
      %v398 = vld [vmem:[%s2] sm:$0x1]
      %v400 = vperm.slane %v398, 0
      %v402 = vadd.f32 %v396, %v400
      %v403 = vadd.f32 %v397, %v400
      %v404 = vld [vmem:[%s3] sm:$0xf]
      %v405 = vld [vmem:[%s3 + $0x4] sm:$0x1]
      %v406 = vunpack.c.l.bf16 %v404
      %v407 = vunpack.c.l.bf16 %v405
      %v408 = vld [vmem:[%s4] sm:$0x1]
      %v410 = vperm.slane %v408, 0
      %v412 = vmul.f32 %v402, %v410
      %v413 = vmul.f32 %v403, %v410
      %v414 = vadd.f32 %v406, %v412
      %v415 = vadd.f32 %v407, %v413
      %v416 = vpack.c.bf16 %v414, %v414
      %v417 = vpack.c.bf16 %v415, %v415
      %418 = vst [vmem:[#allocation6] sm:$0xf] %v416
      %419 = vst [vmem:[#allocation6 + $0x4] sm:$0x1] %v417
      %420 = vadd.xlane.f32.xlu0 %v414
      %v421 = vpop.xlane.xlu0 %420
      %vm422 = vcmask 1041408
      %v423 = vsel %vm422, %v415, 0.0
      %424 = vadd.xlane.f32.xlu0 %v423
      %v425 = vpop.xlane.xlu0 %424
      %v426 = vrcp.pop 128.0
      %v427 = vmul.f32 128.0, %v426
      %v428 = vsub.f32 1.0, %v427
      %v429 = vmul.f32 %v426, %v428
      %v430 = vadd.f32 %v426, %v429
      %vm431 = vweird.f32 %v426
      %v432 = vsel %vm431, %v426, %v430
      %v433 = vmul.f32 %v421, %v432
      %v434 = vmul.f32 %v425, %v432
      %v435 = vsub.f32 %v414, %v433
      %v436 = vsub.f32 %v415, %v434
      %v437 = vmul.f32 %v435, %v435
      %v438 = vmul.f32 %v436, %v436
      %439 = vadd.xlane.f32.xlu0 %v437
      %v440 = vpop.xlane.xlu0 %439
      %v441 = vsel %vm422, %v438, 0.0
      %442 = vadd.xlane.f32.xlu0 %v441
      %v443 = vpop.xlane.xlu0 %442
      %v444 = vmul.f32 %v440, %v432
      %v445 = vmul.f32 %v443, %v432
      %v446 = vadd.f32 %v444, 1e-06
      %v447 = vadd.f32 %v445, 1e-06
      %v448 = vrsqrt.pop %v446
      %v449 = vmul.f32 %v448, %v446
      %v450 = vmul.f32 %v449, %v448
      %v451 = vmul.f32 0.5, %v450
      %v452 = vsub.f32 1.5, %v451
      %v453 = vmul.f32 %v448, %v452
      %vm454 = vweird.f32 %v446
      %vm455 = vweird.f32 %v448
      %vm456 = vmor %vm454, %vm455
      %v457 = vsel %vm456, %v448, %v453
      %v458 = vrsqrt.pop %v447
      %v459 = vmul.f32 %v458, %v447
      %v460 = vmul.f32 %v459, %v458
      %v461 = vmul.f32 0.5, %v460
      %v462 = vsub.f32 1.5, %v461
      %v463 = vmul.f32 %v458, %v462
      %vm464 = vweird.f32 %v447
      %vm465 = vweird.f32 %v458
      %vm466 = vmor %vm464, %vm465
      %v467 = vsel %vm466, %v458, %v463
      %v468 = vmul.f32 %v435, %v457
      %v469 = vmul.f32 %v436, %v467
      %v470 = vld [vmem:[%s5] sm:$0x1]
      %v472 = vperm.slane %v470, 0
      %v474 = vmul.f32 %v468, %v472
      %v475 = vmul.f32 %v469, %v472
      %v476 = vld [vmem:[%s6] sm:$0x1]
      %v478 = vperm.slane %v476, 0
      %v480 = vadd.f32 %v474, %v478
      %v481 = vadd.f32 %v475, %v478
      %v482 = vpack.c.bf16 %v480, %v480
      %v483 = vpack.c.bf16 %v481, %v481
      %484 = vst [vmem:[%s8] sm:$0xf] %v482
      %485 = vst [vmem:[%s8 + $0x4] sm:$0x1] %v483
    $region41: #{_lambda_.23} parent=1 // pred_fallthru
      _
    // Predicated region
    $region42: #{_lambda_.23} parent=1 // pred_check
      _
    $region43: #{_lambda_.23} parent=1 // pred_check_branch
      %487 = sbr.rel (0) target = $region45
    $region44: #{_lambda_.23} parent=1 // pred_region
      %489 = vsyncadd [#allocation5], 0
      %s490 = sshll.u32 [#allocation6], 4
      %s491 = int_to_ptr.vmem [resolvable:$true] %s490
      %s492 = sshll.u32 %s7, 4
      %s493 = int_to_ptr.hbm [resolvable:$true] %s492
      %498 = dma.vmem_to_hbm [thread:$0]  %s491, 128, %s493, [#allocation5], 64, 64, 4
    $region45: #{_lambda_.23} parent=1 // pred_fallthru
      _
    // Predicated region
    $region46: #{_lambda_.23} parent=1 // pred_check
      _
    $region47: #{_lambda_.23} parent=1 // pred_check_branch
      %500 = sbr.rel (0) target = $region49
    $region48: #{_lambda_.23} parent=1 // pred_region
      _
    $region49: #{_lambda_.23} parent=1 // pred_fallthru
      _
    // Predicated region
    $region50: #{_lambda_.23} parent=1 // pred_check
      _
    $region51: #{_lambda_.23} parent=1 // pred_check_branch
      %502 = sbr.rel (0) target = $region53
    $region52: #{_lambda_.23} parent=1 // pred_region
      %504 = dma.done [#allocation5], 128
    $region53: #{_lambda_.23} parent=1 // pred_fallthru
      _
    // Predicated region
    $region54: #{_lambda_.23} parent=1 // pred_check
      _
    $region55: #{_lambda_.23} parent=1 // pred_check_branch
      %506 = sbr.rel (0) target = $region57
    $region56: #{_lambda_.23} parent=1 // pred_region
      _
    $region57: #{_lambda_.23} parent=1 // pred_fallthru
      _
    %507 = vsyncpa [#allocation4], 1
    %508 = vsyncpa [#allocation5], 1

</llo_original>
